<compile_context>
chip_gen: v7x
topology: tpu7x:2x2x1
jax: 0.10.0
libtpu: 0.0.40
codegen_flags: <defaults>
</compile_context>

<pallas_src>
import functools
import math

import jax
import jax.numpy as jnp
from jax.experimental import pallas as pl
from jax.experimental.pallas import tpu as pltpu


def _round_up(x, m):
    return ((x + m - 1) // m) * m


# ----------------------------------------------------------------------------
# Fused kernel: one batch element per grid step.
# ----------------------------------------------------------------------------
def coattn_kernel(x1_ref, x2_ref, w1_ref, b1_ref, w2_ref, b2_ref,
                  wo1_ref, bo1_ref, wo2_ref, bo2_ref,
                  o1_ref, o2_ref, *, num_heads):
    # Per grid step (one batch element):
    #   x1_ref: (1, L1, D1) bf16       x2_ref: (1, L2, D2) bf16
    #   w1_ref: (D1, 3*E_pad) bf16     b1_ref: (1, 3*E_pad) f32
    #   w2_ref: (D2, 3*E_pad) bf16     b2_ref: (1, 3*E_pad) f32
    #   wo*_ref: (E_pad, E) bf16       bo*_ref: (1, E) f32
    #   o1_ref: (1, L1, E) f32         o2_ref: (1, L2, E) f32
    H = num_heads
    E_pad = wo1_ref.shape[0]
    dhp = E_pad // H

    x1 = x1_ref[0]                                   # (L1, D1)
    x2 = x2_ref[0]                                   # (L2, D2)

    # One wide MXU matmul per source: fused (fc + packed q/k/v in-projection).
    # fc1/fc2 and the 1/sqrt(dh) query scale are folded into the weights.
    p1 = jnp.dot(x1, w1_ref[...], preferred_element_type=jnp.float32) + b1_ref[...]
    p2 = jnp.dot(x2, w2_ref[...], preferred_element_type=jnp.float32) + b2_ref[...]

    # 128-lane-aligned slices (each packed segment is E_pad = multiple of 128).
    q_a1 = p1[:, 0 * E_pad:1 * E_pad]                # attn1 query (from x1)
    k_a2 = p1[:, 1 * E_pad:2 * E_pad]                # attn2 key   (from x1)
    v_a2 = p1[:, 2 * E_pad:3 * E_pad]                # attn2 value (from x1)
    q_a2 = p2[:, 0 * E_pad:1 * E_pad]                # attn2 query (from x2)
    k_a1 = p2[:, 1 * E_pad:2 * E_pad]                # attn1 key   (from x2)
    v_a1 = p2[:, 2 * E_pad:3 * E_pad]                # attn1 value (from x2)

    def mha(q, k, v, wo_ref, bo_ref, o_ref):
        lq, lk = q.shape[0], k.shape[0]
        # Head-major layout once per operand (single transpose, not one per
        # einsum); padded head dims are exactly zero so they do not change the
        # score contraction or the value aggregation.
        qh = jnp.swapaxes(q.reshape(lq, H, dhp), 0, 1).astype(jnp.bfloat16)  # (H, lq, dhp)
        kh = jnp.swapaxes(k.reshape(lk, H, dhp), 0, 1).astype(jnp.bfloat16)  # (H, lk, dhp)
        vh = jnp.swapaxes(v.reshape(lk, H, dhp), 0, 1).astype(jnp.bfloat16)  # (H, lk, dhp)

        s = jnp.einsum('hqd,hkd->hqk', qh, kh,
                       preferred_element_type=jnp.float32)                   # (H, lq, lk)
        s = s - jnp.max(s, axis=-1, keepdims=True)                           # stable softmax
        p = jnp.exp(s)
        p = p * pl.reciprocal(jnp.sum(p, axis=-1, keepdims=True), approx=True)

        o = jnp.einsum('hqk,hkd->hqd', p.astype(jnp.bfloat16), vh,
                       preferred_element_type=jnp.float32)                   # (H, lq, dhp)
        o = jnp.swapaxes(o, 0, 1).reshape(lq, E_pad).astype(jnp.bfloat16)    # concat heads
        out = jnp.dot(o, wo_ref[...], preferred_element_type=jnp.float32) + bo_ref[...]
        o_ref[0] = out.astype(o_ref.dtype)

    mha(q_a1, k_a1, v_a1, wo1_ref, bo1_ref, o1_ref)   # attn1(q1, q2, q2)
    mha(q_a2, k_a2, v_a2, wo2_ref, bo2_ref, o2_ref)   # attn2(q2, q1, q1)


# ----------------------------------------------------------------------------
# Host-side parameter folding / packing / head-dim padding
# ----------------------------------------------------------------------------
def prepare_fused_params(params, num_heads, dh_pad):
    E = params["fc1_w"].shape[0]
    H = num_heads
    dh = E // H
    E_pad = H * dh_pad
    scale = 1.0 / math.sqrt(dh)

    fc1_w, fc1_b = params["fc1_w"], params["fc1_b"]   # (E, D1), (E,)
    fc2_w, fc2_b = params["fc2_w"], params["fc2_b"]   # (E, D2), (E,)
    wq1, wk1, wv1, bq1, bk1, bv1, wo1, bo1 = params["attn1"]
    wq2, wk2, wv2, bq2, bk2, bv2, wo2, bo2 = params["attn2"]

    def fold(fc_w, fc_b, w, b, s=1.0):
        # y = (x @ fc_w^T + fc_b) @ w^T + b  ==  x @ W_eff + b_eff   (then *s)
        w_eff = (fc_w.T @ w.T) * s            # (Din, E)
        b_eff = (fc_b @ w.T + b) * s          # (E,)
        return w_eff, b_eff

    def pad_w(w_eff):
        # (Din, E) -> (Din, E_pad): per-head zero-pad dh -> dh_pad so each
        # packed q/k/v segment is a multiple of 128 lanes (aligned slices).
        din = w_eff.shape[0]
        w3 = w_eff.reshape(din, H, dh)
        return (jnp.zeros((din, H, dh_pad), w_eff.dtype)
                .at[:, :, :dh].set(w3).reshape(din, E_pad))

    def pad_b(b_eff):
        return (jnp.zeros((H, dh_pad), b_eff.dtype)
                .at[:, :dh].set(b_eff.reshape(H, dh)).reshape(E_pad))

    def pad_wo(wo):
        # out = concat_heads @ wo^T ; rows of wo^T are indexed by (head, dim),
        # so zero-pad them to (E_pad, E): the all-zero padded dims are inert.
        woT = wo.T.reshape(H, dh, E)
        return (jnp.zeros((H, dh_pad, E), wo.dtype)
                .at[:, :dh, :].set(woT).reshape(E_pad, E))

    # x1 feeds: attn1 query (scaled), attn2 key, attn2 value.
    wq_a1, bq_a1 = fold(fc1_w, fc1_b, wq1, bq1, scale)
    wk_a2, bk_a2 = fold(fc1_w, fc1_b, wk2, bk2)
    wv_a2, bv_a2 = fold(fc1_w, fc1_b, wv2, bv2)
    w1_pack = jnp.concatenate([pad_w(wq_a1), pad_w(wk_a2), pad_w(wv_a2)], axis=1)
    b1_pack = jnp.concatenate([pad_b(bq_a1), pad_b(bk_a2), pad_b(bv_a2)]).reshape(1, 3 * E_pad)

    # x2 feeds: attn2 query (scaled), attn1 key, attn1 value.
    wq_a2, bq_a2 = fold(fc2_w, fc2_b, wq2, bq2, scale)
    wk_a1, bk_a1 = fold(fc2_w, fc2_b, wk1, bk1)
    wv_a1, bv_a1 = fold(fc2_w, fc2_b, wv1, bv1)
    w2_pack = jnp.concatenate([pad_w(wq_a2), pad_w(wk_a1), pad_w(wv_a1)], axis=1)
    b2_pack = jnp.concatenate([pad_b(bq_a2), pad_b(bk_a1), pad_b(bv_a1)]).reshape(1, 3 * E_pad)

    bf = jnp.bfloat16
    return (w1_pack.astype(bf), b1_pack, w2_pack.astype(bf), b2_pack,
            pad_wo(wo1).astype(bf), bo1.reshape(1, E),
            pad_wo(wo2).astype(bf), bo2.reshape(1, E))


# ----------------------------------------------------------------------------
# Forward wrapper: single fused pallas_call, gridded over batch.
# ----------------------------------------------------------------------------
@functools.partial(jax.jit, static_argnames=("num_heads",))
def co_attention_forward(params, x1, x2, num_heads=8):
    B, L1, D1 = x1.shape
    _, L2, D2 = x2.shape
    E = params["fc1_w"].shape[0]
    assert E % num_heads == 0, "hidden_dim must be divisible by num_heads"

    # Pad the per-head dim so every packed q/k/v segment (H * dh_pad lanes) is
    # a multiple of 128 -> tile-aligned slices in the kernel.  No-op when E is
    # already a suitable multiple of 128.
    dh = E // num_heads
    E_pad = _round_up(E, 128)
    while E_pad % num_heads:
        E_pad += 128
    dh_pad = E_pad // num_heads
    assert dh_pad >= dh

    w1, b1, w2, b2, wo1, bo1, wo2, bo2 = prepare_fused_params(params, num_heads, dh_pad)

    bf = jnp.bfloat16
    x1b = x1.astype(bf)
    x2b = x2.astype(bf)

    kernel = functools.partial(coattn_kernel, num_heads=num_heads)

    def pinned(shape):
        # Weights/biases: constant block index -> stay resident in VMEM, no
        # per-step re-DMA; only x/o operands are pipelined (default Buffered(2)).
        return pl.BlockSpec(shape, lambda b: (0, 0))

    o1, o2 = pl.pallas_call(
        kernel,
        grid=(B,),
        in_specs=[
            pl.BlockSpec((1, L1, D1), lambda b: (b, 0, 0)),
            pl.BlockSpec((1, L2, D2), lambda b: (b, 0, 0)),
            pinned(w1.shape), pinned(b1.shape),
            pinned(w2.shape), pinned(b2.shape),
            pinned(wo1.shape), pinned(bo1.shape),
            pinned(wo2.shape), pinned(bo2.shape),
        ],
        out_specs=(
            pl.BlockSpec((1, L1, E), lambda b: (b, 0, 0)),
            pl.BlockSpec((1, L2, E), lambda b: (b, 0, 0)),
        ),
        out_shape=(jax.ShapeDtypeStruct((B, L1, E), jnp.float32),
                   jax.ShapeDtypeStruct((B, L2, E), jnp.float32)),
        compiler_params=pltpu.CompilerParams(
            # Batch steps are independent -> shard across TensorCores on v7x.
            dimension_semantics=("parallel",),
            # Explicit budget: comfortably inside v5e/v6e/v7x scoped VMEM.
            vmem_limit_bytes=32 * 1024 * 1024,
        ),
    )(x1b, x2b, w1, b1, w2, b2, wo1, bo1, wo2, bo2)

    # Dropout -> identity (eval mode).
    return o1, o2


# ----------------------------------------------------------------------------
# Parameter init (independent keys) and pure-JAX reference for verification
# ----------------------------------------------------------------------------
def init_co_attention_params(key, input_dim1, input_dim2, hidden_dim):
    E = hidden_dim
    ks = list(jax.random.split(key, 20))

    def lin(k, out_d, in_d, scale=0.05):
        return jax.random.normal(k, (out_d, in_d), jnp.float32) * scale

    def vec(k, d, scale=0.02):
        return jax.random.normal(k, (d,), jnp.float32) * scale

    def mha_params(kset):
        wq, wk, wv = lin(kset[0], E, E), lin(kset[1], E, E), lin(kset[2], E, E)
        bq, bk, bv = vec(kset[3], E), vec(kset[4], E), vec(kset[5], E)
        wo, bo = lin(kset[6], E, E), vec(kset[7], E)
        return (wq, wk, wv, bq, bk, bv, wo, bo)

    return {
        "fc1_w": lin(ks[0], E, input_dim1), "fc1_b": vec(ks[1], E),
        "fc2_w": lin(ks[2], E, input_dim2), "fc2_b": vec(ks[3], E),
        "attn1": mha_params(ks[4:12]),
        "attn2": mha_params(ks[12:20]),
    }


def _reference_forward(params, x1, x2, num_heads):
    """Pure-JAX (XLA, full f32) re-implementation of the PyTorch module (eval mode)."""
    E = params["fc1_w"].shape[0]
    dh = E // num_heads

    def linear(x, w, b):
        return x @ w.T + b

    def mha(q_src, kv_src, p):
        wq, wk, wv, bq, bk, bv, wo, bo = p
        q = linear(q_src, wq, bq) / math.sqrt(dh)
        k = linear(kv_src, wk, bk)
        v = linear(kv_src, wv, bv)
        B, Lq, _ = q.shape
        Lk = k.shape[1]
        q = q.reshape(B, Lq, num_heads, dh).transpose(0, 2, 1, 3)
        k = k.reshape(B, Lk, num_heads, dh).transpose(0, 2, 1, 3)
        v = v.reshape(B, Lk, num_heads, dh).transpose(0, 2, 1, 3)
        s = jnp.einsum('bhqd,bhkd->bhqk', q, k)
        a = jax.nn.softmax(s, axis=-1)
        o = jnp.einsum('bhqk,bhkd->bhqd', a, v)
        o = o.transpose(0, 2, 1, 3).reshape(B, Lq, E)
        return linear(o, wo, bo)

    q1 = linear(x1, params["fc1_w"], params["fc1_b"])
    q2 = linear(x2, params["fc2_w"], params["fc2_b"])
    return mha(q1, q2, params["attn1"]), mha(q2, q1, params["attn2"])


# ----------------------------------------------------------------------------
if __name__ == "__main__":
    B = 2
    L1, L2 = 8, 16
    D1, D2 = 12, 20
    HIDDEN = 32
    HEADS = 8

    key = jax.random.PRNGKey(0)
    k_params, k_x1, k_x2 = jax.random.split(key, 3)
    params = init_co_attention_params(k_params, D1, D2, HIDDEN)

    x1 = jax.random.normal(k_x1, (B, L1, D1), jnp.float32)
    x2 = jax.random.normal(k_x2, (B, L2, D2), jnp.float32)

    out1, out2 = co_attention_forward(params, x1, x2, num_heads=HEADS)
    jax.block_until_ready((out1, out2))

    assert out1.shape == (B, L1, HIDDEN)
    assert out2.shape == (B, L2, HIDDEN)
    assert jnp.all(jnp.isfinite(out1)) and jnp.all(jnp.isfinite(out2))

    # Numerical check vs the pure-JAX f32 reference (loose tol: bf16 operands,
    # approx reciprocal, host-side weight folding reorder rounding).
    ref1, ref2 = _reference_forward(params, x1, x2, HEADS)
    err = max(float(jnp.max(jnp.abs(out1 - ref1))),
              float(jnp.max(jnp.abs(out2 - ref2))))
    assert err < 3e-2, f"mismatch vs reference: {err}"

    print("KERNEL_OK")
</pallas_src>

<mosaic_0001>
module attributes {stable_mosaic.version = 11 : i64} {
  func.func @coattn_kernel(%arg0: i32, %arg1: memref<1x8x12xbf16, #tpu.memory_space<vmem>>, %arg2: memref<1x16x20xbf16, #tpu.memory_space<vmem>>, %arg3: memref<12x384xbf16, #tpu.memory_space<vmem>>, %arg4: memref<1x384xf32, #tpu.memory_space<vmem>>, %arg5: memref<20x384xbf16, #tpu.memory_space<vmem>>, %arg6: memref<1x384xf32, #tpu.memory_space<vmem>>, %arg7: memref<128x32xbf16, #tpu.memory_space<vmem>>, %arg8: memref<1x32xf32, #tpu.memory_space<vmem>>, %arg9: memref<128x32xbf16, #tpu.memory_space<vmem>>, %arg10: memref<1x32xf32, #tpu.memory_space<vmem>>, %arg11: memref<1x8x32xf32, #tpu.memory_space<vmem>>, %arg12: memref<1x16x32xf32, #tpu.memory_space<vmem>>) attributes {dimension_semantics = [#tpu.dimension_semantics<parallel>], iteration_bounds = array<i64: 2>, scalar_prefetch = 0 : i64, scratch_operands = 0 : i64, tpu.core_type = #tpu.core_type<tc>, window_params = [{transform_indices = @transform_0, window_bounds = array<i64: 1, 8, 12>}, {transform_indices = @transform_1, window_bounds = array<i64: 1, 16, 20>}, {pipeline_mode = #tpu.pipeline_mode<synchronous>, transform_indices = @transform_2, window_bounds = array<i64: 12, 384>}, {pipeline_mode = #tpu.pipeline_mode<synchronous>, transform_indices = @transform_3, window_bounds = array<i64: 1, 384>}, {pipeline_mode = #tpu.pipeline_mode<synchronous>, transform_indices = @transform_4, window_bounds = array<i64: 20, 384>}, {pipeline_mode = #tpu.pipeline_mode<synchronous>, transform_indices = @transform_5, window_bounds = array<i64: 1, 384>}, {pipeline_mode = #tpu.pipeline_mode<synchronous>, transform_indices = @transform_6, window_bounds = array<i64: 128, 32>}, {pipeline_mode = #tpu.pipeline_mode<synchronous>, transform_indices = @transform_7, window_bounds = array<i64: 1, 32>}, {pipeline_mode = #tpu.pipeline_mode<synchronous>, transform_indices = @transform_8, window_bounds = array<i64: 128, 32>}, {pipeline_mode = #tpu.pipeline_mode<synchronous>, transform_indices = @transform_9, window_bounds = array<i64: 1, 32>}, {transform_indices = @transform_10, window_bounds = array<i64: 1, 8, 32>}, {transform_indices = @transform_11, window_bounds = array<i64: 1, 16, 32>}]} {
    %c0 = arith.constant 0 : index
    %c0_0 = arith.constant 0 : index
    %c0_1 = arith.constant 0 : index
    %0 = vector.load %arg1[%c0, %c0_0, %c0_1] : memref<1x8x12xbf16, #tpu.memory_space<vmem>>, vector<1x8x12xbf16>
    %1 = vector.shape_cast %0 : vector<1x8x12xbf16> to vector<8x12xbf16>
    %c0_2 = arith.constant 0 : index
    %c0_3 = arith.constant 0 : index
    %c0_4 = arith.constant 0 : index
    %2 = vector.load %arg2[%c0_2, %c0_3, %c0_4] : memref<1x16x20xbf16, #tpu.memory_space<vmem>>, vector<1x16x20xbf16>
    %3 = vector.shape_cast %2 : vector<1x16x20xbf16> to vector<16x20xbf16>
    %c0_5 = arith.constant 0 : index
    %c0_6 = arith.constant 0 : index
    %4 = vector.load %arg3[%c0_5, %c0_6] : memref<12x384xbf16, #tpu.memory_space<vmem>>, vector<12x384xbf16>
    %cst = arith.constant dense<0.000000e+00> : vector<8x384xf32>
    %5 = tpu.matmul %1, %4, %cst {dimension_numbers = #tpu.dot_dimension_numbers<[1], [0], [0], [1], [0, 0, 1, 1], [], []>} : vector<8x12xbf16>, vector<12x384xbf16>, vector<8x384xf32> -> vector<8x384xf32>
    %c0_7 = arith.constant 0 : index
    %c0_8 = arith.constant 0 : index
    %6 = vector.load %arg4[%c0_7, %c0_8] : memref<1x384xf32, #tpu.memory_space<vmem>>, vector<1x384xf32>
    %7 = vector.broadcast %6 : vector<1x384xf32> to vector<8x384xf32>
    %8 = arith.addf %5, %7 : vector<8x384xf32>
    %c0_9 = arith.constant 0 : index
    %c0_10 = arith.constant 0 : index
    %9 = vector.load %arg5[%c0_9, %c0_10] : memref<20x384xbf16, #tpu.memory_space<vmem>>, vector<20x384xbf16>
    %cst_11 = arith.constant dense<0.000000e+00> : vector<16x384xf32>
    %10 = tpu.matmul %3, %9, %cst_11 {dimension_numbers = #tpu.dot_dimension_numbers<[1], [0], [0], [1], [0, 0, 1, 1], [], []>} : vector<16x20xbf16>, vector<20x384xbf16>, vector<16x384xf32> -> vector<16x384xf32>
    %c0_12 = arith.constant 0 : index
    %c0_13 = arith.constant 0 : index
    %11 = vector.load %arg6[%c0_12, %c0_13] : memref<1x384xf32, #tpu.memory_space<vmem>>, vector<1x384xf32>
    %12 = vector.broadcast %11 : vector<1x384xf32> to vector<16x384xf32>
    %13 = arith.addf %10, %12 : vector<16x384xf32>
    %14 = vector.extract_strided_slice %8 {offsets = [0, 0], sizes = [8, 128], strides = [1, 1]} : vector<8x384xf32> to vector<8x128xf32>
    %15 = vector.extract_strided_slice %8 {offsets = [0, 128], sizes = [8, 128], strides = [1, 1]} : vector<8x384xf32> to vector<8x128xf32>
    %16 = vector.extract_strided_slice %8 {offsets = [0, 256], sizes = [8, 128], strides = [1, 1]} : vector<8x384xf32> to vector<8x128xf32>
    %17 = vector.extract_strided_slice %13 {offsets = [0, 0], sizes = [16, 128], strides = [1, 1]} : vector<16x384xf32> to vector<16x128xf32>
    %18 = vector.extract_strided_slice %13 {offsets = [0, 128], sizes = [16, 128], strides = [1, 1]} : vector<16x384xf32> to vector<16x128xf32>
    %19 = vector.extract_strided_slice %13 {offsets = [0, 256], sizes = [16, 128], strides = [1, 1]} : vector<16x384xf32> to vector<16x128xf32>
    %20 = vector.shape_cast %14 : vector<8x128xf32> to vector<8x8x16xf32>
    %21 = tpu.transpose %20, [1, 0, 2] : vector<8x8x16xf32> -> vector<8x8x16xf32>
    %22 = arith.truncf %21 : vector<8x8x16xf32> to vector<8x8x16xbf16>
    %23 = vector.shape_cast %18 : vector<16x128xf32> to vector<16x8x16xf32>
    %24 = tpu.transpose %23, [1, 0, 2] : vector<16x8x16xf32> -> vector<8x16x16xf32>
    %25 = arith.truncf %24 : vector<8x16x16xf32> to vector<8x16x16xbf16>
    %26 = vector.shape_cast %19 : vector<16x128xf32> to vector<16x8x16xf32>
    %27 = tpu.transpose %26, [1, 0, 2] : vector<16x8x16xf32> -> vector<8x16x16xf32>
    %28 = arith.truncf %27 : vector<8x16x16xf32> to vector<8x16x16xbf16>
    "tpu.trace_start"() <{level = 10 : i32, message = "hqd,hkd->hqk"}> : () -> ()
    %cst_14 = arith.constant dense<0.000000e+00> : vector<8x8x16xf32>
    %29 = tpu.matmul %22, %25, %cst_14 {dimension_numbers = #tpu.dot_dimension_numbers<[2], [2], [1], [1], [0, 0, 0, 1, 1, 1], [0], [0]>} : vector<8x8x16xbf16>, vector<8x16x16xbf16>, vector<8x8x16xf32> -> vector<8x8x16xf32>
    "tpu.trace_stop"() : () -> ()
    %cst_15 = arith.constant dense<0xFF800000> : vector<8x8xf32>
    %30 = vector.multi_reduction <maximumf>, %29, %cst_15 [2] : vector<8x8x16xf32> to vector<8x8xf32>
    %31 = vector.shape_cast %30 : vector<8x8xf32> to vector<8x8x1xf32>
    %32 = vector.broadcast %31 : vector<8x8x1xf32> to vector<8x8x16xf32>
    %33 = arith.subf %29, %32 : vector<8x8x16xf32>
    %34 = math.exp %33 : vector<8x8x16xf32>
    %cst_16 = arith.constant dense<0.000000e+00> : vector<8x8xf32>
    %35 = vector.multi_reduction <add>, %34, %cst_16 [2] : vector<8x8x16xf32> to vector<8x8xf32>
    %36 = vector.shape_cast %35 : vector<8x8xf32> to vector<8x8x1xf32>
    %37 = tpu.reciprocal %36 {approx = true} : vector<8x8x1xf32> -> vector<8x8x1xf32>
    %38 = vector.broadcast %37 : vector<8x8x1xf32> to vector<8x8x16xf32>
    %39 = arith.mulf %34, %38 : vector<8x8x16xf32>
    %40 = arith.truncf %39 : vector<8x8x16xf32> to vector<8x8x16xbf16>
    "tpu.trace_start"() <{level = 10 : i32, message = "hqk,hkd->hqd"}> : () -> ()
    %cst_17 = arith.constant dense<0.000000e+00> : vector<8x8x16xf32>
    %41 = tpu.matmul %40, %28, %cst_17 {dimension_numbers = #tpu.dot_dimension_numbers<[2], [1], [1], [2], [0, 0, 0, 1, 1, 2], [0], [0]>} : vector<8x8x16xbf16>, vector<8x16x16xbf16>, vector<8x8x16xf32> -> vector<8x8x16xf32>
    "tpu.trace_stop"() : () -> ()
    %42 = tpu.transpose %41, [1, 0, 2] : vector<8x8x16xf32> -> vector<8x8x16xf32>
    %43 = vector.shape_cast %42 : vector<8x8x16xf32> to vector<8x128xf32>
    %44 = arith.truncf %43 : vector<8x128xf32> to vector<8x128xbf16>
    %c0_18 = arith.constant 0 : index
    %c0_19 = arith.constant 0 : index
    %45 = vector.load %arg7[%c0_18, %c0_19] : memref<128x32xbf16, #tpu.memory_space<vmem>>, vector<128x32xbf16>
    %cst_20 = arith.constant dense<0.000000e+00> : vector<8x32xf32>
    %46 = tpu.matmul %44, %45, %cst_20 {dimension_numbers = #tpu.dot_dimension_numbers<[1], [0], [0], [1], [0, 0, 1, 1], [], []>} : vector<8x128xbf16>, vector<128x32xbf16>, vector<8x32xf32> -> vector<8x32xf32>
    %c0_21 = arith.constant 0 : index
    %c0_22 = arith.constant 0 : index
    %47 = vector.load %arg8[%c0_21, %c0_22] : memref<1x32xf32, #tpu.memory_space<vmem>>, vector<1x32xf32>
    %48 = vector.broadcast %47 : vector<1x32xf32> to vector<8x32xf32>
    %49 = arith.addf %46, %48 : vector<8x32xf32>
    %c0_23 = arith.constant 0 : index
    %c0_24 = arith.constant 0 : index
    %c0_25 = arith.constant 0 : index
    %50 = vector.load %arg11[%c0_23, %c0_24, %c0_25] : memref<1x8x32xf32, #tpu.memory_space<vmem>>, vector<1x8x32xf32>
    %51 = vector.shape_cast %50 : vector<1x8x32xf32> to vector<8x32xf32>
    %52 = vector.shape_cast %49 : vector<8x32xf32> to vector<1x8x32xf32>
    tpu.vector_store %arg11[%c0_23, %c0_24, %c0_25], %52 {strides = array<i32>} : memref<1x8x32xf32, #tpu.memory_space<vmem>>, vector<1x8x32xf32>,
    %53 = vector.shape_cast %17 : vector<16x128xf32> to vector<16x8x16xf32>
    %54 = tpu.transpose %53, [1, 0, 2] : vector<16x8x16xf32> -> vector<8x16x16xf32>
    %55 = arith.truncf %54 : vector<8x16x16xf32> to vector<8x16x16xbf16>
    %56 = vector.shape_cast %15 : vector<8x128xf32> to vector<8x8x16xf32>
    %57 = tpu.transpose %56, [1, 0, 2] : vector<8x8x16xf32> -> vector<8x8x16xf32>
    %58 = arith.truncf %57 : vector<8x8x16xf32> to vector<8x8x16xbf16>
    %59 = vector.shape_cast %16 : vector<8x128xf32> to vector<8x8x16xf32>
    %60 = tpu.transpose %59, [1, 0, 2] : vector<8x8x16xf32> -> vector<8x8x16xf32>
    %61 = arith.truncf %60 : vector<8x8x16xf32> to vector<8x8x16xbf16>
    "tpu.trace_start"() <{level = 10 : i32, message = "hqd,hkd->hqk"}> : () -> ()
    %cst_26 = arith.constant dense<0.000000e+00> : vector<8x16x8xf32>
    %62 = tpu.matmul %55, %58, %cst_26 {dimension_numbers = #tpu.dot_dimension_numbers<[2], [2], [1], [1], [0, 0, 0, 1, 1, 1], [0], [0]>} : vector<8x16x16xbf16>, vector<8x8x16xbf16>, vector<8x16x8xf32> -> vector<8x16x8xf32>
    "tpu.trace_stop"() : () -> ()
    %cst_27 = arith.constant dense<0xFF800000> : vector<8x16xf32>
    %63 = vector.multi_reduction <maximumf>, %62, %cst_27 [2] : vector<8x16x8xf32> to vector<8x16xf32>
    %64 = vector.shape_cast %63 : vector<8x16xf32> to vector<8x16x1xf32>
    %65 = vector.broadcast %64 : vector<8x16x1xf32> to vector<8x16x8xf32>
    %66 = arith.subf %62, %65 : vector<8x16x8xf32>
    %67 = math.exp %66 : vector<8x16x8xf32>
    %cst_28 = arith.constant dense<0.000000e+00> : vector<8x16xf32>
    %68 = vector.multi_reduction <add>, %67, %cst_28 [2] : vector<8x16x8xf32> to vector<8x16xf32>
    %69 = vector.shape_cast %68 : vector<8x16xf32> to vector<8x16x1xf32>
    %70 = tpu.reciprocal %69 {approx = true} : vector<8x16x1xf32> -> vector<8x16x1xf32>
    %71 = vector.broadcast %70 : vector<8x16x1xf32> to vector<8x16x8xf32>
    %72 = arith.mulf %67, %71 : vector<8x16x8xf32>
    %73 = arith.truncf %72 : vector<8x16x8xf32> to vector<8x16x8xbf16>
    "tpu.trace_start"() <{level = 10 : i32, message = "hqk,hkd->hqd"}> : () -> ()
    %cst_29 = arith.constant dense<0.000000e+00> : vector<8x16x16xf32>
    %74 = tpu.matmul %73, %61, %cst_29 {dimension_numbers = #tpu.dot_dimension_numbers<[2], [1], [1], [2], [0, 0, 0, 1, 1, 2], [0], [0]>} : vector<8x16x8xbf16>, vector<8x8x16xbf16>, vector<8x16x16xf32> -> vector<8x16x16xf32>
    "tpu.trace_stop"() : () -> ()
    %75 = tpu.transpose %74, [1, 0, 2] : vector<8x16x16xf32> -> vector<16x8x16xf32>
    %76 = vector.shape_cast %75 : vector<16x8x16xf32> to vector<16x128xf32>
    %77 = arith.truncf %76 : vector<16x128xf32> to vector<16x128xbf16>
    %c0_30 = arith.constant 0 : index
    %c0_31 = arith.constant 0 : index
    %78 = vector.load %arg9[%c0_30, %c0_31] : memref<128x32xbf16, #tpu.memory_space<vmem>>, vector<128x32xbf16>
    %cst_32 = arith.constant dense<0.000000e+00> : vector<16x32xf32>
    %79 = tpu.matmul %77, %78, %cst_32 {dimension_numbers = #tpu.dot_dimension_numbers<[1], [0], [0], [1], [0, 0, 1, 1], [], []>} : vector<16x128xbf16>, vector<128x32xbf16>, vector<16x32xf32> -> vector<16x32xf32>
    %c0_33 = arith.constant 0 : index
    %c0_34 = arith.constant 0 : index
    %80 = vector.load %arg10[%c0_33, %c0_34] : memref<1x32xf32, #tpu.memory_space<vmem>>, vector<1x32xf32>
    %81 = vector.broadcast %80 : vector<1x32xf32> to vector<16x32xf32>
    %82 = arith.addf %79, %81 : vector<16x32xf32>
    %c0_35 = arith.constant 0 : index
    %c0_36 = arith.constant 0 : index
    %c0_37 = arith.constant 0 : index
    %83 = vector.load %arg12[%c0_35, %c0_36, %c0_37] : memref<1x16x32xf32, #tpu.memory_space<vmem>>, vector<1x16x32xf32>
    %84 = vector.shape_cast %83 : vector<1x16x32xf32> to vector<16x32xf32>
    %85 = vector.shape_cast %82 : vector<16x32xf32> to vector<1x16x32xf32>
    tpu.vector_store %arg12[%c0_35, %c0_36, %c0_37], %85 {strides = array<i32>} : memref<1x16x32xf32, #tpu.memory_space<vmem>>, vector<1x16x32xf32>,
    return
  }
  func.func @transform_0(%arg0: i32) -> (i32, i32, i32) {
    %c0_i32 = arith.constant 0 : i32
    %c0_i32_0 = arith.constant 0 : i32
    %c0_i32_1 = arith.constant 0 : i32
    return %arg0, %c0_i32, %c0_i32_0 : i32, i32, i32
  }
  func.func @transform_1(%arg0: i32) -> (i32, i32, i32) {
    %c0_i32 = arith.constant 0 : i32
    %c0_i32_0 = arith.constant 0 : i32
    %c0_i32_1 = arith.constant 0 : i32
    return %arg0, %c0_i32, %c0_i32_0 : i32, i32, i32
  }
  func.func @transform_2(%arg0: i32) -> (i32, i32) {
    %c0_i32 = arith.constant 0 : i32
    %c0_i32_0 = arith.constant 0 : i32
    %c0_i32_1 = arith.constant 0 : i32
    return %c0_i32, %c0_i32_0 : i32, i32
  }
  func.func @transform_3(%arg0: i32) -> (i32, i32) {
    %c0_i32 = arith.constant 0 : i32
    %c0_i32_0 = arith.constant 0 : i32
    %c0_i32_1 = arith.constant 0 : i32
    return %c0_i32, %c0_i32_0 : i32, i32
  }
  func.func @transform_4(%arg0: i32) -> (i32, i32) {
    %c0_i32 = arith.constant 0 : i32
    %c0_i32_0 = arith.constant 0 : i32
    %c0_i32_1 = arith.constant 0 : i32
    return %c0_i32, %c0_i32_0 : i32, i32
  }
  func.func @transform_5(%arg0: i32) -> (i32, i32) {
    %c0_i32 = arith.constant 0 : i32
    %c0_i32_0 = arith.constant 0 : i32
    %c0_i32_1 = arith.constant 0 : i32
    return %c0_i32, %c0_i32_0 : i32, i32
  }
  func.func @transform_6(%arg0: i32) -> (i32, i32) {
    %c0_i32 = arith.constant 0 : i32
    %c0_i32_0 = arith.constant 0 : i32
    %c0_i32_1 = arith.constant 0 : i32
    return %c0_i32, %c0_i32_0 : i32, i32
  }
  func.func @transform_7(%arg0: i32) -> (i32, i32) {
    %c0_i32 = arith.constant 0 : i32
    %c0_i32_0 = arith.constant 0 : i32
    %c0_i32_1 = arith.constant 0 : i32
    return %c0_i32, %c0_i32_0 : i32, i32
  }
  func.func @transform_8(%arg0: i32) -> (i32, i32) {
    %c0_i32 = arith.constant 0 : i32
    %c0_i32_0 = arith.constant 0 : i32
    %c0_i32_1 = arith.constant 0 : i32
    return %c0_i32, %c0_i32_0 : i32, i32
  }
  func.func @transform_9(%arg0: i32) -> (i32, i32) {
    %c0_i32 = arith.constant 0 : i32
    %c0_i32_0 = arith.constant 0 : i32
    %c0_i32_1 = arith.constant 0 : i32
    return %c0_i32, %c0_i32_0 : i32, i32
  }
  func.func @transform_10(%arg0: i32) -> (i32, i32, i32) {
    %c0_i32 = arith.constant 0 : i32
    %c0_i32_0 = arith.constant 0 : i32
    %c0_i32_1 = arith.constant 0 : i32
    return %arg0, %c0_i32, %c0_i32_0 : i32, i32, i32
  }
  func.func @transform_11(%arg0: i32) -> (i32, i32, i32) {
    %c0_i32 = arith.constant 0 : i32
    %c0_i32_0 = arith.constant 0 : i32
    %c0_i32_1 = arith.constant 0 : i32
    return %arg0, %c0_i32, %c0_i32_0 : i32, i32, i32
  }
}

</mosaic_0001>

<llo_original>
// kernel: co_attention_forward.1
$region0: #{co_attention_forward.1}
  #allocation0 [shape = 'u32[]', space=smem, size = 0x4, offset = 0x4, fixed_abs, tag = 'smem constant byte address 0x4 - core index']
  #allocation1 [shape = 'u32[144,128]{1,0:T(1,128)}', space=vmem, size = 0x12000, scoped, tag = 'internal scratch']
  %s0 = inlined_call_operand.vmem [shape: bf16[2,8,12], index: 0, kind: input, shape index: {}]
  %s1 = inlined_call_operand.vmem [shape: bf16[2,16,20], index: 1, kind: input, shape index: {}]
  %s2 = inlined_call_operand.vmem [shape: bf16[12,384], index: 2, kind: input, shape index: {}]
  %s3 = inlined_call_operand.vmem [shape: f32[1,384], index: 3, kind: input, shape index: {}]
  %s4 = inlined_call_operand.vmem [shape: bf16[20,384], index: 4, kind: input, shape index: {}]
  %s5 = inlined_call_operand.vmem [shape: f32[1,384], index: 5, kind: input, shape index: {}]
  %s6 = inlined_call_operand.vmem [shape: bf16[128,32], index: 6, kind: input, shape index: {}]
  %s7 = inlined_call_operand.vmem [shape: f32[1,32], index: 7, kind: input, shape index: {}]
  %s8 = inlined_call_operand.vmem [shape: bf16[128,32], index: 8, kind: input, shape index: {}]
  %s9 = inlined_call_operand.vmem [shape: f32[1,32], index: 9, kind: input, shape index: {}]
  %s10 = inlined_call_operand.hbm [shape: f32[2,8,32], index: 10, kind: output, shape index: {0}]
  %s11 = inlined_call_operand.hbm [shape: f32[2,16,32], index: 11, kind: output, shape index: {1}]
  %12 = xla_tuple %s10, %s11
  %s13 = sld [smem:[#allocation0]]
  $region81: #{co_attention_forward.1} parent=0
    _
  %s15 = ssub.s32 1, %s13
  %s16 = scalar_select 0, %s15, %s13
  $region1: #{co_attention_forward.1} parent=0
    #allocation2 [shape = 'u8[8192]{0}', space=vmem, size = 0x2000, scoped, tag = 'output window, operand 0']
    #allocation3 [shape = 's32[2]{0}', space=sflag, size = 0x8, scoped, tag = 'scoped memory for co_attention_forward.1']
    #allocation4 [shape = 'u8[16384]{0}', space=vmem, size = 0x4000, scoped, tag = 'output window, operand 1']
    #allocation5 [shape = 's32[2]{0}', space=sflag, size = 0x8, scoped, tag = 'scoped memory for co_attention_forward.1']
    %17 = vsyncpa [#allocation3], 0
    %s18 = scalar_lea.sflag [#allocation3], 1
    %19 = vsyncpa %s18, 0
    %20 = vsyncpa [#allocation5], 0
    %s21 = scalar_lea.sflag [#allocation5], 1
    %22 = vsyncpa %s21, 0
    loop: start=0, step=1, limit=4
    $region2: #{co_attention_forward.1} parent=1 // loop_pre_header
      _
    $region3: #{co_attention_forward.1} parent=1 // loop_header
      %s24 = sphi 0, %s28
      %p25 = scmp.ge.s32.totalorder %s24, 4
      %s34 = sphi 0, %s36
      %s37 = sphi 0, %s34
      %s38 = sphi 0, %s37
      %s54 = sphi 0, %s38
      %s60 = sphi 0, %s62
      %s63 = sphi 0, %s60
      %s64 = sphi 0, %s63
      %s80 = sphi 0, %s64
      %s84 = sphi 0, %s84
      %s86 = sphi 0, %s84
      %s87 = sphi 0, %s86
      %s101 = sphi 0, %s87
      %s105 = sphi 0, %s105
      %s107 = sphi 0, %s105
      %s108 = sphi 0, %s107
      %s122 = sphi 0, %s108
      %s126 = sphi 0, %s126
      %s128 = sphi 0, %s126
      %s129 = sphi 0, %s128
      %s143 = sphi 0, %s129
      %s147 = sphi 0, %s147
      %s149 = sphi 0, %s147
      %s150 = sphi 0, %s149
      %s164 = sphi 0, %s150
      %s168 = sphi 0, %s168
      %s170 = sphi 0, %s168
      %s171 = sphi 0, %s170
      %s185 = sphi 0, %s171
      %s189 = sphi 0, %s189
      %s191 = sphi 0, %s189
      %s192 = sphi 0, %s191
      %s206 = sphi 0, %s192
      %s210 = sphi 0, %s210
      %s212 = sphi 0, %s210
      %s213 = sphi 0, %s212
      %s227 = sphi 0, %s213
      %s231 = sphi 0, %s231
      %s233 = sphi 0, %s231
      %s234 = sphi 0, %s233
      %s248 = sphi 0, %s234
      %s254 = sphi 0, %s256
      %s257 = sphi 0, %s254
      %s258 = sphi 0, %s257
      %s274 = sphi 0, %s258
      %s280 = sphi 0, %s282
      %s283 = sphi 0, %s280
      %s284 = sphi 0, %s283
      %s300 = sphi 0, %s284
    $region4: #{co_attention_forward.1} parent=1 // loop_header_branch
      %27 = sbr.rel (%p25) target = $region8
    $region5: #{co_attention_forward.1} parent=1 // loop_body
      %s29 = ssub.s32 %s24, 1
      %s30 = ssub.s32 %s24, 2
      %s31 = sadd.s32 %s24, 1
      %s32 = ssub.s32 %s24, %s31
      %p33 = scmp.eq.s32.totalorder %s32, 0
      %s35 = sadd.s32 %s34, 1
      %s36 = scalar_select %p33, %s34, %s35
      %p39 = pneg %p33
      %p40 = scmp.eq.s32.totalorder %s24, 1
      %p41 = por %p39, %p40
      %p42 = scmp.ne.s32.totalorder %s34, %s37
      %p43 = scmp.eq.s32.totalorder %s24, 0
      %p44 = por %p42, %p43
      %p45 = scmp.ne.s32.totalorder %s34, %s37
      %p46 = scmp.eq.s32.totalorder %s29, 1
      %p47 = por %p45, %p46
      %p48 = scmp.ne.s32.totalorder %s37, %s38
      %p49 = scmp.eq.s32.totalorder %s29, 0
      %p50 = por %p48, %p49
      %p51 = scmp.ne.s32.totalorder %s37, %s38
      %p52 = scmp.eq.s32.totalorder %s30, 1
      %p53 = por %p51, %p52
      %p55 = scmp.ne.s32.totalorder %s38, %s54
      %p56 = scmp.eq.s32.totalorder %s30, 0
      %p57 = por %p55, %p56
      %s58 = ssub.s32 %s24, %s31
      %p59 = scmp.eq.s32.totalorder %s58, 0
      %s61 = sadd.s32 %s60, 1
      %s62 = scalar_select %p59, %s60, %s61
      %p65 = pneg %p59
      %p66 = scmp.eq.s32.totalorder %s24, 1
      %p67 = por %p65, %p66
      %p68 = scmp.ne.s32.totalorder %s60, %s63
      %p69 = scmp.eq.s32.totalorder %s24, 0
      %p70 = por %p68, %p69
      %p71 = scmp.ne.s32.totalorder %s60, %s63
      %p72 = scmp.eq.s32.totalorder %s29, 1
      %p73 = por %p71, %p72
      %p74 = scmp.ne.s32.totalorder %s63, %s64
      %p75 = scmp.eq.s32.totalorder %s29, 0
      %p76 = por %p74, %p75
      %p77 = scmp.ne.s32.totalorder %s63, %s64
      %p78 = scmp.eq.s32.totalorder %s30, 1
      %p79 = por %p77, %p78
      %p81 = scmp.ne.s32.totalorder %s64, %s80
      %p82 = scmp.eq.s32.totalorder %s30, 0
      %p83 = por %p81, %p82
      %s85 = sadd.s32 %s84, 1
      %p88 = scmp.eq.s32.totalorder %s24, 1
      %p89 = scmp.ne.s32.totalorder %s84, %s86
      %p90 = scmp.eq.s32.totalorder %s24, 0
      %p91 = por %p89, %p90
      %p92 = scmp.ne.s32.totalorder %s84, %s86
      %p93 = scmp.eq.s32.totalorder %s29, 1
      %p94 = por %p92, %p93
      %p95 = scmp.ne.s32.totalorder %s86, %s87
      %p96 = scmp.eq.s32.totalorder %s29, 0
      %p97 = por %p95, %p96
      %p98 = scmp.ne.s32.totalorder %s86, %s87
      %p99 = scmp.eq.s32.totalorder %s30, 1
      %p100 = por %p98, %p99
      %p102 = scmp.ne.s32.totalorder %s87, %s101
      %p103 = scmp.eq.s32.totalorder %s30, 0
      %p104 = por %p102, %p103
      %s106 = sadd.s32 %s105, 1
      %p109 = scmp.eq.s32.totalorder %s24, 1
      %p110 = scmp.ne.s32.totalorder %s105, %s107
      %p111 = scmp.eq.s32.totalorder %s24, 0
      %p112 = por %p110, %p111
      %p113 = scmp.ne.s32.totalorder %s105, %s107
      %p114 = scmp.eq.s32.totalorder %s29, 1
      %p115 = por %p113, %p114
      %p116 = scmp.ne.s32.totalorder %s107, %s108
      %p117 = scmp.eq.s32.totalorder %s29, 0
      %p118 = por %p116, %p117
      %p119 = scmp.ne.s32.totalorder %s107, %s108
      %p120 = scmp.eq.s32.totalorder %s30, 1
      %p121 = por %p119, %p120
      %p123 = scmp.ne.s32.totalorder %s108, %s122
      %p124 = scmp.eq.s32.totalorder %s30, 0
      %p125 = por %p123, %p124
      %s127 = sadd.s32 %s126, 1
      %p130 = scmp.eq.s32.totalorder %s24, 1
      %p131 = scmp.ne.s32.totalorder %s126, %s128
      %p132 = scmp.eq.s32.totalorder %s24, 0
      %p133 = por %p131, %p132
      %p134 = scmp.ne.s32.totalorder %s126, %s128
      %p135 = scmp.eq.s32.totalorder %s29, 1
      %p136 = por %p134, %p135
      %p137 = scmp.ne.s32.totalorder %s128, %s129
      %p138 = scmp.eq.s32.totalorder %s29, 0
      %p139 = por %p137, %p138
      %p140 = scmp.ne.s32.totalorder %s128, %s129
      %p141 = scmp.eq.s32.totalorder %s30, 1
      %p142 = por %p140, %p141
      %p144 = scmp.ne.s32.totalorder %s129, %s143
      %p145 = scmp.eq.s32.totalorder %s30, 0
      %p146 = por %p144, %p145
      %s148 = sadd.s32 %s147, 1
      %p151 = scmp.eq.s32.totalorder %s24, 1
      %p152 = scmp.ne.s32.totalorder %s147, %s149
      %p153 = scmp.eq.s32.totalorder %s24, 0
      %p154 = por %p152, %p153
      %p155 = scmp.ne.s32.totalorder %s147, %s149
      %p156 = scmp.eq.s32.totalorder %s29, 1
      %p157 = por %p155, %p156
      %p158 = scmp.ne.s32.totalorder %s149, %s150
      %p159 = scmp.eq.s32.totalorder %s29, 0
      %p160 = por %p158, %p159
      %p161 = scmp.ne.s32.totalorder %s149, %s150
      %p162 = scmp.eq.s32.totalorder %s30, 1
      %p163 = por %p161, %p162
      %p165 = scmp.ne.s32.totalorder %s150, %s164
      %p166 = scmp.eq.s32.totalorder %s30, 0
      %p167 = por %p165, %p166
      %s169 = sadd.s32 %s168, 1
      %p172 = scmp.eq.s32.totalorder %s24, 1
      %p173 = scmp.ne.s32.totalorder %s168, %s170
      %p174 = scmp.eq.s32.totalorder %s24, 0
      %p175 = por %p173, %p174
      %p176 = scmp.ne.s32.totalorder %s168, %s170
      %p177 = scmp.eq.s32.totalorder %s29, 1
      %p178 = por %p176, %p177
      %p179 = scmp.ne.s32.totalorder %s170, %s171
      %p180 = scmp.eq.s32.totalorder %s29, 0
      %p181 = por %p179, %p180
      %p182 = scmp.ne.s32.totalorder %s170, %s171
      %p183 = scmp.eq.s32.totalorder %s30, 1
      %p184 = por %p182, %p183
      %p186 = scmp.ne.s32.totalorder %s171, %s185
      %p187 = scmp.eq.s32.totalorder %s30, 0
      %p188 = por %p186, %p187
      %s190 = sadd.s32 %s189, 1
      %p193 = scmp.eq.s32.totalorder %s24, 1
      %p194 = scmp.ne.s32.totalorder %s189, %s191
      %p195 = scmp.eq.s32.totalorder %s24, 0
      %p196 = por %p194, %p195
      %p197 = scmp.ne.s32.totalorder %s189, %s191
      %p198 = scmp.eq.s32.totalorder %s29, 1
      %p199 = por %p197, %p198
      %p200 = scmp.ne.s32.totalorder %s191, %s192
      %p201 = scmp.eq.s32.totalorder %s29, 0
      %p202 = por %p200, %p201
      %p203 = scmp.ne.s32.totalorder %s191, %s192
      %p204 = scmp.eq.s32.totalorder %s30, 1
      %p205 = por %p203, %p204
      %p207 = scmp.ne.s32.totalorder %s192, %s206
      %p208 = scmp.eq.s32.totalorder %s30, 0
      %p209 = por %p207, %p208
      %s211 = sadd.s32 %s210, 1
      %p214 = scmp.eq.s32.totalorder %s24, 1
      %p215 = scmp.ne.s32.totalorder %s210, %s212
      %p216 = scmp.eq.s32.totalorder %s24, 0
      %p217 = por %p215, %p216
      %p218 = scmp.ne.s32.totalorder %s210, %s212
      %p219 = scmp.eq.s32.totalorder %s29, 1
      %p220 = por %p218, %p219
      %p221 = scmp.ne.s32.totalorder %s212, %s213
      %p222 = scmp.eq.s32.totalorder %s29, 0
      %p223 = por %p221, %p222
      %p224 = scmp.ne.s32.totalorder %s212, %s213
      %p225 = scmp.eq.s32.totalorder %s30, 1
      %p226 = por %p224, %p225
      %p228 = scmp.ne.s32.totalorder %s213, %s227
      %p229 = scmp.eq.s32.totalorder %s30, 0
      %p230 = por %p228, %p229
      %s232 = sadd.s32 %s231, 1
      %p235 = scmp.eq.s32.totalorder %s24, 1
      %p236 = scmp.ne.s32.totalorder %s231, %s233
      %p237 = scmp.eq.s32.totalorder %s24, 0
      %p238 = por %p236, %p237
      %p239 = scmp.ne.s32.totalorder %s231, %s233
      %p240 = scmp.eq.s32.totalorder %s29, 1
      %p241 = por %p239, %p240
      %p242 = scmp.ne.s32.totalorder %s233, %s234
      %p243 = scmp.eq.s32.totalorder %s29, 0
      %p244 = por %p242, %p243
      %p245 = scmp.ne.s32.totalorder %s233, %s234
      %p246 = scmp.eq.s32.totalorder %s30, 1
      %p247 = por %p245, %p246
      %p249 = scmp.ne.s32.totalorder %s234, %s248
      %p250 = scmp.eq.s32.totalorder %s30, 0
      %p251 = por %p249, %p250
      %s252 = ssub.s32 %s24, %s31
      %p253 = scmp.eq.s32.totalorder %s252, 0
      %s255 = sadd.s32 %s254, 1
      %s256 = scalar_select %p253, %s254, %s255
      %p259 = pneg %p253
      %p260 = scmp.eq.s32.totalorder %s24, 1
      %p261 = por %p259, %p260
      %p262 = scmp.ne.s32.totalorder %s254, %s257
      %p263 = scmp.eq.s32.totalorder %s24, 0
      %p264 = por %p262, %p263
      %p265 = scmp.ne.s32.totalorder %s254, %s257
      %p266 = scmp.eq.s32.totalorder %s29, 1
      %p267 = por %p265, %p266
      %p268 = scmp.ne.s32.totalorder %s257, %s258
      %p269 = scmp.eq.s32.totalorder %s29, 0
      %p270 = por %p268, %p269
      %p271 = scmp.ne.s32.totalorder %s257, %s258
      %p272 = scmp.eq.s32.totalorder %s30, 1
      %p273 = por %p271, %p272
      %p275 = scmp.ne.s32.totalorder %s258, %s274
      %p276 = scmp.eq.s32.totalorder %s30, 0
      %p277 = por %p275, %p276
      %s278 = ssub.s32 %s24, %s31
      %p279 = scmp.eq.s32.totalorder %s278, 0
      %s281 = sadd.s32 %s280, 1
      %s282 = scalar_select %p279, %s280, %s281
      %p285 = pneg %p279
      %p286 = scmp.eq.s32.totalorder %s24, 1
      %p287 = por %p285, %p286
      %p288 = scmp.ne.s32.totalorder %s280, %s283
      %p289 = scmp.eq.s32.totalorder %s24, 0
      %p290 = por %p288, %p289
      %p291 = scmp.ne.s32.totalorder %s280, %s283
      %p292 = scmp.eq.s32.totalorder %s29, 1
      %p293 = por %p291, %p292
      %p294 = scmp.ne.s32.totalorder %s283, %s284
      %p295 = scmp.eq.s32.totalorder %s29, 0
      %p296 = por %p294, %p295
      %p297 = scmp.ne.s32.totalorder %s283, %s284
      %p298 = scmp.eq.s32.totalorder %s30, 1
      %p299 = por %p297, %p298
      %p301 = scmp.ne.s32.totalorder %s284, %s300
      %p302 = scmp.eq.s32.totalorder %s30, 0
      %p303 = por %p301, %p302
      %p304 = scmp.le.s32.totalorder 1, %s24
      %p305 = scmp.lt.s32.totalorder %s24, 3
      %p306 = pnand %p304, %p305
      %p307 = pneg %p306
      // Predicated region
      $region9: #{co_attention_forward.1} parent=5 // pred_check
        _
      $region10: #{co_attention_forward.1} parent=5 // pred_check_branch
        %309 = sbr.rel (%p306) target = $region12
      $region11: #{co_attention_forward.1} parent=5 // pred_region
        %s310 = ssub.s32 %s24, 1
        // Predicated region
        $region13: #{co_attention_forward.1} parent=11 // pred_check
          %p311 = pneg %p97
        $region14: #{co_attention_forward.1} parent=11 // pred_check_branch
          %313 = sbr.rel (%p311) target = $region16
        $region15: #{co_attention_forward.1} parent=11 // pred_region
          _
        $region16: #{co_attention_forward.1} parent=11 // pred_fallthru
          _
        // Predicated region
        $region17: #{co_attention_forward.1} parent=11 // pred_check
          %p314 = pneg %p118
        $region18: #{co_attention_forward.1} parent=11 // pred_check_branch
          %316 = sbr.rel (%p314) target = $region20
        $region19: #{co_attention_forward.1} parent=11 // pred_region
          _
        $region20: #{co_attention_forward.1} parent=11 // pred_fallthru
          _
        // Predicated region
        $region21: #{co_attention_forward.1} parent=11 // pred_check
          %p317 = pneg %p139
        $region22: #{co_attention_forward.1} parent=11 // pred_check_branch
          %319 = sbr.rel (%p317) target = $region24
        $region23: #{co_attention_forward.1} parent=11 // pred_region
          _
        $region24: #{co_attention_forward.1} parent=11 // pred_fallthru
          _
        // Predicated region
        $region25: #{co_attention_forward.1} parent=11 // pred_check
          %p320 = pneg %p160
        $region26: #{co_attention_forward.1} parent=11 // pred_check_branch
          %322 = sbr.rel (%p320) target = $region28
        $region27: #{co_attention_forward.1} parent=11 // pred_region
          _
        $region28: #{co_attention_forward.1} parent=11 // pred_fallthru
          _
        // Predicated region
        $region29: #{co_attention_forward.1} parent=11 // pred_check
          %p323 = pneg %p181
        $region30: #{co_attention_forward.1} parent=11 // pred_check_branch
          %325 = sbr.rel (%p323) target = $region32
        $region31: #{co_attention_forward.1} parent=11 // pred_region
          _
        $region32: #{co_attention_forward.1} parent=11 // pred_fallthru
          _
        // Predicated region
        $region33: #{co_attention_forward.1} parent=11 // pred_check
          %p326 = pneg %p202
        $region34: #{co_attention_forward.1} parent=11 // pred_check_branch
          %328 = sbr.rel (%p326) target = $region36
        $region35: #{co_attention_forward.1} parent=11 // pred_region
          _
        $region36: #{co_attention_forward.1} parent=11 // pred_fallthru
          _
        // Predicated region
        $region37: #{co_attention_forward.1} parent=11 // pred_check
          %p329 = pneg %p223
        $region38: #{co_attention_forward.1} parent=11 // pred_check_branch
          %331 = sbr.rel (%p329) target = $region40
        $region39: #{co_attention_forward.1} parent=11 // pred_region
          _
        $region40: #{co_attention_forward.1} parent=11 // pred_fallthru
          _
        // Predicated region
        $region41: #{co_attention_forward.1} parent=11 // pred_check
          %p332 = pneg %p244
        $region42: #{co_attention_forward.1} parent=11 // pred_check_branch
          %334 = sbr.rel (%p332) target = $region44
        $region43: #{co_attention_forward.1} parent=11 // pred_region
          _
        $region44: #{co_attention_forward.1} parent=11 // pred_fallthru
          _
      $region12: #{co_attention_forward.1} parent=5 // pred_fallthru
        _
      %p335 = scmp.lt.s32.totalorder %s24, 2
      // Predicated region
      $region45: #{co_attention_forward.1} parent=5 // pred_check
        %p336 = pneg %p335
      $region46: #{co_attention_forward.1} parent=5 // pred_check_branch
        %338 = sbr.rel (%p336) target = $region48
      $region47: #{co_attention_forward.1} parent=5 // pred_region
        // Predicated region
        $region49: #{co_attention_forward.1} parent=47 // pred_check
          %p339 = pneg %p44
        $region50: #{co_attention_forward.1} parent=47 // pred_check_branch
          %341 = sbr.rel (%p339) target = $region52
        $region51: #{co_attention_forward.1} parent=47 // pred_region
          %p342 = scmp.lt.s32.totalorder %s24, 1
          %s343 = scalar_select %p342, %s24, 1
          %s344 = smul.addr %s343, 4
          %s345 = scalar_lea.vmem %s0, %s344
        $region52: #{co_attention_forward.1} parent=47 // pred_fallthru
          _
        // Predicated region
        $region53: #{co_attention_forward.1} parent=47 // pred_check
          %p346 = pneg %p70
        $region54: #{co_attention_forward.1} parent=47 // pred_check_branch
          %348 = sbr.rel (%p346) target = $region56
        $region55: #{co_attention_forward.1} parent=47 // pred_region
          %p349 = scmp.lt.s32.totalorder %s24, 1
          %s350 = scalar_select %p349, %s24, 1
          %s351 = smul.addr %s350, 2
          %s352 = smul.addr %s351, 4
          %s353 = scalar_lea.vmem %s1, %s352
        $region56: #{co_attention_forward.1} parent=47 // pred_fallthru
          _
      $region48: #{co_attention_forward.1} parent=5 // pred_fallthru
        _
      %p354 = scmp.le.s32.totalorder 1, %s24
      %p355 = scmp.lt.s32.totalorder %s24, 3
      %p356 = pnand %p354, %p355
      %p357 = pneg %p356
      // Predicated region
      $region57: #{co_attention_forward.1} parent=5 // pred_check
        _
      $region58: #{co_attention_forward.1} parent=5 // pred_check_branch
        %359 = sbr.rel (%p356) target = $region60
      $region59: #{co_attention_forward.1} parent=5 // pred_region
        %s360 = ssub.s32 %s24, 1
        %p361 = scmp.lt.s32.totalorder %s29, 1
        %s362 = scalar_select %p361, %s29, 1
        %s363 = smul.addr %s362, 4
        %s364 = scalar_lea.vmem %s0, %s363
        %p365 = pneg %p50
        %p366 = pneg %p47
        %p367 = scmp.lt.s32.totalorder %s29, 1
        %s368 = scalar_select %p367, %s29, 1
        %s369 = smul.addr %s368, 2
        %s370 = smul.addr %s369, 4
        %s371 = scalar_lea.vmem %s1, %s370
        %p372 = pneg %p76
        %p373 = pneg %p73
        %p374 = pneg %p97
        %p375 = pneg %p94
        %p376 = pneg %p118
        %p377 = pneg %p115
        %p378 = pneg %p139
        %p379 = pneg %p136
        %p380 = pneg %p160
        %p381 = pneg %p157
        %p382 = pneg %p181
        %p383 = pneg %p178
        %p384 = pneg %p202
        %p385 = pneg %p199
        %p386 = pneg %p223
        %p387 = pneg %p220
        %p388 = pneg %p244
        %p389 = pneg %p241
        %p390 = pneg %p270
        %p391 = pneg %p267
        %s392 = sand.u32 %s257, 1
        %s393 = scalar_lea.sflag [#allocation3], %s392
        %s394 = sand.u32 %s257, 1
        %s395 = smul.addr %s394, 8
        %s396 = scalar_lea.vmem [#allocation2], %s395
        %p397 = pneg %p296
        %p398 = pneg %p293
        %s399 = sand.u32 %s283, 1
        %s400 = scalar_lea.sflag [#allocation5], %s399
        %s401 = sand.u32 %s283, 1
        %s402 = smul.addr %s401, 16
        %s403 = scalar_lea.vmem [#allocation4], %s402
        %p404 = scmp.lt.s32.totalorder %s29, 1
        %s405 = scalar_select %p404, %s29, 1
        %s406 = smul.addr %s405, 4
        %s407 = scalar_lea.vmem %s0, %s406
        %p408 = scmp.lt.s32.totalorder %s29, 1
        %s409 = scalar_select %p408, %s29, 1
        %s410 = smul.addr %s409, 2
        %s411 = smul.addr %s410, 4
        %s412 = scalar_lea.vmem %s1, %s411
        %v414 = vld [vmem:[%s407] sm:$0xf]
        %v415 = vld [vmem:[%s412] sm:$0xf]
        %v416 = vld [vmem:[%s412 + $0x4] sm:$0xf]
        %v417 = vld [vmem:[%s2] sm:$0xff]
        %v418 = vld [vmem:[%s2 + $0x8] sm:$0xf]
        %v419 = vld [vmem:[%s2 + $0xc] sm:$0x33]
        %v420 = vld [vmem:[%s2 + $0x14] sm:$0x3]
        %v421 = vld [vmem:[%s3] sm:$0x7]
        %v423 = vlaneseq
        %v424 = vshrl.u32 %v423, 7
        %v425 = vsub.s32 0, %v424
        %v426 = vrot.slane %v421, %v425
        %v427 = vlaneseq
        %v428 = vshrl.u32 %v427, 7
        %v429 = vsub.s32 1, %v428
        %v430 = vrot.slane %v421, %v429
        %v431 = vlaneseq
        %v432 = vshrl.u32 %v431, 7
        %v433 = vsub.s32 2, %v432
        %v434 = vrot.slane %v421, %v433
        %v442 = vunpack.c.l.b16 %v417
        %v443 = vunpack.c.h.b16 %v417
        %v444 = vunpack.c.l.b16 %v418
        %v445 = vunpack.c.l.b16 %v419
        %v446 = vunpack.c.h.b16 %v419
        %v447 = vunpack.c.l.b16 %v420
        %v448 = vpack.c.b16 %v445, %v442
        %v449 = vpack.c.b16 %v446, %v443
        %v450 = vpack.c.b16 %v447, %v444
        %vm451 = vcmask 97280
        %v453 = vsel %vm451, %v414, 0
        %vm455 = vcmask 1045504
        %v457 = vsel %vm455, %v448, 0
        %v460 = vsel %vm455, %v449, 0
        %v463 = vsel %vm455, %v450, 0
        %465 = vmatprep.subr.bf16.mxu0 %v460
        %466 = vmatpush1.bf16.msra.mxu0 %v457
        %467 = vmatprep.subr.bf16.mxu0 0
        %468 = vmatpush1.bf16.msra.mxu0 0
        %469 = vmatprep.subr.bf16.mxu0 0
        %470 = vmatpush1.bf16.msra.mxu0 0
        %471 = vmatprep.subr.bf16.mxu0 0
        %472 = vmatpush1.bf16.msra.mxu0 0
        %473 = vmatprep.subr.bf16.mxu0 0
        %474 = vmatpush1.bf16.msra.mxu0 0
        %475 = vmatprep.subr.bf16.mxu0 0
        %476 = vmatpush1.bf16.msra.mxu0 0
        %477 = vmatprep.subr.bf16.mxu0 0
        %478 = vmatpush1.bf16.msra.mxu0 0
        %479 = vmatprep.subr.bf16.mxu0 0
        %480 = vmatpush1.bf16.msra.mxu0 0
        %481 = vmatprep.subr.bf16.mxu0 0
        %482 = vmatpush1.bf16.msra.mxu0 0
        %483 = vmatprep.subr.bf16.mxu0 0
        %484 = vmatpush1.bf16.msra.mxu0 0
        %485 = vmatprep.subr.bf16.mxu0 0
        %486 = vmatpush1.bf16.msra.mxu0 0
        %487 = vmatprep.subr.bf16.mxu0 0
        %488 = vmatpush1.bf16.msra.mxu0 0
        %489 = vmatprep.subr.bf16.mxu0 0
        %490 = vmatpush1.bf16.msra.mxu0 0
        %491 = vmatprep.subr.bf16.mxu0 0
        %492 = vmatpush1.bf16.msra.mxu0 0
        %493 = vmatprep.subr.bf16.mxu0 0
        %494 = vmatpush1.bf16.msra.mxu0 0
        %495 = vmatprep.subr.bf16.mxu0 0
        %496 = vmatpush1.bf16.msra.mxu0 0
        %497 = vmatprep.mubr.bf16.mxu0 0
        %498 = vmatmul.mubr.bf16.gmra.mrb[0].mxu0 %v453
        %v499 = vpop.f32.mrb[0].mxu0
        %v500 = vadd.f32 %v426, %v499
        %v501 = vpop.f32.mrb[0].mxu0
        %v502 = vadd.f32 %v430, %v501
        %v503 = vpop.f32.mrb[0].mxu0
        %v504 = vpop.f32.mrb[0].mxu0
        %505 = vdwg.mxu0
        %506 = vmatprep.subr.bf16.mxu0 0
        %507 = vmatpush1.bf16.msra.mxu0 %v463
        %508 = vmatprep.subr.bf16.mxu0 0
        %509 = vmatpush1.bf16.msra.mxu0 0
        %510 = vmatprep.subr.bf16.mxu0 0
        %511 = vmatpush1.bf16.msra.mxu0 0
        %512 = vmatprep.subr.bf16.mxu0 0
        %513 = vmatpush1.bf16.msra.mxu0 0
        %514 = vmatprep.subr.bf16.mxu0 0
        %515 = vmatpush1.bf16.msra.mxu0 0
        %516 = vmatprep.subr.bf16.mxu0 0
        %517 = vmatpush1.bf16.msra.mxu0 0
        %518 = vmatprep.subr.bf16.mxu0 0
        %519 = vmatpush1.bf16.msra.mxu0 0
        %520 = vmatprep.subr.bf16.mxu0 0
        %521 = vmatpush1.bf16.msra.mxu0 0
        %522 = vmatprep.subr.bf16.mxu0 0
        %523 = vmatpush1.bf16.msra.mxu0 0
        %524 = vmatprep.subr.bf16.mxu0 0
        %525 = vmatpush1.bf16.msra.mxu0 0
        %526 = vmatprep.subr.bf16.mxu0 0
        %527 = vmatpush1.bf16.msra.mxu0 0
        %528 = vmatprep.subr.bf16.mxu0 0
        %529 = vmatpush1.bf16.msra.mxu0 0
        %530 = vmatprep.subr.bf16.mxu0 0
        %531 = vmatpush1.bf16.msra.mxu0 0
        %532 = vmatprep.subr.bf16.mxu0 0
        %533 = vmatpush1.bf16.msra.mxu0 0
        %534 = vmatprep.subr.bf16.mxu0 0
        %535 = vmatpush1.bf16.msra.mxu0 0
        %536 = vmatprep.subr.bf16.mxu0 0
        %537 = vmatpush1.bf16.msra.mxu0 0
        %538 = vmatprep.mubr.bf16.mxu0 0
        %539 = vmatmul.mubr.bf16.gmra.mrb[0].mxu0 %v453
        %v540 = vpop.f32.mrb[0].mxu0
        %v541 = vadd.f32 %v434, %v540
        %v542 = vpop.f32.mrb[0].mxu0
        %v543 = vpop.f32.mrb[0].mxu0
        %v544 = vpop.f32.mrb[0].mxu0
        %545 = vdwg.mxu0
        %v546 = vld [vmem:[%s4] sm:$0xff]
        %v547 = vld [vmem:[%s4 + $0x8] sm:$0xf]
        %v548 = vld [vmem:[%s4 + $0xc] sm:$0xff]
        %v549 = vld [vmem:[%s4 + $0x14] sm:$0xf]
        %v550 = vld [vmem:[%s4 + $0x18] sm:$0x33]
        %v551 = vld [vmem:[%s4 + $0x20] sm:$0x3]
        %v552 = vld [vmem:[%s5] sm:$0x7]
        %v554 = vlaneseq
        %v555 = vshrl.u32 %v554, 7
        %v556 = vsub.s32 0, %v555
        %v557 = vrot.slane %v552, %v556
        %v558 = vlaneseq
        %v559 = vshrl.u32 %v558, 7
        %v560 = vsub.s32 1, %v559
        %v561 = vrot.slane %v552, %v560
        %v562 = vlaneseq
        %v563 = vshrl.u32 %v562, 7
        %v564 = vsub.s32 2, %v563
        %v565 = vrot.slane %v552, %v564
        %v571 = vunpack.c.l.b16 %v415
        %v572 = vunpack.c.l.b16 %v416
        %v573 = vpack.c.b16 %v572, %v571
        %v580 = vunpack.c.l.b16 %v546
        %v581 = vunpack.c.h.b16 %v546
        %v582 = vunpack.c.l.b16 %v547
        %v583 = vunpack.c.l.b16 %v548
        %v584 = vunpack.c.h.b16 %v548
        %v585 = vunpack.c.l.b16 %v549
        %v586 = vunpack.c.l.b16 %v550
        %v587 = vunpack.c.h.b16 %v550
        %v588 = vunpack.c.l.b16 %v551
        %v589 = vpack.c.b16 %v583, %v580
        %v590 = vpack.c.b16 %v584, %v581
        %v591 = vpack.c.b16 %v585, %v582
        %v592 = vpack.c.b16 %v586, %v586
        %v593 = vpack.c.b16 %v587, %v587
        %v594 = vpack.c.b16 %v588, %v588
        %vm598 = vcmask 162816
        %v600 = vsel %vm598, %v573, 0
        %vm602 = vcmask 1041408
        %v604 = vsel %vm602, %v592, 0
        %v607 = vsel %vm602, %v593, 0
        %v610 = vsel %vm602, %v594, 0
        %612 = vmatprep.subr.bf16.mxu0 %v590
        %613 = vmatpush1.bf16.msra.mxu0 %v589
        %614 = vmatprep.subr.bf16.mxu0 %v607
        %615 = vmatpush1.bf16.msra.mxu0 %v604
        %616 = vmatprep.subr.bf16.mxu0 0
        %617 = vmatpush1.bf16.msra.mxu0 0
        %618 = vmatprep.subr.bf16.mxu0 0
        %619 = vmatpush1.bf16.msra.mxu0 0
        %620 = vmatprep.subr.bf16.mxu0 0
        %621 = vmatpush1.bf16.msra.mxu0 0
        %622 = vmatprep.subr.bf16.mxu0 0
        %623 = vmatpush1.bf16.msra.mxu0 0
        %624 = vmatprep.subr.bf16.mxu0 0
        %625 = vmatpush1.bf16.msra.mxu0 0
        %626 = vmatprep.subr.bf16.mxu0 0
        %627 = vmatpush1.bf16.msra.mxu0 0
        %628 = vmatprep.subr.bf16.mxu0 0
        %629 = vmatpush1.bf16.msra.mxu0 0
        %630 = vmatprep.subr.bf16.mxu0 0
        %631 = vmatpush1.bf16.msra.mxu0 0
        %632 = vmatprep.subr.bf16.mxu0 0
        %633 = vmatpush1.bf16.msra.mxu0 0
        %634 = vmatprep.subr.bf16.mxu0 0
        %635 = vmatpush1.bf16.msra.mxu0 0
        %636 = vmatprep.subr.bf16.mxu0 0
        %637 = vmatpush1.bf16.msra.mxu0 0
        %638 = vmatprep.subr.bf16.mxu0 0
        %639 = vmatpush1.bf16.msra.mxu0 0
        %640 = vmatprep.subr.bf16.mxu0 0
        %641 = vmatpush1.bf16.msra.mxu0 0
        %642 = vmatprep.subr.bf16.mxu0 0
        %643 = vmatpush1.bf16.msra.mxu0 0
        %644 = vmatprep.mubr.bf16.mxu0 0
        %645 = vmatmul.mubr.bf16.gmra.mrb[0].mxu0 %v600
        %v646 = vpop.f32.mrb[0].mxu0
        %v647 = vadd.f32 %v557, %v646
        %v648 = vpop.f32.mrb[0].mxu0
        %v649 = vadd.f32 %v561, %v648
        %v650 = vpop.f32.mrb[0].mxu0
        %v651 = vadd.f32 %v557, %v650
        %v652 = vpop.f32.mrb[0].mxu0
        %v653 = vadd.f32 %v561, %v652
        %654 = vdwg.mxu0
        %655 = vmatprep.subr.bf16.mxu0 0
        %656 = vmatpush1.bf16.msra.mxu0 %v591
        %657 = vmatprep.subr.bf16.mxu0 0
        %658 = vmatpush1.bf16.msra.mxu0 %v610
        %659 = vmatprep.subr.bf16.mxu0 0
        %660 = vmatpush1.bf16.msra.mxu0 0
        %661 = vmatprep.subr.bf16.mxu0 0
        %662 = vmatpush1.bf16.msra.mxu0 0
        %663 = vmatprep.subr.bf16.mxu0 0
        %664 = vmatpush1.bf16.msra.mxu0 0
        %665 = vmatprep.subr.bf16.mxu0 0
        %666 = vmatpush1.bf16.msra.mxu0 0
        %667 = vmatprep.subr.bf16.mxu0 0
        %668 = vmatpush1.bf16.msra.mxu0 0
        %669 = vmatprep.subr.bf16.mxu0 0
        %670 = vmatpush1.bf16.msra.mxu0 0
        %671 = vmatprep.subr.bf16.mxu0 0
        %672 = vmatpush1.bf16.msra.mxu0 0
        %673 = vmatprep.subr.bf16.mxu0 0
        %674 = vmatpush1.bf16.msra.mxu0 0
        %675 = vmatprep.subr.bf16.mxu0 0
        %676 = vmatpush1.bf16.msra.mxu0 0
        %677 = vmatprep.subr.bf16.mxu0 0
        %678 = vmatpush1.bf16.msra.mxu0 0
        %679 = vmatprep.subr.bf16.mxu0 0
        %680 = vmatpush1.bf16.msra.mxu0 0
        %681 = vmatprep.subr.bf16.mxu0 0
        %682 = vmatpush1.bf16.msra.mxu0 0
        %683 = vmatprep.subr.bf16.mxu0 0
        %684 = vmatpush1.bf16.msra.mxu0 0
        %685 = vmatprep.subr.bf16.mxu0 0
        %686 = vmatpush1.bf16.msra.mxu0 0
        %687 = vmatprep.mubr.bf16.mxu0 0
        %688 = vmatmul.mubr.bf16.gmra.mrb[0].mxu0 %v600
        %v689 = vpop.f32.mrb[0].mxu0
        %v690 = vadd.f32 %v565, %v689
        %v691 = vpop.f32.mrb[0].mxu0
        %v692 = vpop.f32.mrb[0].mxu0
        %v693 = vadd.f32 %v565, %v692
        %v694 = vpop.f32.mrb[0].mxu0
        %695 = vdwg.mxu0
        %697 = vrot.lane.b32.xlu0 %v500, 112
        %v698 = vpop.permute.xlu0 %697
        %700 = vrot.lane.b32.xlu0 %v500, 96
        %v701 = vpop.permute.xlu0 %700
        %703 = vrot.lane.b32.xlu0 %v500, 80
        %v704 = vpop.permute.xlu0 %703
        %706 = vrot.lane.b32.xlu0 %v500, 64
        %v707 = vpop.permute.xlu0 %706
        %709 = vrot.lane.b32.xlu0 %v500, 48
        %v710 = vpop.permute.xlu0 %709
        %712 = vrot.lane.b32.xlu0 %v500, 32
        %v713 = vpop.permute.xlu0 %712
        %715 = vrot.lane.b32.xlu0 %v500, 16
        %v716 = vpop.permute.xlu0 %715
        %v718 = vcombine.low %v500, %v701
        %v719 = vcombine.high %v500, %v701
        %v721 = vunpack.c.l.s4 1983009808
        %v722 = vunpack.c.0.s8 %v721
        %v723 = vlaneseq
        %v724 = vshrl.u32 %v723, 7
        %v725 = vsub.s32 %v722, %v724
        %v726 = vrot.slane %v718, %v725
        %v728 = vunpack.c.l.s4 1983009808
        %v729 = vunpack.c.0.s8 %v728
        %v730 = vlaneseq
        %v731 = vshrl.u32 %v730, 7
        %v732 = vsub.s32 %v729, %v731
        %v733 = vrot.slane %v719, %v732
        %v734 = vcombine.low %v698, %v704
        %v735 = vcombine.high %v698, %v704
        %v737 = vunpack.c.l.s4 1983009808
        %v738 = vunpack.c.0.s8 %v737
        %v739 = vlaneseq
        %v740 = vshrl.u32 %v739, 7
        %v741 = vsub.s32 %v738, %v740
        %v742 = vrot.slane %v734, %v741
        %v744 = vunpack.c.l.s4 1983009808
        %v745 = vunpack.c.0.s8 %v744
        %v746 = vlaneseq
        %v747 = vshrl.u32 %v746, 7
        %v748 = vsub.s32 %v745, %v747
        %v749 = vrot.slane %v735, %v748
        %v750 = vcombine.low %v707, %v713
        %v751 = vcombine.high %v707, %v713
        %v753 = vunpack.c.l.s4 1983009808
        %v754 = vunpack.c.0.s8 %v753
        %v755 = vlaneseq
        %v756 = vshrl.u32 %v755, 7
        %v757 = vsub.s32 %v754, %v756
        %v758 = vrot.slane %v750, %v757
        %v760 = vunpack.c.l.s4 1983009808
        %v761 = vunpack.c.0.s8 %v760
        %v762 = vlaneseq
        %v763 = vshrl.u32 %v762, 7
        %v764 = vsub.s32 %v761, %v763
        %v765 = vrot.slane %v751, %v764
        %v766 = vcombine.low %v710, %v716
        %v767 = vcombine.high %v710, %v716
        %v769 = vunpack.c.l.s4 1983009808
        %v770 = vunpack.c.0.s8 %v769
        %v771 = vlaneseq
        %v772 = vshrl.u32 %v771, 7
        %v773 = vsub.s32 %v770, %v772
        %v774 = vrot.slane %v766, %v773
        %v776 = vunpack.c.l.s4 1983009808
        %v777 = vunpack.c.0.s8 %v776
        %v778 = vlaneseq
        %v779 = vshrl.u32 %v778, 7
        %v780 = vsub.s32 %v777, %v779
        %v781 = vrot.slane %v767, %v780
        %v782 = vcombine.low %v726, %v742
        %v783 = vcombine.high %v726, %v742
        %v785 = vunpack.c.l.s4 1934713408
        %v786 = vunpack.c.0.s8 %v785
        %v787 = vlaneseq
        %v788 = vshrl.u32 %v787, 7
        %v789 = vsub.s32 %v786, %v788
        %v790 = vrot.slane %v782, %v789
        %v792 = vunpack.c.l.s4 1934713408
        %v793 = vunpack.c.0.s8 %v792
        %v794 = vlaneseq
        %v795 = vshrl.u32 %v794, 7
        %v796 = vsub.s32 %v793, %v795
        %v797 = vrot.slane %v783, %v796
        %v798 = vcombine.low %v733, %v749
        %v799 = vcombine.high %v733, %v749
        %v801 = vunpack.c.l.s4 1934713408
        %v802 = vunpack.c.0.s8 %v801
        %v803 = vlaneseq
        %v804 = vshrl.u32 %v803, 7
        %v805 = vsub.s32 %v802, %v804
        %v806 = vrot.slane %v798, %v805
        %v808 = vunpack.c.l.s4 1934713408
        %v809 = vunpack.c.0.s8 %v808
        %v810 = vlaneseq
        %v811 = vshrl.u32 %v810, 7
        %v812 = vsub.s32 %v809, %v811
        %v813 = vrot.slane %v799, %v812
        %v814 = vcombine.low %v758, %v774
        %v815 = vcombine.high %v758, %v774
        %v817 = vunpack.c.l.s4 1934713408
        %v818 = vunpack.c.0.s8 %v817
        %v819 = vlaneseq
        %v820 = vshrl.u32 %v819, 7
        %v821 = vsub.s32 %v818, %v820
        %v822 = vrot.slane %v814, %v821
        %v824 = vunpack.c.l.s4 1934713408
        %v825 = vunpack.c.0.s8 %v824
        %v826 = vlaneseq
        %v827 = vshrl.u32 %v826, 7
        %v828 = vsub.s32 %v825, %v827
        %v829 = vrot.slane %v815, %v828
        %v830 = vcombine.low %v765, %v781
        %v831 = vcombine.high %v765, %v781
        %v833 = vunpack.c.l.s4 1934713408
        %v834 = vunpack.c.0.s8 %v833
        %v835 = vlaneseq
        %v836 = vshrl.u32 %v835, 7
        %v837 = vsub.s32 %v834, %v836
        %v838 = vrot.slane %v830, %v837
        %v840 = vunpack.c.l.s4 1934713408
        %v841 = vunpack.c.0.s8 %v840
        %v842 = vlaneseq
        %v843 = vshrl.u32 %v842, 7
        %v844 = vsub.s32 %v841, %v843
        %v845 = vrot.slane %v831, %v844
        %v846 = vcombine.low %v790, %v822
        %v847 = vcombine.high %v790, %v822
        %v848 = vcombine.low %v797, %v829
        %v849 = vcombine.high %v797, %v829
        %v850 = vcombine.low %v806, %v838
        %v851 = vcombine.high %v806, %v838
        %v852 = vcombine.low %v813, %v845
        %v853 = vcombine.high %v813, %v845
        %v854 = vcombine.low %v846, %v848
        %v855 = vcombine.high %v846, %v848
        %v857 = vunpack.c.l.s4 1983009808
        %v858 = vunpack.c.0.s8 %v857
        %v859 = vlaneseq
        %v860 = vshrl.u32 %v859, 7
        %v861 = vsub.s32 %v858, %v860
        %v862 = vrot.slane %v854, %v861
        %v864 = vunpack.c.l.s4 1983009808
        %v865 = vunpack.c.0.s8 %v864
        %v866 = vlaneseq
        %v867 = vshrl.u32 %v866, 7
        %v868 = vsub.s32 %v865, %v867
        %v869 = vrot.slane %v855, %v868
        %v870 = vcombine.low %v847, %v849
        %v871 = vcombine.high %v847, %v849
        %v873 = vunpack.c.l.s4 1983009808
        %v874 = vunpack.c.0.s8 %v873
        %v875 = vlaneseq
        %v876 = vshrl.u32 %v875, 7
        %v877 = vsub.s32 %v874, %v876
        %v878 = vrot.slane %v870, %v877
        %v880 = vunpack.c.l.s4 1983009808
        %v881 = vunpack.c.0.s8 %v880
        %v882 = vlaneseq
        %v883 = vshrl.u32 %v882, 7
        %v884 = vsub.s32 %v881, %v883
        %v885 = vrot.slane %v871, %v884
        %v886 = vcombine.low %v850, %v852
        %v887 = vcombine.high %v850, %v852
        %v889 = vunpack.c.l.s4 1983009808
        %v890 = vunpack.c.0.s8 %v889
        %v891 = vlaneseq
        %v892 = vshrl.u32 %v891, 7
        %v893 = vsub.s32 %v890, %v892
        %v894 = vrot.slane %v886, %v893
        %v896 = vunpack.c.l.s4 1983009808
        %v897 = vunpack.c.0.s8 %v896
        %v898 = vlaneseq
        %v899 = vshrl.u32 %v898, 7
        %v900 = vsub.s32 %v897, %v899
        %v901 = vrot.slane %v887, %v900
        %v902 = vcombine.low %v851, %v853
        %v903 = vcombine.high %v851, %v853
        %v905 = vunpack.c.l.s4 1983009808
        %v906 = vunpack.c.0.s8 %v905
        %v907 = vlaneseq
        %v908 = vshrl.u32 %v907, 7
        %v909 = vsub.s32 %v906, %v908
        %v910 = vrot.slane %v902, %v909
        %v912 = vunpack.c.l.s4 1983009808
        %v913 = vunpack.c.0.s8 %v912
        %v914 = vlaneseq
        %v915 = vshrl.u32 %v914, 7
        %v916 = vsub.s32 %v913, %v915
        %v917 = vrot.slane %v903, %v916
        %v918 = vcombine.low %v862, %v878
        %v919 = vcombine.high %v862, %v878
        %v921 = vunpack.c.l.s4 1934713408
        %v922 = vunpack.c.0.s8 %v921
        %v923 = vlaneseq
        %v924 = vshrl.u32 %v923, 7
        %v925 = vsub.s32 %v922, %v924
        %v926 = vrot.slane %v918, %v925
        %v928 = vunpack.c.l.s4 1934713408
        %v929 = vunpack.c.0.s8 %v928
        %v930 = vlaneseq
        %v931 = vshrl.u32 %v930, 7
        %v932 = vsub.s32 %v929, %v931
        %v933 = vrot.slane %v919, %v932
        %v934 = vcombine.low %v869, %v885
        %v935 = vcombine.high %v869, %v885
        %v937 = vunpack.c.l.s4 1934713408
        %v938 = vunpack.c.0.s8 %v937
        %v939 = vlaneseq
        %v940 = vshrl.u32 %v939, 7
        %v941 = vsub.s32 %v938, %v940
        %v942 = vrot.slane %v934, %v941
        %v944 = vunpack.c.l.s4 1934713408
        %v945 = vunpack.c.0.s8 %v944
        %v946 = vlaneseq
        %v947 = vshrl.u32 %v946, 7
        %v948 = vsub.s32 %v945, %v947
        %v949 = vrot.slane %v935, %v948
        %v950 = vcombine.low %v894, %v910
        %v951 = vcombine.high %v894, %v910
        %v953 = vunpack.c.l.s4 1934713408
        %v954 = vunpack.c.0.s8 %v953
        %v955 = vlaneseq
        %v956 = vshrl.u32 %v955, 7
        %v957 = vsub.s32 %v954, %v956
        %v958 = vrot.slane %v950, %v957
        %v960 = vunpack.c.l.s4 1934713408
        %v961 = vunpack.c.0.s8 %v960
        %v962 = vlaneseq
        %v963 = vshrl.u32 %v962, 7
        %v964 = vsub.s32 %v961, %v963
        %v965 = vrot.slane %v951, %v964
        %v966 = vcombine.low %v901, %v917
        %v967 = vcombine.high %v901, %v917
        %v969 = vunpack.c.l.s4 1934713408
        %v970 = vunpack.c.0.s8 %v969
        %v971 = vlaneseq
        %v972 = vshrl.u32 %v971, 7
        %v973 = vsub.s32 %v970, %v972
        %v974 = vrot.slane %v966, %v973
        %v976 = vunpack.c.l.s4 1934713408
        %v977 = vunpack.c.0.s8 %v976
        %v978 = vlaneseq
        %v979 = vshrl.u32 %v978, 7
        %v980 = vsub.s32 %v977, %v979
        %v981 = vrot.slane %v967, %v980
        %v982 = vcombine.low %v926, %v958
        %v983 = vcombine.high %v926, %v958
        %v984 = vcombine.low %v933, %v965
        %v985 = vcombine.high %v933, %v965
        %v986 = vcombine.low %v942, %v974
        %v987 = vcombine.high %v942, %v974
        %v988 = vcombine.low %v949, %v981
        %v989 = vcombine.high %v949, %v981
        %v990 = vpack.c.bf16 %v982, %v982
        %v991 = vpack.c.bf16 %v983, %v983
        %v992 = vpack.c.bf16 %v984, %v984
        %v993 = vpack.c.bf16 %v985, %v985
        %v994 = vpack.c.bf16 %v986, %v986
        %v995 = vpack.c.bf16 %v987, %v987
        %v996 = vpack.c.bf16 %v988, %v988
        %v997 = vpack.c.bf16 %v989, %v989
        %1000 = vrot.lane.b32.xlu0 %v649, 112
        %v1001 = vpop.permute.xlu0 %1000
        %1002 = vrot.lane.b32.xlu0 %v653, 112
        %v1003 = vpop.permute.xlu0 %1002
        %1006 = vrot.lane.b32.xlu0 %v649, 96
        %v1007 = vpop.permute.xlu0 %1006
        %1008 = vrot.lane.b32.xlu0 %v653, 96
        %v1009 = vpop.permute.xlu0 %1008
        %1012 = vrot.lane.b32.xlu0 %v649, 80
        %v1013 = vpop.permute.xlu0 %1012
        %1014 = vrot.lane.b32.xlu0 %v653, 80
        %v1015 = vpop.permute.xlu0 %1014
        %1018 = vrot.lane.b32.xlu0 %v649, 64
        %v1019 = vpop.permute.xlu0 %1018
        %1020 = vrot.lane.b32.xlu0 %v653, 64
        %v1021 = vpop.permute.xlu0 %1020
        %1024 = vrot.lane.b32.xlu0 %v649, 48
        %v1025 = vpop.permute.xlu0 %1024
        %1026 = vrot.lane.b32.xlu0 %v653, 48
        %v1027 = vpop.permute.xlu0 %1026
        %1030 = vrot.lane.b32.xlu0 %v649, 32
        %v1031 = vpop.permute.xlu0 %1030
        %1032 = vrot.lane.b32.xlu0 %v653, 32
        %v1033 = vpop.permute.xlu0 %1032
        %1036 = vrot.lane.b32.xlu0 %v649, 16
        %v1037 = vpop.permute.xlu0 %1036
        %1038 = vrot.lane.b32.xlu0 %v653, 16
        %v1039 = vpop.permute.xlu0 %1038
        %v1042 = vcombine.low %v649, %v1007
        %v1043 = vcombine.high %v649, %v1007
        %v1045 = vunpack.c.l.s4 1983009808
        %v1046 = vunpack.c.0.s8 %v1045
        %v1047 = vlaneseq
        %v1048 = vshrl.u32 %v1047, 7
        %v1049 = vsub.s32 %v1046, %v1048
        %v1050 = vrot.slane %v1042, %v1049
        %v1052 = vunpack.c.l.s4 1983009808
        %v1053 = vunpack.c.0.s8 %v1052
        %v1054 = vlaneseq
        %v1055 = vshrl.u32 %v1054, 7
        %v1056 = vsub.s32 %v1053, %v1055
        %v1057 = vrot.slane %v1043, %v1056
        %v1058 = vcombine.low %v1001, %v1013
        %v1059 = vcombine.high %v1001, %v1013
        %v1061 = vunpack.c.l.s4 1983009808
        %v1062 = vunpack.c.0.s8 %v1061
        %v1063 = vlaneseq
        %v1064 = vshrl.u32 %v1063, 7
        %v1065 = vsub.s32 %v1062, %v1064
        %v1066 = vrot.slane %v1058, %v1065
        %v1068 = vunpack.c.l.s4 1983009808
        %v1069 = vunpack.c.0.s8 %v1068
        %v1070 = vlaneseq
        %v1071 = vshrl.u32 %v1070, 7
        %v1072 = vsub.s32 %v1069, %v1071
        %v1073 = vrot.slane %v1059, %v1072
        %v1074 = vcombine.low %v1019, %v1031
        %v1075 = vcombine.high %v1019, %v1031
        %v1077 = vunpack.c.l.s4 1983009808
        %v1078 = vunpack.c.0.s8 %v1077
        %v1079 = vlaneseq
        %v1080 = vshrl.u32 %v1079, 7
        %v1081 = vsub.s32 %v1078, %v1080
        %v1082 = vrot.slane %v1074, %v1081
        %v1084 = vunpack.c.l.s4 1983009808
        %v1085 = vunpack.c.0.s8 %v1084
        %v1086 = vlaneseq
        %v1087 = vshrl.u32 %v1086, 7
        %v1088 = vsub.s32 %v1085, %v1087
        %v1089 = vrot.slane %v1075, %v1088
        %v1090 = vcombine.low %v1025, %v1037
        %v1091 = vcombine.high %v1025, %v1037
        %v1093 = vunpack.c.l.s4 1983009808
        %v1094 = vunpack.c.0.s8 %v1093
        %v1095 = vlaneseq
        %v1096 = vshrl.u32 %v1095, 7
        %v1097 = vsub.s32 %v1094, %v1096
        %v1098 = vrot.slane %v1090, %v1097
        %v1100 = vunpack.c.l.s4 1983009808
        %v1101 = vunpack.c.0.s8 %v1100
        %v1102 = vlaneseq
        %v1103 = vshrl.u32 %v1102, 7
        %v1104 = vsub.s32 %v1101, %v1103
        %v1105 = vrot.slane %v1091, %v1104
        %v1106 = vcombine.low %v1050, %v1066
        %v1107 = vcombine.high %v1050, %v1066
        %v1109 = vunpack.c.l.s4 1934713408
        %v1110 = vunpack.c.0.s8 %v1109
        %v1111 = vlaneseq
        %v1112 = vshrl.u32 %v1111, 7
        %v1113 = vsub.s32 %v1110, %v1112
        %v1114 = vrot.slane %v1106, %v1113
        %v1116 = vunpack.c.l.s4 1934713408
        %v1117 = vunpack.c.0.s8 %v1116
        %v1118 = vlaneseq
        %v1119 = vshrl.u32 %v1118, 7
        %v1120 = vsub.s32 %v1117, %v1119
        %v1121 = vrot.slane %v1107, %v1120
        %v1122 = vcombine.low %v1057, %v1073
        %v1123 = vcombine.high %v1057, %v1073
        %v1125 = vunpack.c.l.s4 1934713408
        %v1126 = vunpack.c.0.s8 %v1125
        %v1127 = vlaneseq
        %v1128 = vshrl.u32 %v1127, 7
        %v1129 = vsub.s32 %v1126, %v1128
        %v1130 = vrot.slane %v1122, %v1129
        %v1132 = vunpack.c.l.s4 1934713408
        %v1133 = vunpack.c.0.s8 %v1132
        %v1134 = vlaneseq
        %v1135 = vshrl.u32 %v1134, 7
        %v1136 = vsub.s32 %v1133, %v1135
        %v1137 = vrot.slane %v1123, %v1136
        %v1138 = vcombine.low %v1082, %v1098
        %v1139 = vcombine.high %v1082, %v1098
        %v1141 = vunpack.c.l.s4 1934713408
        %v1142 = vunpack.c.0.s8 %v1141
        %v1143 = vlaneseq
        %v1144 = vshrl.u32 %v1143, 7
        %v1145 = vsub.s32 %v1142, %v1144
        %v1146 = vrot.slane %v1138, %v1145
        %v1148 = vunpack.c.l.s4 1934713408
        %v1149 = vunpack.c.0.s8 %v1148
        %v1150 = vlaneseq
        %v1151 = vshrl.u32 %v1150, 7
        %v1152 = vsub.s32 %v1149, %v1151
        %v1153 = vrot.slane %v1139, %v1152
        %v1154 = vcombine.low %v1089, %v1105
        %v1155 = vcombine.high %v1089, %v1105
        %v1157 = vunpack.c.l.s4 1934713408
        %v1158 = vunpack.c.0.s8 %v1157
        %v1159 = vlaneseq
        %v1160 = vshrl.u32 %v1159, 7
        %v1161 = vsub.s32 %v1158, %v1160
        %v1162 = vrot.slane %v1154, %v1161
        %v1164 = vunpack.c.l.s4 1934713408
        %v1165 = vunpack.c.0.s8 %v1164
        %v1166 = vlaneseq
        %v1167 = vshrl.u32 %v1166, 7
        %v1168 = vsub.s32 %v1165, %v1167
        %v1169 = vrot.slane %v1155, %v1168
        %v1170 = vcombine.low %v1114, %v1146
        %v1171 = vcombine.high %v1114, %v1146
        %v1172 = vcombine.low %v1121, %v1153
        %v1173 = vcombine.high %v1121, %v1153
        %v1174 = vcombine.low %v1130, %v1162
        %v1175 = vcombine.high %v1130, %v1162
        %v1176 = vcombine.low %v1137, %v1169
        %v1177 = vcombine.high %v1137, %v1169
        %v1178 = vcombine.low %v653, %v1009
        %v1179 = vcombine.high %v653, %v1009
        %v1181 = vunpack.c.l.s4 1983009808
        %v1182 = vunpack.c.0.s8 %v1181
        %v1183 = vlaneseq
        %v1184 = vshrl.u32 %v1183, 7
        %v1185 = vsub.s32 %v1182, %v1184
        %v1186 = vrot.slane %v1178, %v1185
        %v1188 = vunpack.c.l.s4 1983009808
        %v1189 = vunpack.c.0.s8 %v1188
        %v1190 = vlaneseq
        %v1191 = vshrl.u32 %v1190, 7
        %v1192 = vsub.s32 %v1189, %v1191
        %v1193 = vrot.slane %v1179, %v1192
        %v1194 = vcombine.low %v1003, %v1015
        %v1195 = vcombine.high %v1003, %v1015
        %v1197 = vunpack.c.l.s4 1983009808
        %v1198 = vunpack.c.0.s8 %v1197
        %v1199 = vlaneseq
        %v1200 = vshrl.u32 %v1199, 7
        %v1201 = vsub.s32 %v1198, %v1200
        %v1202 = vrot.slane %v1194, %v1201
        %v1204 = vunpack.c.l.s4 1983009808
        %v1205 = vunpack.c.0.s8 %v1204
        %v1206 = vlaneseq
        %v1207 = vshrl.u32 %v1206, 7
        %v1208 = vsub.s32 %v1205, %v1207
        %v1209 = vrot.slane %v1195, %v1208
        %v1210 = vcombine.low %v1021, %v1033
        %v1211 = vcombine.high %v1021, %v1033
        %v1213 = vunpack.c.l.s4 1983009808
        %v1214 = vunpack.c.0.s8 %v1213
        %v1215 = vlaneseq
        %v1216 = vshrl.u32 %v1215, 7
        %v1217 = vsub.s32 %v1214, %v1216
        %v1218 = vrot.slane %v1210, %v1217
        %v1220 = vunpack.c.l.s4 1983009808
        %v1221 = vunpack.c.0.s8 %v1220
        %v1222 = vlaneseq
        %v1223 = vshrl.u32 %v1222, 7
        %v1224 = vsub.s32 %v1221, %v1223
        %v1225 = vrot.slane %v1211, %v1224
        %v1226 = vcombine.low %v1027, %v1039
        %v1227 = vcombine.high %v1027, %v1039
        %v1229 = vunpack.c.l.s4 1983009808
        %v1230 = vunpack.c.0.s8 %v1229
        %v1231 = vlaneseq
        %v1232 = vshrl.u32 %v1231, 7
        %v1233 = vsub.s32 %v1230, %v1232
        %v1234 = vrot.slane %v1226, %v1233
        %v1236 = vunpack.c.l.s4 1983009808
        %v1237 = vunpack.c.0.s8 %v1236
        %v1238 = vlaneseq
        %v1239 = vshrl.u32 %v1238, 7
        %v1240 = vsub.s32 %v1237, %v1239
        %v1241 = vrot.slane %v1227, %v1240
        %v1242 = vcombine.low %v1186, %v1202
        %v1243 = vcombine.high %v1186, %v1202
        %v1245 = vunpack.c.l.s4 1934713408
        %v1246 = vunpack.c.0.s8 %v1245
        %v1247 = vlaneseq
        %v1248 = vshrl.u32 %v1247, 7
        %v1249 = vsub.s32 %v1246, %v1248
        %v1250 = vrot.slane %v1242, %v1249
        %v1252 = vunpack.c.l.s4 1934713408
        %v1253 = vunpack.c.0.s8 %v1252
        %v1254 = vlaneseq
        %v1255 = vshrl.u32 %v1254, 7
        %v1256 = vsub.s32 %v1253, %v1255
        %v1257 = vrot.slane %v1243, %v1256
        %v1258 = vcombine.low %v1193, %v1209
        %v1259 = vcombine.high %v1193, %v1209
        %v1261 = vunpack.c.l.s4 1934713408
        %v1262 = vunpack.c.0.s8 %v1261
        %v1263 = vlaneseq
        %v1264 = vshrl.u32 %v1263, 7
        %v1265 = vsub.s32 %v1262, %v1264
        %v1266 = vrot.slane %v1258, %v1265
        %v1268 = vunpack.c.l.s4 1934713408
        %v1269 = vunpack.c.0.s8 %v1268
        %v1270 = vlaneseq
        %v1271 = vshrl.u32 %v1270, 7
        %v1272 = vsub.s32 %v1269, %v1271
        %v1273 = vrot.slane %v1259, %v1272
        %v1274 = vcombine.low %v1218, %v1234
        %v1275 = vcombine.high %v1218, %v1234
        %v1277 = vunpack.c.l.s4 1934713408
        %v1278 = vunpack.c.0.s8 %v1277
        %v1279 = vlaneseq
        %v1280 = vshrl.u32 %v1279, 7
        %v1281 = vsub.s32 %v1278, %v1280
        %v1282 = vrot.slane %v1274, %v1281
        %v1284 = vunpack.c.l.s4 1934713408
        %v1285 = vunpack.c.0.s8 %v1284
        %v1286 = vlaneseq
        %v1287 = vshrl.u32 %v1286, 7
        %v1288 = vsub.s32 %v1285, %v1287
        %v1289 = vrot.slane %v1275, %v1288
        %v1290 = vcombine.low %v1225, %v1241
        %v1291 = vcombine.high %v1225, %v1241
        %v1293 = vunpack.c.l.s4 1934713408
        %v1294 = vunpack.c.0.s8 %v1293
        %v1295 = vlaneseq
        %v1296 = vshrl.u32 %v1295, 7
        %v1297 = vsub.s32 %v1294, %v1296
        %v1298 = vrot.slane %v1290, %v1297
        %v1300 = vunpack.c.l.s4 1934713408
        %v1301 = vunpack.c.0.s8 %v1300
        %v1302 = vlaneseq
        %v1303 = vshrl.u32 %v1302, 7
        %v1304 = vsub.s32 %v1301, %v1303
        %v1305 = vrot.slane %v1291, %v1304
        %v1306 = vcombine.low %v1250, %v1282
        %v1307 = vcombine.high %v1250, %v1282
        %v1308 = vcombine.low %v1257, %v1289
        %v1309 = vcombine.high %v1257, %v1289
        %v1310 = vcombine.low %v1266, %v1298
        %v1311 = vcombine.high %v1266, %v1298
        %v1312 = vcombine.low %v1273, %v1305
        %v1313 = vcombine.high %v1273, %v1305
        %v1314 = vcombine.low %v1170, %v1172
        %v1315 = vcombine.high %v1170, %v1172
        %v1317 = vunpack.c.l.s4 1983009808
        %v1318 = vunpack.c.0.s8 %v1317
        %v1319 = vlaneseq
        %v1320 = vshrl.u32 %v1319, 7
        %v1321 = vsub.s32 %v1318, %v1320
        %v1322 = vrot.slane %v1314, %v1321
        %v1324 = vunpack.c.l.s4 1983009808
        %v1325 = vunpack.c.0.s8 %v1324
        %v1326 = vlaneseq
        %v1327 = vshrl.u32 %v1326, 7
        %v1328 = vsub.s32 %v1325, %v1327
        %v1329 = vrot.slane %v1315, %v1328
        %v1330 = vcombine.low %v1171, %v1173
        %v1331 = vcombine.high %v1171, %v1173
        %v1333 = vunpack.c.l.s4 1983009808
        %v1334 = vunpack.c.0.s8 %v1333
        %v1335 = vlaneseq
        %v1336 = vshrl.u32 %v1335, 7
        %v1337 = vsub.s32 %v1334, %v1336
        %v1338 = vrot.slane %v1330, %v1337
        %v1340 = vunpack.c.l.s4 1983009808
        %v1341 = vunpack.c.0.s8 %v1340
        %v1342 = vlaneseq
        %v1343 = vshrl.u32 %v1342, 7
        %v1344 = vsub.s32 %v1341, %v1343
        %v1345 = vrot.slane %v1331, %v1344
        %v1346 = vcombine.low %v1174, %v1176
        %v1347 = vcombine.high %v1174, %v1176
        %v1349 = vunpack.c.l.s4 1983009808
        %v1350 = vunpack.c.0.s8 %v1349
        %v1351 = vlaneseq
        %v1352 = vshrl.u32 %v1351, 7
        %v1353 = vsub.s32 %v1350, %v1352
        %v1354 = vrot.slane %v1346, %v1353
        %v1356 = vunpack.c.l.s4 1983009808
        %v1357 = vunpack.c.0.s8 %v1356
        %v1358 = vlaneseq
        %v1359 = vshrl.u32 %v1358, 7
        %v1360 = vsub.s32 %v1357, %v1359
        %v1361 = vrot.slane %v1347, %v1360
        %v1362 = vcombine.low %v1175, %v1177
        %v1363 = vcombine.high %v1175, %v1177
        %v1365 = vunpack.c.l.s4 1983009808
        %v1366 = vunpack.c.0.s8 %v1365
        %v1367 = vlaneseq
        %v1368 = vshrl.u32 %v1367, 7
        %v1369 = vsub.s32 %v1366, %v1368
        %v1370 = vrot.slane %v1362, %v1369
        %v1372 = vunpack.c.l.s4 1983009808
        %v1373 = vunpack.c.0.s8 %v1372
        %v1374 = vlaneseq
        %v1375 = vshrl.u32 %v1374, 7
        %v1376 = vsub.s32 %v1373, %v1375
        %v1377 = vrot.slane %v1363, %v1376
        %v1378 = vcombine.low %v1322, %v1338
        %v1379 = vcombine.high %v1322, %v1338
        %v1381 = vunpack.c.l.s4 1934713408
        %v1382 = vunpack.c.0.s8 %v1381
        %v1383 = vlaneseq
        %v1384 = vshrl.u32 %v1383, 7
        %v1385 = vsub.s32 %v1382, %v1384
        %v1386 = vrot.slane %v1378, %v1385
        %v1388 = vunpack.c.l.s4 1934713408
        %v1389 = vunpack.c.0.s8 %v1388
        %v1390 = vlaneseq
        %v1391 = vshrl.u32 %v1390, 7
        %v1392 = vsub.s32 %v1389, %v1391
        %v1393 = vrot.slane %v1379, %v1392
        %v1394 = vcombine.low %v1329, %v1345
        %v1395 = vcombine.high %v1329, %v1345
        %v1397 = vunpack.c.l.s4 1934713408
        %v1398 = vunpack.c.0.s8 %v1397
        %v1399 = vlaneseq
        %v1400 = vshrl.u32 %v1399, 7
        %v1401 = vsub.s32 %v1398, %v1400
        %v1402 = vrot.slane %v1394, %v1401
        %v1404 = vunpack.c.l.s4 1934713408
        %v1405 = vunpack.c.0.s8 %v1404
        %v1406 = vlaneseq
        %v1407 = vshrl.u32 %v1406, 7
        %v1408 = vsub.s32 %v1405, %v1407
        %v1409 = vrot.slane %v1395, %v1408
        %v1410 = vcombine.low %v1354, %v1370
        %v1411 = vcombine.high %v1354, %v1370
        %v1413 = vunpack.c.l.s4 1934713408
        %v1414 = vunpack.c.0.s8 %v1413
        %v1415 = vlaneseq
        %v1416 = vshrl.u32 %v1415, 7
        %v1417 = vsub.s32 %v1414, %v1416
        %v1418 = vrot.slane %v1410, %v1417
        %v1420 = vunpack.c.l.s4 1934713408
        %v1421 = vunpack.c.0.s8 %v1420
        %v1422 = vlaneseq
        %v1423 = vshrl.u32 %v1422, 7
        %v1424 = vsub.s32 %v1421, %v1423
        %v1425 = vrot.slane %v1411, %v1424
        %v1426 = vcombine.low %v1361, %v1377
        %v1427 = vcombine.high %v1361, %v1377
        %v1429 = vunpack.c.l.s4 1934713408
        %v1430 = vunpack.c.0.s8 %v1429
        %v1431 = vlaneseq
        %v1432 = vshrl.u32 %v1431, 7
        %v1433 = vsub.s32 %v1430, %v1432
        %v1434 = vrot.slane %v1426, %v1433
        %v1436 = vunpack.c.l.s4 1934713408
        %v1437 = vunpack.c.0.s8 %v1436
        %v1438 = vlaneseq
        %v1439 = vshrl.u32 %v1438, 7
        %v1440 = vsub.s32 %v1437, %v1439
        %v1441 = vrot.slane %v1427, %v1440
        %v1442 = vcombine.low %v1386, %v1418
        %v1443 = vcombine.high %v1386, %v1418
        %v1444 = vcombine.low %v1393, %v1425
        %v1445 = vcombine.high %v1393, %v1425
        %v1446 = vcombine.low %v1402, %v1434
        %v1447 = vcombine.high %v1402, %v1434
        %v1448 = vcombine.low %v1409, %v1441
        %v1449 = vcombine.high %v1409, %v1441
        %v1450 = vcombine.low %v1306, %v1308
        %v1451 = vcombine.high %v1306, %v1308
        %v1453 = vunpack.c.l.s4 1983009808
        %v1454 = vunpack.c.0.s8 %v1453
        %v1455 = vlaneseq
        %v1456 = vshrl.u32 %v1455, 7
        %v1457 = vsub.s32 %v1454, %v1456
        %v1458 = vrot.slane %v1450, %v1457
        %v1460 = vunpack.c.l.s4 1983009808
        %v1461 = vunpack.c.0.s8 %v1460
        %v1462 = vlaneseq
        %v1463 = vshrl.u32 %v1462, 7
        %v1464 = vsub.s32 %v1461, %v1463
        %v1465 = vrot.slane %v1451, %v1464
        %v1466 = vcombine.low %v1307, %v1309
        %v1467 = vcombine.high %v1307, %v1309
        %v1469 = vunpack.c.l.s4 1983009808
        %v1470 = vunpack.c.0.s8 %v1469
        %v1471 = vlaneseq
        %v1472 = vshrl.u32 %v1471, 7
        %v1473 = vsub.s32 %v1470, %v1472
        %v1474 = vrot.slane %v1466, %v1473
        %v1476 = vunpack.c.l.s4 1983009808
        %v1477 = vunpack.c.0.s8 %v1476
        %v1478 = vlaneseq
        %v1479 = vshrl.u32 %v1478, 7
        %v1480 = vsub.s32 %v1477, %v1479
        %v1481 = vrot.slane %v1467, %v1480
        %v1482 = vcombine.low %v1310, %v1312
        %v1483 = vcombine.high %v1310, %v1312
        %v1485 = vunpack.c.l.s4 1983009808
        %v1486 = vunpack.c.0.s8 %v1485
        %v1487 = vlaneseq
        %v1488 = vshrl.u32 %v1487, 7
        %v1489 = vsub.s32 %v1486, %v1488
        %v1490 = vrot.slane %v1482, %v1489
        %v1492 = vunpack.c.l.s4 1983009808
        %v1493 = vunpack.c.0.s8 %v1492
        %v1494 = vlaneseq
        %v1495 = vshrl.u32 %v1494, 7
        %v1496 = vsub.s32 %v1493, %v1495
        %v1497 = vrot.slane %v1483, %v1496
        %v1498 = vcombine.low %v1311, %v1313
        %v1499 = vcombine.high %v1311, %v1313
        %v1501 = vunpack.c.l.s4 1983009808
        %v1502 = vunpack.c.0.s8 %v1501
        %v1503 = vlaneseq
        %v1504 = vshrl.u32 %v1503, 7
        %v1505 = vsub.s32 %v1502, %v1504
        %v1506 = vrot.slane %v1498, %v1505
        %v1508 = vunpack.c.l.s4 1983009808
        %v1509 = vunpack.c.0.s8 %v1508
        %v1510 = vlaneseq
        %v1511 = vshrl.u32 %v1510, 7
        %v1512 = vsub.s32 %v1509, %v1511
        %v1513 = vrot.slane %v1499, %v1512
        %v1514 = vcombine.low %v1458, %v1474
        %v1515 = vcombine.high %v1458, %v1474
        %v1517 = vunpack.c.l.s4 1934713408
        %v1518 = vunpack.c.0.s8 %v1517
        %v1519 = vlaneseq
        %v1520 = vshrl.u32 %v1519, 7
        %v1521 = vsub.s32 %v1518, %v1520
        %v1522 = vrot.slane %v1514, %v1521
        %v1524 = vunpack.c.l.s4 1934713408
        %v1525 = vunpack.c.0.s8 %v1524
        %v1526 = vlaneseq
        %v1527 = vshrl.u32 %v1526, 7
        %v1528 = vsub.s32 %v1525, %v1527
        %v1529 = vrot.slane %v1515, %v1528
        %v1530 = vcombine.low %v1465, %v1481
        %v1531 = vcombine.high %v1465, %v1481
        %v1533 = vunpack.c.l.s4 1934713408
        %v1534 = vunpack.c.0.s8 %v1533
        %v1535 = vlaneseq
        %v1536 = vshrl.u32 %v1535, 7
        %v1537 = vsub.s32 %v1534, %v1536
        %v1538 = vrot.slane %v1530, %v1537
        %v1540 = vunpack.c.l.s4 1934713408
        %v1541 = vunpack.c.0.s8 %v1540
        %v1542 = vlaneseq
        %v1543 = vshrl.u32 %v1542, 7
        %v1544 = vsub.s32 %v1541, %v1543
        %v1545 = vrot.slane %v1531, %v1544
        %v1546 = vcombine.low %v1490, %v1506
        %v1547 = vcombine.high %v1490, %v1506
        %v1549 = vunpack.c.l.s4 1934713408
        %v1550 = vunpack.c.0.s8 %v1549
        %v1551 = vlaneseq
        %v1552 = vshrl.u32 %v1551, 7
        %v1553 = vsub.s32 %v1550, %v1552
        %v1554 = vrot.slane %v1546, %v1553
        %v1556 = vunpack.c.l.s4 1934713408
        %v1557 = vunpack.c.0.s8 %v1556
        %v1558 = vlaneseq
        %v1559 = vshrl.u32 %v1558, 7
        %v1560 = vsub.s32 %v1557, %v1559
        %v1561 = vrot.slane %v1547, %v1560
        %v1562 = vcombine.low %v1497, %v1513
        %v1563 = vcombine.high %v1497, %v1513
        %v1565 = vunpack.c.l.s4 1934713408
        %v1566 = vunpack.c.0.s8 %v1565
        %v1567 = vlaneseq
        %v1568 = vshrl.u32 %v1567, 7
        %v1569 = vsub.s32 %v1566, %v1568
        %v1570 = vrot.slane %v1562, %v1569
        %v1572 = vunpack.c.l.s4 1934713408
        %v1573 = vunpack.c.0.s8 %v1572
        %v1574 = vlaneseq
        %v1575 = vshrl.u32 %v1574, 7
        %v1576 = vsub.s32 %v1573, %v1575
        %v1577 = vrot.slane %v1563, %v1576
        %v1578 = vcombine.low %v1522, %v1554
        %v1579 = vcombine.high %v1522, %v1554
        %v1580 = vcombine.low %v1529, %v1561
        %v1581 = vcombine.high %v1529, %v1561
        %v1582 = vcombine.low %v1538, %v1570
        %v1583 = vcombine.high %v1538, %v1570
        %v1584 = vcombine.low %v1545, %v1577
        %v1585 = vcombine.high %v1545, %v1577
        %v1586 = vpack.c.bf16 %v1578, %v1442
        %v1587 = vpack.c.bf16 %v1579, %v1443
        %v1588 = vpack.c.bf16 %v1580, %v1444
        %v1589 = vpack.c.bf16 %v1581, %v1445
        %v1590 = vpack.c.bf16 %v1582, %v1446
        %v1591 = vpack.c.bf16 %v1583, %v1447
        %v1592 = vpack.c.bf16 %v1584, %v1448
        %v1593 = vpack.c.bf16 %v1585, %v1449
        %1596 = vrot.lane.b32.xlu0 %v690, 112
        %v1597 = vpop.permute.xlu0 %1596
        %1598 = vrot.lane.b32.xlu0 %v693, 112
        %v1599 = vpop.permute.xlu0 %1598
        %1602 = vrot.lane.b32.xlu0 %v690, 96
        %v1603 = vpop.permute.xlu0 %1602
        %1604 = vrot.lane.b32.xlu0 %v693, 96
        %v1605 = vpop.permute.xlu0 %1604
        %1608 = vrot.lane.b32.xlu0 %v690, 80
        %v1609 = vpop.permute.xlu0 %1608
        %1610 = vrot.lane.b32.xlu0 %v693, 80
        %v1611 = vpop.permute.xlu0 %1610
        %1614 = vrot.lane.b32.xlu0 %v690, 64
        %v1615 = vpop.permute.xlu0 %1614
        %1616 = vrot.lane.b32.xlu0 %v693, 64
        %v1617 = vpop.permute.xlu0 %1616
        %1620 = vrot.lane.b32.xlu0 %v690, 48
        %v1621 = vpop.permute.xlu0 %1620
        %1622 = vrot.lane.b32.xlu0 %v693, 48
        %v1623 = vpop.permute.xlu0 %1622
        %1626 = vrot.lane.b32.xlu0 %v690, 32
        %v1627 = vpop.permute.xlu0 %1626
        %1628 = vrot.lane.b32.xlu0 %v693, 32
        %v1629 = vpop.permute.xlu0 %1628
        %1632 = vrot.lane.b32.xlu0 %v690, 16
        %v1633 = vpop.permute.xlu0 %1632
        %1634 = vrot.lane.b32.xlu0 %v693, 16
        %v1635 = vpop.permute.xlu0 %1634
        %v1638 = vcombine.low %v690, %v1603
        %v1639 = vcombine.high %v690, %v1603
        %v1641 = vunpack.c.l.s4 1983009808
        %v1642 = vunpack.c.0.s8 %v1641
        %v1643 = vlaneseq
        %v1644 = vshrl.u32 %v1643, 7
        %v1645 = vsub.s32 %v1642, %v1644
        %v1646 = vrot.slane %v1638, %v1645
        %v1648 = vunpack.c.l.s4 1983009808
        %v1649 = vunpack.c.0.s8 %v1648
        %v1650 = vlaneseq
        %v1651 = vshrl.u32 %v1650, 7
        %v1652 = vsub.s32 %v1649, %v1651
        %v1653 = vrot.slane %v1639, %v1652
        %v1654 = vcombine.low %v1597, %v1609
        %v1655 = vcombine.high %v1597, %v1609
        %v1657 = vunpack.c.l.s4 1983009808
        %v1658 = vunpack.c.0.s8 %v1657
        %v1659 = vlaneseq
        %v1660 = vshrl.u32 %v1659, 7
        %v1661 = vsub.s32 %v1658, %v1660
        %v1662 = vrot.slane %v1654, %v1661
        %v1664 = vunpack.c.l.s4 1983009808
        %v1665 = vunpack.c.0.s8 %v1664
        %v1666 = vlaneseq
        %v1667 = vshrl.u32 %v1666, 7
        %v1668 = vsub.s32 %v1665, %v1667
        %v1669 = vrot.slane %v1655, %v1668
        %v1670 = vcombine.low %v1615, %v1627
        %v1671 = vcombine.high %v1615, %v1627
        %v1673 = vunpack.c.l.s4 1983009808
        %v1674 = vunpack.c.0.s8 %v1673
        %v1675 = vlaneseq
        %v1676 = vshrl.u32 %v1675, 7
        %v1677 = vsub.s32 %v1674, %v1676
        %v1678 = vrot.slane %v1670, %v1677
        %v1680 = vunpack.c.l.s4 1983009808
        %v1681 = vunpack.c.0.s8 %v1680
        %v1682 = vlaneseq
        %v1683 = vshrl.u32 %v1682, 7
        %v1684 = vsub.s32 %v1681, %v1683
        %v1685 = vrot.slane %v1671, %v1684
        %v1686 = vcombine.low %v1621, %v1633
        %v1687 = vcombine.high %v1621, %v1633
        %v1689 = vunpack.c.l.s4 1983009808
        %v1690 = vunpack.c.0.s8 %v1689
        %v1691 = vlaneseq
        %v1692 = vshrl.u32 %v1691, 7
        %v1693 = vsub.s32 %v1690, %v1692
        %v1694 = vrot.slane %v1686, %v1693
        %v1696 = vunpack.c.l.s4 1983009808
        %v1697 = vunpack.c.0.s8 %v1696
        %v1698 = vlaneseq
        %v1699 = vshrl.u32 %v1698, 7
        %v1700 = vsub.s32 %v1697, %v1699
        %v1701 = vrot.slane %v1687, %v1700
        %v1702 = vcombine.low %v1646, %v1662
        %v1703 = vcombine.high %v1646, %v1662
        %v1705 = vunpack.c.l.s4 1934713408
        %v1706 = vunpack.c.0.s8 %v1705
        %v1707 = vlaneseq
        %v1708 = vshrl.u32 %v1707, 7
        %v1709 = vsub.s32 %v1706, %v1708
        %v1710 = vrot.slane %v1702, %v1709
        %v1712 = vunpack.c.l.s4 1934713408
        %v1713 = vunpack.c.0.s8 %v1712
        %v1714 = vlaneseq
        %v1715 = vshrl.u32 %v1714, 7
        %v1716 = vsub.s32 %v1713, %v1715
        %v1717 = vrot.slane %v1703, %v1716
        %v1718 = vcombine.low %v1653, %v1669
        %v1719 = vcombine.high %v1653, %v1669
        %v1721 = vunpack.c.l.s4 1934713408
        %v1722 = vunpack.c.0.s8 %v1721
        %v1723 = vlaneseq
        %v1724 = vshrl.u32 %v1723, 7
        %v1725 = vsub.s32 %v1722, %v1724
        %v1726 = vrot.slane %v1718, %v1725
        %v1728 = vunpack.c.l.s4 1934713408
        %v1729 = vunpack.c.0.s8 %v1728
        %v1730 = vlaneseq
        %v1731 = vshrl.u32 %v1730, 7
        %v1732 = vsub.s32 %v1729, %v1731
        %v1733 = vrot.slane %v1719, %v1732
        %v1734 = vcombine.low %v1678, %v1694
        %v1735 = vcombine.high %v1678, %v1694
        %v1737 = vunpack.c.l.s4 1934713408
        %v1738 = vunpack.c.0.s8 %v1737
        %v1739 = vlaneseq
        %v1740 = vshrl.u32 %v1739, 7
        %v1741 = vsub.s32 %v1738, %v1740
        %v1742 = vrot.slane %v1734, %v1741
        %v1744 = vunpack.c.l.s4 1934713408
        %v1745 = vunpack.c.0.s8 %v1744
        %v1746 = vlaneseq
        %v1747 = vshrl.u32 %v1746, 7
        %v1748 = vsub.s32 %v1745, %v1747
        %v1749 = vrot.slane %v1735, %v1748
        %v1750 = vcombine.low %v1685, %v1701
        %v1751 = vcombine.high %v1685, %v1701
        %v1753 = vunpack.c.l.s4 1934713408
        %v1754 = vunpack.c.0.s8 %v1753
        %v1755 = vlaneseq
        %v1756 = vshrl.u32 %v1755, 7
        %v1757 = vsub.s32 %v1754, %v1756
        %v1758 = vrot.slane %v1750, %v1757
        %v1760 = vunpack.c.l.s4 1934713408
        %v1761 = vunpack.c.0.s8 %v1760
        %v1762 = vlaneseq
        %v1763 = vshrl.u32 %v1762, 7
        %v1764 = vsub.s32 %v1761, %v1763
        %v1765 = vrot.slane %v1751, %v1764
        %v1766 = vcombine.low %v1710, %v1742
        %v1767 = vcombine.high %v1710, %v1742
        %v1768 = vcombine.low %v1717, %v1749
        %v1769 = vcombine.high %v1717, %v1749
        %v1770 = vcombine.low %v1726, %v1758
        %v1771 = vcombine.high %v1726, %v1758
        %v1772 = vcombine.low %v1733, %v1765
        %v1773 = vcombine.high %v1733, %v1765
        %v1774 = vcombine.low %v693, %v1605
        %v1775 = vcombine.high %v693, %v1605
        %v1777 = vunpack.c.l.s4 1983009808
        %v1778 = vunpack.c.0.s8 %v1777
        %v1779 = vlaneseq
        %v1780 = vshrl.u32 %v1779, 7
        %v1781 = vsub.s32 %v1778, %v1780
        %v1782 = vrot.slane %v1774, %v1781
        %v1784 = vunpack.c.l.s4 1983009808
        %v1785 = vunpack.c.0.s8 %v1784
        %v1786 = vlaneseq
        %v1787 = vshrl.u32 %v1786, 7
        %v1788 = vsub.s32 %v1785, %v1787
        %v1789 = vrot.slane %v1775, %v1788
        %v1790 = vcombine.low %v1599, %v1611
        %v1791 = vcombine.high %v1599, %v1611
        %v1793 = vunpack.c.l.s4 1983009808
        %v1794 = vunpack.c.0.s8 %v1793
        %v1795 = vlaneseq
        %v1796 = vshrl.u32 %v1795, 7
        %v1797 = vsub.s32 %v1794, %v1796
        %v1798 = vrot.slane %v1790, %v1797
        %v1800 = vunpack.c.l.s4 1983009808
        %v1801 = vunpack.c.0.s8 %v1800
        %v1802 = vlaneseq
        %v1803 = vshrl.u32 %v1802, 7
        %v1804 = vsub.s32 %v1801, %v1803
        %v1805 = vrot.slane %v1791, %v1804
        %v1806 = vcombine.low %v1617, %v1629
        %v1807 = vcombine.high %v1617, %v1629
        %v1809 = vunpack.c.l.s4 1983009808
        %v1810 = vunpack.c.0.s8 %v1809
        %v1811 = vlaneseq
        %v1812 = vshrl.u32 %v1811, 7
        %v1813 = vsub.s32 %v1810, %v1812
        %v1814 = vrot.slane %v1806, %v1813
        %v1816 = vunpack.c.l.s4 1983009808
        %v1817 = vunpack.c.0.s8 %v1816
        %v1818 = vlaneseq
        %v1819 = vshrl.u32 %v1818, 7
        %v1820 = vsub.s32 %v1817, %v1819
        %v1821 = vrot.slane %v1807, %v1820
        %v1822 = vcombine.low %v1623, %v1635
        %v1823 = vcombine.high %v1623, %v1635
        %v1825 = vunpack.c.l.s4 1983009808
        %v1826 = vunpack.c.0.s8 %v1825
        %v1827 = vlaneseq
        %v1828 = vshrl.u32 %v1827, 7
        %v1829 = vsub.s32 %v1826, %v1828
        %v1830 = vrot.slane %v1822, %v1829
        %v1832 = vunpack.c.l.s4 1983009808
        %v1833 = vunpack.c.0.s8 %v1832
        %v1834 = vlaneseq
        %v1835 = vshrl.u32 %v1834, 7
        %v1836 = vsub.s32 %v1833, %v1835
        %v1837 = vrot.slane %v1823, %v1836
        %v1838 = vcombine.low %v1782, %v1798
        %v1839 = vcombine.high %v1782, %v1798
        %v1841 = vunpack.c.l.s4 1934713408
        %v1842 = vunpack.c.0.s8 %v1841
        %v1843 = vlaneseq
        %v1844 = vshrl.u32 %v1843, 7
        %v1845 = vsub.s32 %v1842, %v1844
        %v1846 = vrot.slane %v1838, %v1845
        %v1848 = vunpack.c.l.s4 1934713408
        %v1849 = vunpack.c.0.s8 %v1848
        %v1850 = vlaneseq
        %v1851 = vshrl.u32 %v1850, 7
        %v1852 = vsub.s32 %v1849, %v1851
        %v1853 = vrot.slane %v1839, %v1852
        %v1854 = vcombine.low %v1789, %v1805
        %v1855 = vcombine.high %v1789, %v1805
        %v1857 = vunpack.c.l.s4 1934713408
        %v1858 = vunpack.c.0.s8 %v1857
        %v1859 = vlaneseq
        %v1860 = vshrl.u32 %v1859, 7
        %v1861 = vsub.s32 %v1858, %v1860
        %v1862 = vrot.slane %v1854, %v1861
        %v1864 = vunpack.c.l.s4 1934713408
        %v1865 = vunpack.c.0.s8 %v1864
        %v1866 = vlaneseq
        %v1867 = vshrl.u32 %v1866, 7
        %v1868 = vsub.s32 %v1865, %v1867
        %v1869 = vrot.slane %v1855, %v1868
        %v1870 = vcombine.low %v1814, %v1830
        %v1871 = vcombine.high %v1814, %v1830
        %v1873 = vunpack.c.l.s4 1934713408
        %v1874 = vunpack.c.0.s8 %v1873
        %v1875 = vlaneseq
        %v1876 = vshrl.u32 %v1875, 7
        %v1877 = vsub.s32 %v1874, %v1876
        %v1878 = vrot.slane %v1870, %v1877
        %v1880 = vunpack.c.l.s4 1934713408
        %v1881 = vunpack.c.0.s8 %v1880
        %v1882 = vlaneseq
        %v1883 = vshrl.u32 %v1882, 7
        %v1884 = vsub.s32 %v1881, %v1883
        %v1885 = vrot.slane %v1871, %v1884
        %v1886 = vcombine.low %v1821, %v1837
        %v1887 = vcombine.high %v1821, %v1837
        %v1889 = vunpack.c.l.s4 1934713408
        %v1890 = vunpack.c.0.s8 %v1889
        %v1891 = vlaneseq
        %v1892 = vshrl.u32 %v1891, 7
        %v1893 = vsub.s32 %v1890, %v1892
        %v1894 = vrot.slane %v1886, %v1893
        %v1896 = vunpack.c.l.s4 1934713408
        %v1897 = vunpack.c.0.s8 %v1896
        %v1898 = vlaneseq
        %v1899 = vshrl.u32 %v1898, 7
        %v1900 = vsub.s32 %v1897, %v1899
        %v1901 = vrot.slane %v1887, %v1900
        %v1902 = vcombine.low %v1846, %v1878
        %v1903 = vcombine.high %v1846, %v1878
        %v1904 = vcombine.low %v1853, %v1885
        %v1905 = vcombine.high %v1853, %v1885
        %v1906 = vcombine.low %v1862, %v1894
        %v1907 = vcombine.high %v1862, %v1894
        %v1908 = vcombine.low %v1869, %v1901
        %v1909 = vcombine.high %v1869, %v1901
        %v1910 = vcombine.low %v1766, %v1768
        %v1911 = vcombine.high %v1766, %v1768
        %v1913 = vunpack.c.l.s4 1983009808
        %v1914 = vunpack.c.0.s8 %v1913
        %v1915 = vlaneseq
        %v1916 = vshrl.u32 %v1915, 7
        %v1917 = vsub.s32 %v1914, %v1916
        %v1918 = vrot.slane %v1910, %v1917
        %v1920 = vunpack.c.l.s4 1983009808
        %v1921 = vunpack.c.0.s8 %v1920
        %v1922 = vlaneseq
        %v1923 = vshrl.u32 %v1922, 7
        %v1924 = vsub.s32 %v1921, %v1923
        %v1925 = vrot.slane %v1911, %v1924
        %v1926 = vcombine.low %v1767, %v1769
        %v1927 = vcombine.high %v1767, %v1769
        %v1929 = vunpack.c.l.s4 1983009808
        %v1930 = vunpack.c.0.s8 %v1929
        %v1931 = vlaneseq
        %v1932 = vshrl.u32 %v1931, 7
        %v1933 = vsub.s32 %v1930, %v1932
        %v1934 = vrot.slane %v1926, %v1933
        %v1936 = vunpack.c.l.s4 1983009808
        %v1937 = vunpack.c.0.s8 %v1936
        %v1938 = vlaneseq
        %v1939 = vshrl.u32 %v1938, 7
        %v1940 = vsub.s32 %v1937, %v1939
        %v1941 = vrot.slane %v1927, %v1940
        %v1942 = vcombine.low %v1770, %v1772
        %v1943 = vcombine.high %v1770, %v1772
        %v1945 = vunpack.c.l.s4 1983009808
        %v1946 = vunpack.c.0.s8 %v1945
        %v1947 = vlaneseq
        %v1948 = vshrl.u32 %v1947, 7
        %v1949 = vsub.s32 %v1946, %v1948
        %v1950 = vrot.slane %v1942, %v1949
        %v1952 = vunpack.c.l.s4 1983009808
        %v1953 = vunpack.c.0.s8 %v1952
        %v1954 = vlaneseq
        %v1955 = vshrl.u32 %v1954, 7
        %v1956 = vsub.s32 %v1953, %v1955
        %v1957 = vrot.slane %v1943, %v1956
        %v1958 = vcombine.low %v1771, %v1773
        %v1959 = vcombine.high %v1771, %v1773
        %v1961 = vunpack.c.l.s4 1983009808
        %v1962 = vunpack.c.0.s8 %v1961
        %v1963 = vlaneseq
        %v1964 = vshrl.u32 %v1963, 7
        %v1965 = vsub.s32 %v1962, %v1964
        %v1966 = vrot.slane %v1958, %v1965
        %v1968 = vunpack.c.l.s4 1983009808
        %v1969 = vunpack.c.0.s8 %v1968
        %v1970 = vlaneseq
        %v1971 = vshrl.u32 %v1970, 7
        %v1972 = vsub.s32 %v1969, %v1971
        %v1973 = vrot.slane %v1959, %v1972
        %v1974 = vcombine.low %v1918, %v1934
        %v1975 = vcombine.high %v1918, %v1934
        %v1977 = vunpack.c.l.s4 1934713408
        %v1978 = vunpack.c.0.s8 %v1977
        %v1979 = vlaneseq
        %v1980 = vshrl.u32 %v1979, 7
        %v1981 = vsub.s32 %v1978, %v1980
        %v1982 = vrot.slane %v1974, %v1981
        %v1984 = vunpack.c.l.s4 1934713408
        %v1985 = vunpack.c.0.s8 %v1984
        %v1986 = vlaneseq
        %v1987 = vshrl.u32 %v1986, 7
        %v1988 = vsub.s32 %v1985, %v1987
        %v1989 = vrot.slane %v1975, %v1988
        %v1990 = vcombine.low %v1925, %v1941
        %v1991 = vcombine.high %v1925, %v1941
        %v1993 = vunpack.c.l.s4 1934713408
        %v1994 = vunpack.c.0.s8 %v1993
        %v1995 = vlaneseq
        %v1996 = vshrl.u32 %v1995, 7
        %v1997 = vsub.s32 %v1994, %v1996
        %v1998 = vrot.slane %v1990, %v1997
        %v2000 = vunpack.c.l.s4 1934713408
        %v2001 = vunpack.c.0.s8 %v2000
        %v2002 = vlaneseq
        %v2003 = vshrl.u32 %v2002, 7
        %v2004 = vsub.s32 %v2001, %v2003
        %v2005 = vrot.slane %v1991, %v2004
        %v2006 = vcombine.low %v1950, %v1966
        %v2007 = vcombine.high %v1950, %v1966
        %v2009 = vunpack.c.l.s4 1934713408
        %v2010 = vunpack.c.0.s8 %v2009
        %v2011 = vlaneseq
        %v2012 = vshrl.u32 %v2011, 7
        %v2013 = vsub.s32 %v2010, %v2012
        %v2014 = vrot.slane %v2006, %v2013
        %v2016 = vunpack.c.l.s4 1934713408
        %v2017 = vunpack.c.0.s8 %v2016
        %v2018 = vlaneseq
        %v2019 = vshrl.u32 %v2018, 7
        %v2020 = vsub.s32 %v2017, %v2019
        %v2021 = vrot.slane %v2007, %v2020
        %v2022 = vcombine.low %v1957, %v1973
        %v2023 = vcombine.high %v1957, %v1973
        %v2025 = vunpack.c.l.s4 1934713408
        %v2026 = vunpack.c.0.s8 %v2025
        %v2027 = vlaneseq
        %v2028 = vshrl.u32 %v2027, 7
        %v2029 = vsub.s32 %v2026, %v2028
        %v2030 = vrot.slane %v2022, %v2029
        %v2032 = vunpack.c.l.s4 1934713408
        %v2033 = vunpack.c.0.s8 %v2032
        %v2034 = vlaneseq
        %v2035 = vshrl.u32 %v2034, 7
        %v2036 = vsub.s32 %v2033, %v2035
        %v2037 = vrot.slane %v2023, %v2036
        %v2038 = vcombine.low %v1982, %v2014
        %v2039 = vcombine.high %v1982, %v2014
        %v2040 = vcombine.low %v1989, %v2021
        %v2041 = vcombine.high %v1989, %v2021
        %v2042 = vcombine.low %v1998, %v2030
        %v2043 = vcombine.high %v1998, %v2030
        %v2044 = vcombine.low %v2005, %v2037
        %v2045 = vcombine.high %v2005, %v2037
        %v2046 = vcombine.low %v1902, %v1904
        %v2047 = vcombine.high %v1902, %v1904
        %v2049 = vunpack.c.l.s4 1983009808
        %v2050 = vunpack.c.0.s8 %v2049
        %v2051 = vlaneseq
        %v2052 = vshrl.u32 %v2051, 7
        %v2053 = vsub.s32 %v2050, %v2052
        %v2054 = vrot.slane %v2046, %v2053
        %v2056 = vunpack.c.l.s4 1983009808
        %v2057 = vunpack.c.0.s8 %v2056
        %v2058 = vlaneseq
        %v2059 = vshrl.u32 %v2058, 7
        %v2060 = vsub.s32 %v2057, %v2059
        %v2061 = vrot.slane %v2047, %v2060
        %v2062 = vcombine.low %v1903, %v1905
        %v2063 = vcombine.high %v1903, %v1905
        %v2065 = vunpack.c.l.s4 1983009808
        %v2066 = vunpack.c.0.s8 %v2065
        %v2067 = vlaneseq
        %v2068 = vshrl.u32 %v2067, 7
        %v2069 = vsub.s32 %v2066, %v2068
        %v2070 = vrot.slane %v2062, %v2069
        %v2072 = vunpack.c.l.s4 1983009808
        %v2073 = vunpack.c.0.s8 %v2072
        %v2074 = vlaneseq
        %v2075 = vshrl.u32 %v2074, 7
        %v2076 = vsub.s32 %v2073, %v2075
        %v2077 = vrot.slane %v2063, %v2076
        %v2078 = vcombine.low %v1906, %v1908
        %v2079 = vcombine.high %v1906, %v1908
        %v2081 = vunpack.c.l.s4 1983009808
        %v2082 = vunpack.c.0.s8 %v2081
        %v2083 = vlaneseq
        %v2084 = vshrl.u32 %v2083, 7
        %v2085 = vsub.s32 %v2082, %v2084
        %v2086 = vrot.slane %v2078, %v2085
        %v2088 = vunpack.c.l.s4 1983009808
        %v2089 = vunpack.c.0.s8 %v2088
        %v2090 = vlaneseq
        %v2091 = vshrl.u32 %v2090, 7
        %v2092 = vsub.s32 %v2089, %v2091
        %v2093 = vrot.slane %v2079, %v2092
        %v2094 = vcombine.low %v1907, %v1909
        %v2095 = vcombine.high %v1907, %v1909
        %v2097 = vunpack.c.l.s4 1983009808
        %v2098 = vunpack.c.0.s8 %v2097
        %v2099 = vlaneseq
        %v2100 = vshrl.u32 %v2099, 7
        %v2101 = vsub.s32 %v2098, %v2100
        %v2102 = vrot.slane %v2094, %v2101
        %v2104 = vunpack.c.l.s4 1983009808
        %v2105 = vunpack.c.0.s8 %v2104
        %v2106 = vlaneseq
        %v2107 = vshrl.u32 %v2106, 7
        %v2108 = vsub.s32 %v2105, %v2107
        %v2109 = vrot.slane %v2095, %v2108
        %v2110 = vcombine.low %v2054, %v2070
        %v2111 = vcombine.high %v2054, %v2070
        %v2113 = vunpack.c.l.s4 1934713408
        %v2114 = vunpack.c.0.s8 %v2113
        %v2115 = vlaneseq
        %v2116 = vshrl.u32 %v2115, 7
        %v2117 = vsub.s32 %v2114, %v2116
        %v2118 = vrot.slane %v2110, %v2117
        %v2120 = vunpack.c.l.s4 1934713408
        %v2121 = vunpack.c.0.s8 %v2120
        %v2122 = vlaneseq
        %v2123 = vshrl.u32 %v2122, 7
        %v2124 = vsub.s32 %v2121, %v2123
        %v2125 = vrot.slane %v2111, %v2124
        %v2126 = vcombine.low %v2061, %v2077
        %v2127 = vcombine.high %v2061, %v2077
        %v2129 = vunpack.c.l.s4 1934713408
        %v2130 = vunpack.c.0.s8 %v2129
        %v2131 = vlaneseq
        %v2132 = vshrl.u32 %v2131, 7
        %v2133 = vsub.s32 %v2130, %v2132
        %v2134 = vrot.slane %v2126, %v2133
        %v2136 = vunpack.c.l.s4 1934713408
        %v2137 = vunpack.c.0.s8 %v2136
        %v2138 = vlaneseq
        %v2139 = vshrl.u32 %v2138, 7
        %v2140 = vsub.s32 %v2137, %v2139
        %v2141 = vrot.slane %v2127, %v2140
        %v2142 = vcombine.low %v2086, %v2102
        %v2143 = vcombine.high %v2086, %v2102
        %v2145 = vunpack.c.l.s4 1934713408
        %v2146 = vunpack.c.0.s8 %v2145
        %v2147 = vlaneseq
        %v2148 = vshrl.u32 %v2147, 7
        %v2149 = vsub.s32 %v2146, %v2148
        %v2150 = vrot.slane %v2142, %v2149
        %v2152 = vunpack.c.l.s4 1934713408
        %v2153 = vunpack.c.0.s8 %v2152
        %v2154 = vlaneseq
        %v2155 = vshrl.u32 %v2154, 7
        %v2156 = vsub.s32 %v2153, %v2155
        %v2157 = vrot.slane %v2143, %v2156
        %v2158 = vcombine.low %v2093, %v2109
        %v2159 = vcombine.high %v2093, %v2109
        %v2161 = vunpack.c.l.s4 1934713408
        %v2162 = vunpack.c.0.s8 %v2161
        %v2163 = vlaneseq
        %v2164 = vshrl.u32 %v2163, 7
        %v2165 = vsub.s32 %v2162, %v2164
        %v2166 = vrot.slane %v2158, %v2165
        %v2168 = vunpack.c.l.s4 1934713408
        %v2169 = vunpack.c.0.s8 %v2168
        %v2170 = vlaneseq
        %v2171 = vshrl.u32 %v2170, 7
        %v2172 = vsub.s32 %v2169, %v2171
        %v2173 = vrot.slane %v2159, %v2172
        %v2174 = vcombine.low %v2118, %v2150
        %v2175 = vcombine.high %v2118, %v2150
        %v2176 = vcombine.low %v2125, %v2157
        %v2177 = vcombine.high %v2125, %v2157
        %v2178 = vcombine.low %v2134, %v2166
        %v2179 = vcombine.high %v2134, %v2166
        %v2180 = vcombine.low %v2141, %v2173
        %v2181 = vcombine.high %v2141, %v2173
        %v2182 = vpack.c.bf16 %v2174, %v2038
        %v2183 = vpack.c.bf16 %v2175, %v2039
        %v2184 = vpack.c.bf16 %v2176, %v2040
        %v2185 = vpack.c.bf16 %v2177, %v2041
        %v2186 = vpack.c.bf16 %v2178, %v2042
        %v2187 = vpack.c.bf16 %v2179, %v2043
        %v2188 = vpack.c.bf16 %v2180, %v2044
        %v2189 = vpack.c.bf16 %v2181, %v2045
        %vm2190 = vcmask 130048
        %v2192 = vsel %vm2190, %v990, 0
        %v2195 = vsel %vm2190, %v1586, 0
        %2197 = vmatprep.subr.bf16.mxu0 0
        %2198 = vmatpush1.bf16.xpose.msra.mxu0 %v2195
        %2199 = vmatprep.subr.bf16.mxu0 0
        %2200 = vmatpush1.bf16.xpose.msra.mxu0 0
        %2201 = vmatprep.subr.bf16.mxu0 0
        %2202 = vmatpush1.bf16.xpose.msra.mxu0 0
        %2203 = vmatprep.subr.bf16.mxu0 0
        %2204 = vmatpush1.bf16.xpose.msra.mxu0 0
        %2205 = vmatprep.subr.bf16.mxu0 0
        %2206 = vmatpush1.bf16.xpose.msra.mxu0 0
        %2207 = vmatprep.subr.bf16.mxu0 0
        %2208 = vmatpush1.bf16.xpose.msra.mxu0 0
        %2209 = vmatprep.subr.bf16.mxu0 0
        %2210 = vmatpush1.bf16.xpose.msra.mxu0 0
        %2211 = vmatprep.subr.bf16.mxu0 0
        %2212 = vmatpush1.bf16.xpose.msra.mxu0 0
        %2213 = vmatprep.subr.bf16.mxu0 0
        %2214 = vmatpush1.bf16.xpose.msra.mxu0 0
        %2215 = vmatprep.subr.bf16.mxu0 0
        %2216 = vmatpush1.bf16.xpose.msra.mxu0 0
        %2217 = vmatprep.subr.bf16.mxu0 0
        %2218 = vmatpush1.bf16.xpose.msra.mxu0 0
        %2219 = vmatprep.subr.bf16.mxu0 0
        %2220 = vmatpush1.bf16.xpose.msra.mxu0 0
        %2221 = vmatprep.subr.bf16.mxu0 0
        %2222 = vmatpush1.bf16.xpose.msra.mxu0 0
        %2223 = vmatprep.subr.bf16.mxu0 0
        %2224 = vmatpush1.bf16.xpose.msra.mxu0 0
        %2225 = vmatprep.subr.bf16.mxu0 0
        %2226 = vmatpush1.bf16.xpose.msra.mxu0 0
        %2227 = vmatprep.subr.bf16.mxu0 0
        %2228 = vmatpush1.bf16.xpose.msra.mxu0 0
        %2229 = vmatprep.mubr.bf16.mxu0 0
        %2230 = vmatmul.mubr.bf16.gmra.mrb[0].mxu0 %v2192
        %v2231 = vpop.f32.mrb[0].mxu0
        %v2232 = vadd.f32 0.0, %v2231
        %v2233 = vpop.f32.mrb[0].mxu0
        %v2234 = vpop.f32.mrb[0].mxu0
        %v2235 = vpop.f32.mrb[0].mxu0
        %2236 = vdwg.mxu0
        %v2238 = vsel %vm2190, %v991, 0
        %v2241 = vsel %vm2190, %v1587, 0
        %2243 = vmatprep.subr.bf16.mxu0 0
        %2244 = vmatpush1.bf16.xpose.msra.mxu0 %v2241
        %2245 = vmatprep.subr.bf16.mxu0 0
        %2246 = vmatpush1.bf16.xpose.msra.mxu0 0
        %2247 = vmatprep.subr.bf16.mxu0 0
        %2248 = vmatpush1.bf16.xpose.msra.mxu0 0
        %2249 = vmatprep.subr.bf16.mxu0 0
        %2250 = vmatpush1.bf16.xpose.msra.mxu0 0
        %2251 = vmatprep.subr.bf16.mxu0 0
        %2252 = vmatpush1.bf16.xpose.msra.mxu0 0
        %2253 = vmatprep.subr.bf16.mxu0 0
        %2254 = vmatpush1.bf16.xpose.msra.mxu0 0
        %2255 = vmatprep.subr.bf16.mxu0 0
        %2256 = vmatpush1.bf16.xpose.msra.mxu0 0
        %2257 = vmatprep.subr.bf16.mxu0 0
        %2258 = vmatpush1.bf16.xpose.msra.mxu0 0
        %2259 = vmatprep.subr.bf16.mxu0 0
        %2260 = vmatpush1.bf16.xpose.msra.mxu0 0
        %2261 = vmatprep.subr.bf16.mxu0 0
        %2262 = vmatpush1.bf16.xpose.msra.mxu0 0
        %2263 = vmatprep.subr.bf16.mxu0 0
        %2264 = vmatpush1.bf16.xpose.msra.mxu0 0
        %2265 = vmatprep.subr.bf16.mxu0 0
        %2266 = vmatpush1.bf16.xpose.msra.mxu0 0
        %2267 = vmatprep.subr.bf16.mxu0 0
        %2268 = vmatpush1.bf16.xpose.msra.mxu0 0
        %2269 = vmatprep.subr.bf16.mxu0 0
        %2270 = vmatpush1.bf16.xpose.msra.mxu0 0
        %2271 = vmatprep.subr.bf16.mxu0 0
        %2272 = vmatpush1.bf16.xpose.msra.mxu0 0
        %2273 = vmatprep.subr.bf16.mxu0 0
        %2274 = vmatpush1.bf16.xpose.msra.mxu0 0
        %2275 = vmatprep.mubr.bf16.mxu0 0
        %2276 = vmatmul.mubr.bf16.gmra.mrb[0].mxu0 %v2238
        %v2277 = vpop.f32.mrb[0].mxu0
        %v2278 = vadd.f32 0.0, %v2277
        %v2279 = vpop.f32.mrb[0].mxu0
        %v2280 = vpop.f32.mrb[0].mxu0
        %v2281 = vpop.f32.mrb[0].mxu0
        %2282 = vdwg.mxu0
        %v2284 = vsel %vm2190, %v992, 0
        %v2287 = vsel %vm2190, %v1588, 0
        %2289 = vmatprep.subr.bf16.mxu0 0
        %2290 = vmatpush1.bf16.xpose.msra.mxu0 %v2287
        %2291 = vmatprep.subr.bf16.mxu0 0
        %2292 = vmatpush1.bf16.xpose.msra.mxu0 0
        %2293 = vmatprep.subr.bf16.mxu0 0
        %2294 = vmatpush1.bf16.xpose.msra.mxu0 0
        %2295 = vmatprep.subr.bf16.mxu0 0
        %2296 = vmatpush1.bf16.xpose.msra.mxu0 0
        %2297 = vmatprep.subr.bf16.mxu0 0
        %2298 = vmatpush1.bf16.xpose.msra.mxu0 0
        %2299 = vmatprep.subr.bf16.mxu0 0
        %2300 = vmatpush1.bf16.xpose.msra.mxu0 0
        %2301 = vmatprep.subr.bf16.mxu0 0
        %2302 = vmatpush1.bf16.xpose.msra.mxu0 0
        %2303 = vmatprep.subr.bf16.mxu0 0
        %2304 = vmatpush1.bf16.xpose.msra.mxu0 0
        %2305 = vmatprep.subr.bf16.mxu0 0
        %2306 = vmatpush1.bf16.xpose.msra.mxu0 0
        %2307 = vmatprep.subr.bf16.mxu0 0
        %2308 = vmatpush1.bf16.xpose.msra.mxu0 0
        %2309 = vmatprep.subr.bf16.mxu0 0
        %2310 = vmatpush1.bf16.xpose.msra.mxu0 0
        %2311 = vmatprep.subr.bf16.mxu0 0
        %2312 = vmatpush1.bf16.xpose.msra.mxu0 0
        %2313 = vmatprep.subr.bf16.mxu0 0
        %2314 = vmatpush1.bf16.xpose.msra.mxu0 0
        %2315 = vmatprep.subr.bf16.mxu0 0
        %2316 = vmatpush1.bf16.xpose.msra.mxu0 0
        %2317 = vmatprep.subr.bf16.mxu0 0
        %2318 = vmatpush1.bf16.xpose.msra.mxu0 0
        %2319 = vmatprep.subr.bf16.mxu0 0
        %2320 = vmatpush1.bf16.xpose.msra.mxu0 0
        %2321 = vmatprep.mubr.bf16.mxu0 0
        %2322 = vmatmul.mubr.bf16.gmra.mrb[0].mxu0 %v2284
        %v2323 = vpop.f32.mrb[0].mxu0
        %v2324 = vadd.f32 0.0, %v2323
        %v2325 = vpop.f32.mrb[0].mxu0
        %v2326 = vpop.f32.mrb[0].mxu0
        %v2327 = vpop.f32.mrb[0].mxu0
        %2328 = vdwg.mxu0
        %v2330 = vsel %vm2190, %v993, 0
        %v2333 = vsel %vm2190, %v1589, 0
        %2335 = vmatprep.subr.bf16.mxu0 0
        %2336 = vmatpush1.bf16.xpose.msra.mxu0 %v2333
        %2337 = vmatprep.subr.bf16.mxu0 0
        %2338 = vmatpush1.bf16.xpose.msra.mxu0 0
        %2339 = vmatprep.subr.bf16.mxu0 0
        %2340 = vmatpush1.bf16.xpose.msra.mxu0 0
        %2341 = vmatprep.subr.bf16.mxu0 0
        %2342 = vmatpush1.bf16.xpose.msra.mxu0 0
        %2343 = vmatprep.subr.bf16.mxu0 0
        %2344 = vmatpush1.bf16.xpose.msra.mxu0 0
        %2345 = vmatprep.subr.bf16.mxu0 0
        %2346 = vmatpush1.bf16.xpose.msra.mxu0 0
        %2347 = vmatprep.subr.bf16.mxu0 0
        %2348 = vmatpush1.bf16.xpose.msra.mxu0 0
        %2349 = vmatprep.subr.bf16.mxu0 0
        %2350 = vmatpush1.bf16.xpose.msra.mxu0 0
        %2351 = vmatprep.subr.bf16.mxu0 0
        %2352 = vmatpush1.bf16.xpose.msra.mxu0 0
        %2353 = vmatprep.subr.bf16.mxu0 0
        %2354 = vmatpush1.bf16.xpose.msra.mxu0 0
        %2355 = vmatprep.subr.bf16.mxu0 0
        %2356 = vmatpush1.bf16.xpose.msra.mxu0 0
        %2357 = vmatprep.subr.bf16.mxu0 0
        %2358 = vmatpush1.bf16.xpose.msra.mxu0 0
        %2359 = vmatprep.subr.bf16.mxu0 0
        %2360 = vmatpush1.bf16.xpose.msra.mxu0 0
        %2361 = vmatprep.subr.bf16.mxu0 0
        %2362 = vmatpush1.bf16.xpose.msra.mxu0 0
        %2363 = vmatprep.subr.bf16.mxu0 0
        %2364 = vmatpush1.bf16.xpose.msra.mxu0 0
        %2365 = vmatprep.subr.bf16.mxu0 0
        %2366 = vmatpush1.bf16.xpose.msra.mxu0 0
        %2367 = vmatprep.mubr.bf16.mxu0 0
        %2368 = vmatmul.mubr.bf16.gmra.mrb[0].mxu0 %v2330
        %v2369 = vpop.f32.mrb[0].mxu0
        %v2370 = vadd.f32 0.0, %v2369
        %v2371 = vpop.f32.mrb[0].mxu0
        %v2372 = vpop.f32.mrb[0].mxu0
        %v2373 = vpop.f32.mrb[0].mxu0
        %2374 = vdwg.mxu0
        %v2376 = vsel %vm2190, %v994, 0
        %v2379 = vsel %vm2190, %v1590, 0
        %2381 = vmatprep.subr.bf16.mxu0 0
        %2382 = vmatpush1.bf16.xpose.msra.mxu0 %v2379
        %2383 = vmatprep.subr.bf16.mxu0 0
        %2384 = vmatpush1.bf16.xpose.msra.mxu0 0
        %2385 = vmatprep.subr.bf16.mxu0 0
        %2386 = vmatpush1.bf16.xpose.msra.mxu0 0
        %2387 = vmatprep.subr.bf16.mxu0 0
        %2388 = vmatpush1.bf16.xpose.msra.mxu0 0
        %2389 = vmatprep.subr.bf16.mxu0 0
        %2390 = vmatpush1.bf16.xpose.msra.mxu0 0
        %2391 = vmatprep.subr.bf16.mxu0 0
        %2392 = vmatpush1.bf16.xpose.msra.mxu0 0
        %2393 = vmatprep.subr.bf16.mxu0 0
        %2394 = vmatpush1.bf16.xpose.msra.mxu0 0
        %2395 = vmatprep.subr.bf16.mxu0 0
        %2396 = vmatpush1.bf16.xpose.msra.mxu0 0
        %2397 = vmatprep.subr.bf16.mxu0 0
        %2398 = vmatpush1.bf16.xpose.msra.mxu0 0
        %2399 = vmatprep.subr.bf16.mxu0 0
        %2400 = vmatpush1.bf16.xpose.msra.mxu0 0
        %2401 = vmatprep.subr.bf16.mxu0 0
        %2402 = vmatpush1.bf16.xpose.msra.mxu0 0
        %2403 = vmatprep.subr.bf16.mxu0 0
        %2404 = vmatpush1.bf16.xpose.msra.mxu0 0
        %2405 = vmatprep.subr.bf16.mxu0 0
        %2406 = vmatpush1.bf16.xpose.msra.mxu0 0
        %2407 = vmatprep.subr.bf16.mxu0 0
        %2408 = vmatpush1.bf16.xpose.msra.mxu0 0
        %2409 = vmatprep.subr.bf16.mxu0 0
        %2410 = vmatpush1.bf16.xpose.msra.mxu0 0
        %2411 = vmatprep.subr.bf16.mxu0 0
        %2412 = vmatpush1.bf16.xpose.msra.mxu0 0
        %2413 = vmatprep.mubr.bf16.mxu0 0
        %2414 = vmatmul.mubr.bf16.gmra.mrb[0].mxu0 %v2376
        %v2415 = vpop.f32.mrb[0].mxu0
        %v2416 = vadd.f32 0.0, %v2415
        %v2417 = vpop.f32.mrb[0].mxu0
        %v2418 = vpop.f32.mrb[0].mxu0
        %v2419 = vpop.f32.mrb[0].mxu0
        %2420 = vdwg.mxu0
        %v2422 = vsel %vm2190, %v995, 0
        %v2425 = vsel %vm2190, %v1591, 0
        %2427 = vmatprep.subr.bf16.mxu0 0
        %2428 = vmatpush1.bf16.xpose.msra.mxu0 %v2425
        %2429 = vmatprep.subr.bf16.mxu0 0
        %2430 = vmatpush1.bf16.xpose.msra.mxu0 0
        %2431 = vmatprep.subr.bf16.mxu0 0
        %2432 = vmatpush1.bf16.xpose.msra.mxu0 0
        %2433 = vmatprep.subr.bf16.mxu0 0
        %2434 = vmatpush1.bf16.xpose.msra.mxu0 0
        %2435 = vmatprep.subr.bf16.mxu0 0
        %2436 = vmatpush1.bf16.xpose.msra.mxu0 0
        %2437 = vmatprep.subr.bf16.mxu0 0
        %2438 = vmatpush1.bf16.xpose.msra.mxu0 0
        %2439 = vmatprep.subr.bf16.mxu0 0
        %2440 = vmatpush1.bf16.xpose.msra.mxu0 0
        %2441 = vmatprep.subr.bf16.mxu0 0
        %2442 = vmatpush1.bf16.xpose.msra.mxu0 0
        %2443 = vmatprep.subr.bf16.mxu0 0
        %2444 = vmatpush1.bf16.xpose.msra.mxu0 0
        %2445 = vmatprep.subr.bf16.mxu0 0
        %2446 = vmatpush1.bf16.xpose.msra.mxu0 0
        %2447 = vmatprep.subr.bf16.mxu0 0
        %2448 = vmatpush1.bf16.xpose.msra.mxu0 0
        %2449 = vmatprep.subr.bf16.mxu0 0
        %2450 = vmatpush1.bf16.xpose.msra.mxu0 0
        %2451 = vmatprep.subr.bf16.mxu0 0
        %2452 = vmatpush1.bf16.xpose.msra.mxu0 0
        %2453 = vmatprep.subr.bf16.mxu0 0
        %2454 = vmatpush1.bf16.xpose.msra.mxu0 0
        %2455 = vmatprep.subr.bf16.mxu0 0
        %2456 = vmatpush1.bf16.xpose.msra.mxu0 0
        %2457 = vmatprep.subr.bf16.mxu0 0
        %2458 = vmatpush1.bf16.xpose.msra.mxu0 0
        %2459 = vmatprep.mubr.bf16.mxu0 0
        %2460 = vmatmul.mubr.bf16.gmra.mrb[0].mxu0 %v2422
        %v2461 = vpop.f32.mrb[0].mxu0
        %v2462 = vadd.f32 0.0, %v2461
        %v2463 = vpop.f32.mrb[0].mxu0
        %v2464 = vpop.f32.mrb[0].mxu0
        %v2465 = vpop.f32.mrb[0].mxu0
        %2466 = vdwg.mxu0
        %v2468 = vsel %vm2190, %v996, 0
        %v2471 = vsel %vm2190, %v1592, 0
        %2473 = vmatprep.subr.bf16.mxu0 0
        %2474 = vmatpush1.bf16.xpose.msra.mxu0 %v2471
        %2475 = vmatprep.subr.bf16.mxu0 0
        %2476 = vmatpush1.bf16.xpose.msra.mxu0 0
        %2477 = vmatprep.subr.bf16.mxu0 0
        %2478 = vmatpush1.bf16.xpose.msra.mxu0 0
        %2479 = vmatprep.subr.bf16.mxu0 0
        %2480 = vmatpush1.bf16.xpose.msra.mxu0 0
        %2481 = vmatprep.subr.bf16.mxu0 0
        %2482 = vmatpush1.bf16.xpose.msra.mxu0 0
        %2483 = vmatprep.subr.bf16.mxu0 0
        %2484 = vmatpush1.bf16.xpose.msra.mxu0 0
        %2485 = vmatprep.subr.bf16.mxu0 0
        %2486 = vmatpush1.bf16.xpose.msra.mxu0 0
        %2487 = vmatprep.subr.bf16.mxu0 0
        %2488 = vmatpush1.bf16.xpose.msra.mxu0 0
        %2489 = vmatprep.subr.bf16.mxu0 0
        %2490 = vmatpush1.bf16.xpose.msra.mxu0 0
        %2491 = vmatprep.subr.bf16.mxu0 0
        %2492 = vmatpush1.bf16.xpose.msra.mxu0 0
        %2493 = vmatprep.subr.bf16.mxu0 0
        %2494 = vmatpush1.bf16.xpose.msra.mxu0 0
        %2495 = vmatprep.subr.bf16.mxu0 0
        %2496 = vmatpush1.bf16.xpose.msra.mxu0 0
        %2497 = vmatprep.subr.bf16.mxu0 0
        %2498 = vmatpush1.bf16.xpose.msra.mxu0 0
        %2499 = vmatprep.subr.bf16.mxu0 0
        %2500 = vmatpush1.bf16.xpose.msra.mxu0 0
        %2501 = vmatprep.subr.bf16.mxu0 0
        %2502 = vmatpush1.bf16.xpose.msra.mxu0 0
        %2503 = vmatprep.subr.bf16.mxu0 0
        %2504 = vmatpush1.bf16.xpose.msra.mxu0 0
        %2505 = vmatprep.mubr.bf16.mxu0 0
        %2506 = vmatmul.mubr.bf16.gmra.mrb[0].mxu0 %v2468
        %v2507 = vpop.f32.mrb[0].mxu0
        %v2508 = vadd.f32 0.0, %v2507
        %v2509 = vpop.f32.mrb[0].mxu0
        %v2510 = vpop.f32.mrb[0].mxu0
        %v2511 = vpop.f32.mrb[0].mxu0
        %2512 = vdwg.mxu0
        %v2514 = vsel %vm2190, %v997, 0
        %v2517 = vsel %vm2190, %v1593, 0
        %2519 = vmatprep.subr.bf16.mxu0 0
        %2520 = vmatpush1.bf16.xpose.msra.mxu0 %v2517
        %2521 = vmatprep.subr.bf16.mxu0 0
        %2522 = vmatpush1.bf16.xpose.msra.mxu0 0
        %2523 = vmatprep.subr.bf16.mxu0 0
        %2524 = vmatpush1.bf16.xpose.msra.mxu0 0
        %2525 = vmatprep.subr.bf16.mxu0 0
        %2526 = vmatpush1.bf16.xpose.msra.mxu0 0
        %2527 = vmatprep.subr.bf16.mxu0 0
        %2528 = vmatpush1.bf16.xpose.msra.mxu0 0
        %2529 = vmatprep.subr.bf16.mxu0 0
        %2530 = vmatpush1.bf16.xpose.msra.mxu0 0
        %2531 = vmatprep.subr.bf16.mxu0 0
        %2532 = vmatpush1.bf16.xpose.msra.mxu0 0
        %2533 = vmatprep.subr.bf16.mxu0 0
        %2534 = vmatpush1.bf16.xpose.msra.mxu0 0
        %2535 = vmatprep.subr.bf16.mxu0 0
        %2536 = vmatpush1.bf16.xpose.msra.mxu0 0
        %2537 = vmatprep.subr.bf16.mxu0 0
        %2538 = vmatpush1.bf16.xpose.msra.mxu0 0
        %2539 = vmatprep.subr.bf16.mxu0 0
        %2540 = vmatpush1.bf16.xpose.msra.mxu0 0
        %2541 = vmatprep.subr.bf16.mxu0 0
        %2542 = vmatpush1.bf16.xpose.msra.mxu0 0
        %2543 = vmatprep.subr.bf16.mxu0 0
        %2544 = vmatpush1.bf16.xpose.msra.mxu0 0
        %2545 = vmatprep.subr.bf16.mxu0 0
        %2546 = vmatpush1.bf16.xpose.msra.mxu0 0
        %2547 = vmatprep.subr.bf16.mxu0 0
        %2548 = vmatpush1.bf16.xpose.msra.mxu0 0
        %2549 = vmatprep.subr.bf16.mxu0 0
        %2550 = vmatpush1.bf16.xpose.msra.mxu0 0
        %2551 = vmatprep.mubr.bf16.mxu0 0
        %2552 = vmatmul.mubr.bf16.gmra.mrb[0].mxu0 %v2514
        %v2553 = vpop.f32.mrb[0].mxu0
        %v2554 = vadd.f32 0.0, %v2553
        %v2555 = vpop.f32.mrb[0].mxu0
        %v2556 = vpop.f32.mrb[0].mxu0
        %v2557 = vpop.f32.mrb[0].mxu0
        %2558 = vdwg.mxu0
        %v2559 = vsel %vm2190, %v2232, -inf
        %2560 = vmax.xlane.f32.xlu0 %v2559
        %v2561 = vpop.xlane.xlu0 %2560
        %v2562 = vsel %vm2190, %v2278, -inf
        %2563 = vmax.xlane.f32.xlu0 %v2562
        %v2564 = vpop.xlane.xlu0 %2563
        %v2565 = vsel %vm2190, %v2324, -inf
        %2566 = vmax.xlane.f32.xlu0 %v2565
        %v2567 = vpop.xlane.xlu0 %2566
        %v2568 = vsel %vm2190, %v2370, -inf
        %2569 = vmax.xlane.f32.xlu0 %v2568
        %v2570 = vpop.xlane.xlu0 %2569
        %v2571 = vsel %vm2190, %v2416, -inf
        %2572 = vmax.xlane.f32.xlu0 %v2571
        %v2573 = vpop.xlane.xlu0 %2572
        %v2574 = vsel %vm2190, %v2462, -inf
        %2575 = vmax.xlane.f32.xlu0 %v2574
        %v2576 = vpop.xlane.xlu0 %2575
        %v2577 = vsel %vm2190, %v2508, -inf
        %2578 = vmax.xlane.f32.xlu0 %v2577
        %v2579 = vpop.xlane.xlu0 %2578
        %v2580 = vsel %vm2190, %v2554, -inf
        %2581 = vmax.xlane.f32.xlu0 %v2580
        %v2582 = vpop.xlane.xlu0 %2581
        %v2583 = vsub.f32 %v2232, %v2561
        %v2584 = vsub.f32 %v2278, %v2564
        %v2585 = vsub.f32 %v2324, %v2567
        %v2586 = vsub.f32 %v2370, %v2570
        %v2587 = vsub.f32 %v2416, %v2573
        %v2588 = vsub.f32 %v2462, %v2576
        %v2589 = vsub.f32 %v2508, %v2579
        %v2590 = vsub.f32 %v2554, %v2582
        %v2591 = vmul.f32 %v2583, 1.442695
        %v2592 = vpow.pop %v2591
        %v2593 = vmul.f32 %v2584, 1.442695
        %v2594 = vpow.pop %v2593
        %v2595 = vmul.f32 %v2585, 1.442695
        %v2596 = vpow.pop %v2595
        %v2597 = vmul.f32 %v2586, 1.442695
        %v2598 = vpow.pop %v2597
        %v2599 = vmul.f32 %v2587, 1.442695
        %v2600 = vpow.pop %v2599
        %v2601 = vmul.f32 %v2588, 1.442695
        %v2602 = vpow.pop %v2601
        %v2603 = vmul.f32 %v2589, 1.442695
        %v2604 = vpow.pop %v2603
        %v2605 = vmul.f32 %v2590, 1.442695
        %v2606 = vpow.pop %v2605
        %v2607 = vsel %vm2190, %v2592, 0.0
        %2608 = vadd.xlane.f32.xlu0 %v2607
        %v2609 = vpop.xlane.xlu0 %2608
        %v2610 = vsel %vm2190, %v2594, 0.0
        %2611 = vadd.xlane.f32.xlu0 %v2610
        %v2612 = vpop.xlane.xlu0 %2611
        %v2613 = vsel %vm2190, %v2596, 0.0
        %2614 = vadd.xlane.f32.xlu0 %v2613
        %v2615 = vpop.xlane.xlu0 %2614
        %v2616 = vsel %vm2190, %v2598, 0.0
        %2617 = vadd.xlane.f32.xlu0 %v2616
        %v2618 = vpop.xlane.xlu0 %2617
        %v2619 = vsel %vm2190, %v2600, 0.0
        %2620 = vadd.xlane.f32.xlu0 %v2619
        %v2621 = vpop.xlane.xlu0 %2620
        %v2622 = vsel %vm2190, %v2602, 0.0
        %2623 = vadd.xlane.f32.xlu0 %v2622
        %v2624 = vpop.xlane.xlu0 %2623
        %v2625 = vsel %vm2190, %v2604, 0.0
        %2626 = vadd.xlane.f32.xlu0 %v2625
        %v2627 = vpop.xlane.xlu0 %2626
        %v2628 = vsel %vm2190, %v2606, 0.0
        %2629 = vadd.xlane.f32.xlu0 %v2628
        %v2630 = vpop.xlane.xlu0 %2629
        %v2631 = vrcp.pop %v2609
        %v2632 = vrcp.pop %v2612
        %v2633 = vrcp.pop %v2615
        %v2634 = vrcp.pop %v2618
        %v2635 = vrcp.pop %v2621
        %v2636 = vrcp.pop %v2624
        %v2637 = vrcp.pop %v2627
        %v2638 = vrcp.pop %v2630
        %v2639 = vmul.f32 %v2592, %v2631
        %v2640 = vmul.f32 %v2594, %v2632
        %v2641 = vmul.f32 %v2596, %v2633
        %v2642 = vmul.f32 %v2598, %v2634
        %v2643 = vmul.f32 %v2600, %v2635
        %v2644 = vmul.f32 %v2602, %v2636
        %v2645 = vmul.f32 %v2604, %v2637
        %v2646 = vmul.f32 %v2606, %v2638
        %v2647 = vpack.c.bf16 %v2639, %v2639
        %v2648 = vpack.c.bf16 %v2640, %v2640
        %v2649 = vpack.c.bf16 %v2641, %v2641
        %v2650 = vpack.c.bf16 %v2642, %v2642
        %v2651 = vpack.c.bf16 %v2643, %v2643
        %v2652 = vpack.c.bf16 %v2644, %v2644
        %v2653 = vpack.c.bf16 %v2645, %v2645
        %v2654 = vpack.c.bf16 %v2646, %v2646
        %v2656 = vsel %vm2190, %v2647, 0
        %2658 = vmatprep.subr.bf16.mxu0 0
        %2659 = vmatpush1.bf16.msra.mxu0 %v2182
        %2660 = vmatprep.subr.bf16.mxu0 0
        %2661 = vmatpush1.bf16.msra.mxu0 0
        %2662 = vmatprep.subr.bf16.mxu0 0
        %2663 = vmatpush1.bf16.msra.mxu0 0
        %2664 = vmatprep.subr.bf16.mxu0 0
        %2665 = vmatpush1.bf16.msra.mxu0 0
        %2666 = vmatprep.subr.bf16.mxu0 0
        %2667 = vmatpush1.bf16.msra.mxu0 0
        %2668 = vmatprep.subr.bf16.mxu0 0
        %2669 = vmatpush1.bf16.msra.mxu0 0
        %2670 = vmatprep.subr.bf16.mxu0 0
        %2671 = vmatpush1.bf16.msra.mxu0 0
        %2672 = vmatprep.subr.bf16.mxu0 0
        %2673 = vmatpush1.bf16.msra.mxu0 0
        %2674 = vmatprep.subr.bf16.mxu0 0
        %2675 = vmatpush1.bf16.msra.mxu0 0
        %2676 = vmatprep.subr.bf16.mxu0 0
        %2677 = vmatpush1.bf16.msra.mxu0 0
        %2678 = vmatprep.subr.bf16.mxu0 0
        %2679 = vmatpush1.bf16.msra.mxu0 0
        %2680 = vmatprep.subr.bf16.mxu0 0
        %2681 = vmatpush1.bf16.msra.mxu0 0
        %2682 = vmatprep.subr.bf16.mxu0 0
        %2683 = vmatpush1.bf16.msra.mxu0 0
        %2684 = vmatprep.subr.bf16.mxu0 0
        %2685 = vmatpush1.bf16.msra.mxu0 0
        %2686 = vmatprep.subr.bf16.mxu0 0
        %2687 = vmatpush1.bf16.msra.mxu0 0
        %2688 = vmatprep.subr.bf16.mxu0 0
        %2689 = vmatpush1.bf16.msra.mxu0 0
        %2690 = vmatprep.mubr.bf16.mxu0 0
        %2691 = vmatmul.mubr.bf16.gmra.mrb[0].mxu0 %v2656
        %v2692 = vpop.f32.mrb[0].mxu0
        %v2693 = vadd.f32 0.0, %v2692
        %v2694 = vpop.f32.mrb[0].mxu0
        %v2695 = vpop.f32.mrb[0].mxu0
        %v2696 = vpop.f32.mrb[0].mxu0
        %2697 = vdwg.mxu0
        %v2699 = vsel %vm2190, %v2648, 0
        %2701 = vmatprep.subr.bf16.mxu0 0
        %2702 = vmatpush1.bf16.msra.mxu0 %v2183
        %2703 = vmatprep.subr.bf16.mxu0 0
        %2704 = vmatpush1.bf16.msra.mxu0 0
        %2705 = vmatprep.subr.bf16.mxu0 0
        %2706 = vmatpush1.bf16.msra.mxu0 0
        %2707 = vmatprep.subr.bf16.mxu0 0
        %2708 = vmatpush1.bf16.msra.mxu0 0
        %2709 = vmatprep.subr.bf16.mxu0 0
        %2710 = vmatpush1.bf16.msra.mxu0 0
        %2711 = vmatprep.subr.bf16.mxu0 0
        %2712 = vmatpush1.bf16.msra.mxu0 0
        %2713 = vmatprep.subr.bf16.mxu0 0
        %2714 = vmatpush1.bf16.msra.mxu0 0
        %2715 = vmatprep.subr.bf16.mxu0 0
        %2716 = vmatpush1.bf16.msra.mxu0 0
        %2717 = vmatprep.subr.bf16.mxu0 0
        %2718 = vmatpush1.bf16.msra.mxu0 0
        %2719 = vmatprep.subr.bf16.mxu0 0
        %2720 = vmatpush1.bf16.msra.mxu0 0
        %2721 = vmatprep.subr.bf16.mxu0 0
        %2722 = vmatpush1.bf16.msra.mxu0 0
        %2723 = vmatprep.subr.bf16.mxu0 0
        %2724 = vmatpush1.bf16.msra.mxu0 0
        %2725 = vmatprep.subr.bf16.mxu0 0
        %2726 = vmatpush1.bf16.msra.mxu0 0
        %2727 = vmatprep.subr.bf16.mxu0 0
        %2728 = vmatpush1.bf16.msra.mxu0 0
        %2729 = vmatprep.subr.bf16.mxu0 0
        %2730 = vmatpush1.bf16.msra.mxu0 0
        %2731 = vmatprep.subr.bf16.mxu0 0
        %2732 = vmatpush1.bf16.msra.mxu0 0
        %2733 = vmatprep.mubr.bf16.mxu0 0
        %2734 = vmatmul.mubr.bf16.gmra.mrb[0].mxu0 %v2699
        %v2735 = vpop.f32.mrb[0].mxu0
        %v2736 = vadd.f32 0.0, %v2735
        %v2737 = vpop.f32.mrb[0].mxu0
        %v2738 = vpop.f32.mrb[0].mxu0
        %v2739 = vpop.f32.mrb[0].mxu0
        %2740 = vdwg.mxu0
        %v2742 = vsel %vm2190, %v2649, 0
        %2744 = vmatprep.subr.bf16.mxu0 0
        %2745 = vmatpush1.bf16.msra.mxu0 %v2184
        %2746 = vmatprep.subr.bf16.mxu0 0
        %2747 = vmatpush1.bf16.msra.mxu0 0
        %2748 = vmatprep.subr.bf16.mxu0 0
        %2749 = vmatpush1.bf16.msra.mxu0 0
        %2750 = vmatprep.subr.bf16.mxu0 0
        %2751 = vmatpush1.bf16.msra.mxu0 0
        %2752 = vmatprep.subr.bf16.mxu0 0
        %2753 = vmatpush1.bf16.msra.mxu0 0
        %2754 = vmatprep.subr.bf16.mxu0 0
        %2755 = vmatpush1.bf16.msra.mxu0 0
        %2756 = vmatprep.subr.bf16.mxu0 0
        %2757 = vmatpush1.bf16.msra.mxu0 0
        %2758 = vmatprep.subr.bf16.mxu0 0
        %2759 = vmatpush1.bf16.msra.mxu0 0
        %2760 = vmatprep.subr.bf16.mxu0 0
        %2761 = vmatpush1.bf16.msra.mxu0 0
        %2762 = vmatprep.subr.bf16.mxu0 0
        %2763 = vmatpush1.bf16.msra.mxu0 0
        %2764 = vmatprep.subr.bf16.mxu0 0
        %2765 = vmatpush1.bf16.msra.mxu0 0
        %2766 = vmatprep.subr.bf16.mxu0 0
        %2767 = vmatpush1.bf16.msra.mxu0 0
        %2768 = vmatprep.subr.bf16.mxu0 0
        %2769 = vmatpush1.bf16.msra.mxu0 0
        %2770 = vmatprep.subr.bf16.mxu0 0
        %2771 = vmatpush1.bf16.msra.mxu0 0
        %2772 = vmatprep.subr.bf16.mxu0 0
        %2773 = vmatpush1.bf16.msra.mxu0 0
        %2774 = vmatprep.subr.bf16.mxu0 0
        %2775 = vmatpush1.bf16.msra.mxu0 0
        %2776 = vmatprep.mubr.bf16.mxu0 0
        %2777 = vmatmul.mubr.bf16.gmra.mrb[0].mxu0 %v2742
        %v2778 = vpop.f32.mrb[0].mxu0
        %v2779 = vadd.f32 0.0, %v2778
        %v2780 = vpop.f32.mrb[0].mxu0
        %v2781 = vpop.f32.mrb[0].mxu0
        %v2782 = vpop.f32.mrb[0].mxu0
        %2783 = vdwg.mxu0
        %v2785 = vsel %vm2190, %v2650, 0
        %2787 = vmatprep.subr.bf16.mxu0 0
        %2788 = vmatpush1.bf16.msra.mxu0 %v2185
        %2789 = vmatprep.subr.bf16.mxu0 0
        %2790 = vmatpush1.bf16.msra.mxu0 0
        %2791 = vmatprep.subr.bf16.mxu0 0
        %2792 = vmatpush1.bf16.msra.mxu0 0
        %2793 = vmatprep.subr.bf16.mxu0 0
        %2794 = vmatpush1.bf16.msra.mxu0 0
        %2795 = vmatprep.subr.bf16.mxu0 0
        %2796 = vmatpush1.bf16.msra.mxu0 0
        %2797 = vmatprep.subr.bf16.mxu0 0
        %2798 = vmatpush1.bf16.msra.mxu0 0
        %2799 = vmatprep.subr.bf16.mxu0 0
        %2800 = vmatpush1.bf16.msra.mxu0 0
        %2801 = vmatprep.subr.bf16.mxu0 0
        %2802 = vmatpush1.bf16.msra.mxu0 0
        %2803 = vmatprep.subr.bf16.mxu0 0
        %2804 = vmatpush1.bf16.msra.mxu0 0
        %2805 = vmatprep.subr.bf16.mxu0 0
        %2806 = vmatpush1.bf16.msra.mxu0 0
        %2807 = vmatprep.subr.bf16.mxu0 0
        %2808 = vmatpush1.bf16.msra.mxu0 0
        %2809 = vmatprep.subr.bf16.mxu0 0
        %2810 = vmatpush1.bf16.msra.mxu0 0
        %2811 = vmatprep.subr.bf16.mxu0 0
        %2812 = vmatpush1.bf16.msra.mxu0 0
        %2813 = vmatprep.subr.bf16.mxu0 0
        %2814 = vmatpush1.bf16.msra.mxu0 0
        %2815 = vmatprep.subr.bf16.mxu0 0
        %2816 = vmatpush1.bf16.msra.mxu0 0
        %2817 = vmatprep.subr.bf16.mxu0 0
        %2818 = vmatpush1.bf16.msra.mxu0 0
        %2819 = vmatprep.mubr.bf16.mxu0 0
        %2820 = vmatmul.mubr.bf16.gmra.mrb[0].mxu0 %v2785
        %v2821 = vpop.f32.mrb[0].mxu0
        %v2822 = vadd.f32 0.0, %v2821
        %v2823 = vpop.f32.mrb[0].mxu0
        %v2824 = vpop.f32.mrb[0].mxu0
        %v2825 = vpop.f32.mrb[0].mxu0
        %2826 = vdwg.mxu0
        %v2828 = vsel %vm2190, %v2651, 0
        %2830 = vmatprep.subr.bf16.mxu0 0
        %2831 = vmatpush1.bf16.msra.mxu0 %v2186
        %2832 = vmatprep.subr.bf16.mxu0 0
        %2833 = vmatpush1.bf16.msra.mxu0 0
        %2834 = vmatprep.subr.bf16.mxu0 0
        %2835 = vmatpush1.bf16.msra.mxu0 0
        %2836 = vmatprep.subr.bf16.mxu0 0
        %2837 = vmatpush1.bf16.msra.mxu0 0
        %2838 = vmatprep.subr.bf16.mxu0 0
        %2839 = vmatpush1.bf16.msra.mxu0 0
        %2840 = vmatprep.subr.bf16.mxu0 0
        %2841 = vmatpush1.bf16.msra.mxu0 0
        %2842 = vmatprep.subr.bf16.mxu0 0
        %2843 = vmatpush1.bf16.msra.mxu0 0
        %2844 = vmatprep.subr.bf16.mxu0 0
        %2845 = vmatpush1.bf16.msra.mxu0 0
        %2846 = vmatprep.subr.bf16.mxu0 0
        %2847 = vmatpush1.bf16.msra.mxu0 0
        %2848 = vmatprep.subr.bf16.mxu0 0
        %2849 = vmatpush1.bf16.msra.mxu0 0
        %2850 = vmatprep.subr.bf16.mxu0 0
        %2851 = vmatpush1.bf16.msra.mxu0 0
        %2852 = vmatprep.subr.bf16.mxu0 0
        %2853 = vmatpush1.bf16.msra.mxu0 0
        %2854 = vmatprep.subr.bf16.mxu0 0
        %2855 = vmatpush1.bf16.msra.mxu0 0
        %2856 = vmatprep.subr.bf16.mxu0 0
        %2857 = vmatpush1.bf16.msra.mxu0 0
        %2858 = vmatprep.subr.bf16.mxu0 0
        %2859 = vmatpush1.bf16.msra.mxu0 0
        %2860 = vmatprep.subr.bf16.mxu0 0
        %2861 = vmatpush1.bf16.msra.mxu0 0
        %2862 = vmatprep.mubr.bf16.mxu0 0
        %2863 = vmatmul.mubr.bf16.gmra.mrb[0].mxu0 %v2828
        %v2864 = vpop.f32.mrb[0].mxu0
        %v2865 = vadd.f32 0.0, %v2864
        %v2866 = vpop.f32.mrb[0].mxu0
        %v2867 = vpop.f32.mrb[0].mxu0
        %v2868 = vpop.f32.mrb[0].mxu0
        %2869 = vdwg.mxu0
        %v2871 = vsel %vm2190, %v2652, 0
        %2873 = vmatprep.subr.bf16.mxu0 0
        %2874 = vmatpush1.bf16.msra.mxu0 %v2187
        %2875 = vmatprep.subr.bf16.mxu0 0
        %2876 = vmatpush1.bf16.msra.mxu0 0
        %2877 = vmatprep.subr.bf16.mxu0 0
        %2878 = vmatpush1.bf16.msra.mxu0 0
        %2879 = vmatprep.subr.bf16.mxu0 0
        %2880 = vmatpush1.bf16.msra.mxu0 0
        %2881 = vmatprep.subr.bf16.mxu0 0
        %2882 = vmatpush1.bf16.msra.mxu0 0
        %2883 = vmatprep.subr.bf16.mxu0 0
        %2884 = vmatpush1.bf16.msra.mxu0 0
        %2885 = vmatprep.subr.bf16.mxu0 0
        %2886 = vmatpush1.bf16.msra.mxu0 0
        %2887 = vmatprep.subr.bf16.mxu0 0
        %2888 = vmatpush1.bf16.msra.mxu0 0
        %2889 = vmatprep.subr.bf16.mxu0 0
        %2890 = vmatpush1.bf16.msra.mxu0 0
        %2891 = vmatprep.subr.bf16.mxu0 0
        %2892 = vmatpush1.bf16.msra.mxu0 0
        %2893 = vmatprep.subr.bf16.mxu0 0
        %2894 = vmatpush1.bf16.msra.mxu0 0
        %2895 = vmatprep.subr.bf16.mxu0 0
        %2896 = vmatpush1.bf16.msra.mxu0 0
        %2897 = vmatprep.subr.bf16.mxu0 0
        %2898 = vmatpush1.bf16.msra.mxu0 0
        %2899 = vmatprep.subr.bf16.mxu0 0
        %2900 = vmatpush1.bf16.msra.mxu0 0
        %2901 = vmatprep.subr.bf16.mxu0 0
        %2902 = vmatpush1.bf16.msra.mxu0 0
        %2903 = vmatprep.subr.bf16.mxu0 0
        %2904 = vmatpush1.bf16.msra.mxu0 0
        %2905 = vmatprep.mubr.bf16.mxu0 0
        %2906 = vmatmul.mubr.bf16.gmra.mrb[0].mxu0 %v2871
        %v2907 = vpop.f32.mrb[0].mxu0
        %v2908 = vadd.f32 0.0, %v2907
        %v2909 = vpop.f32.mrb[0].mxu0
        %v2910 = vpop.f32.mrb[0].mxu0
        %v2911 = vpop.f32.mrb[0].mxu0
        %2912 = vdwg.mxu0
        %v2914 = vsel %vm2190, %v2653, 0
        %2916 = vmatprep.subr.bf16.mxu0 0
        %2917 = vmatpush1.bf16.msra.mxu0 %v2188
        %2918 = vmatprep.subr.bf16.mxu0 0
        %2919 = vmatpush1.bf16.msra.mxu0 0
        %2920 = vmatprep.subr.bf16.mxu0 0
        %2921 = vmatpush1.bf16.msra.mxu0 0
        %2922 = vmatprep.subr.bf16.mxu0 0
        %2923 = vmatpush1.bf16.msra.mxu0 0
        %2924 = vmatprep.subr.bf16.mxu0 0
        %2925 = vmatpush1.bf16.msra.mxu0 0
        %2926 = vmatprep.subr.bf16.mxu0 0
        %2927 = vmatpush1.bf16.msra.mxu0 0
        %2928 = vmatprep.subr.bf16.mxu0 0
        %2929 = vmatpush1.bf16.msra.mxu0 0
        %2930 = vmatprep.subr.bf16.mxu0 0
        %2931 = vmatpush1.bf16.msra.mxu0 0
        %2932 = vmatprep.subr.bf16.mxu0 0
        %2933 = vmatpush1.bf16.msra.mxu0 0
        %2934 = vmatprep.subr.bf16.mxu0 0
        %2935 = vmatpush1.bf16.msra.mxu0 0
        %2936 = vmatprep.subr.bf16.mxu0 0
        %2937 = vmatpush1.bf16.msra.mxu0 0
        %2938 = vmatprep.subr.bf16.mxu0 0
        %2939 = vmatpush1.bf16.msra.mxu0 0
        %2940 = vmatprep.subr.bf16.mxu0 0
        %2941 = vmatpush1.bf16.msra.mxu0 0
        %2942 = vmatprep.subr.bf16.mxu0 0
        %2943 = vmatpush1.bf16.msra.mxu0 0
        %2944 = vmatprep.subr.bf16.mxu0 0
        %2945 = vmatpush1.bf16.msra.mxu0 0
        %2946 = vmatprep.subr.bf16.mxu0 0
        %2947 = vmatpush1.bf16.msra.mxu0 0
        %2948 = vmatprep.mubr.bf16.mxu0 0
        %2949 = vmatmul.mubr.bf16.gmra.mrb[0].mxu0 %v2914
        %v2950 = vpop.f32.mrb[0].mxu0
        %v2951 = vadd.f32 0.0, %v2950
        %v2952 = vpop.f32.mrb[0].mxu0
        %v2953 = vpop.f32.mrb[0].mxu0
        %v2954 = vpop.f32.mrb[0].mxu0
        %2955 = vdwg.mxu0
        %v2957 = vsel %vm2190, %v2654, 0
        %2959 = vmatprep.subr.bf16.mxu0 0
        %2960 = vmatpush1.bf16.msra.mxu0 %v2189
        %2961 = vmatprep.subr.bf16.mxu0 0
        %2962 = vmatpush1.bf16.msra.mxu0 0
        %2963 = vmatprep.subr.bf16.mxu0 0
        %2964 = vmatpush1.bf16.msra.mxu0 0
        %2965 = vmatprep.subr.bf16.mxu0 0
        %2966 = vmatpush1.bf16.msra.mxu0 0
        %2967 = vmatprep.subr.bf16.mxu0 0
        %2968 = vmatpush1.bf16.msra.mxu0 0
        %2969 = vmatprep.subr.bf16.mxu0 0
        %2970 = vmatpush1.bf16.msra.mxu0 0
        %2971 = vmatprep.subr.bf16.mxu0 0
        %2972 = vmatpush1.bf16.msra.mxu0 0
        %2973 = vmatprep.subr.bf16.mxu0 0
        %2974 = vmatpush1.bf16.msra.mxu0 0
        %2975 = vmatprep.subr.bf16.mxu0 0
        %2976 = vmatpush1.bf16.msra.mxu0 0
        %2977 = vmatprep.subr.bf16.mxu0 0
        %2978 = vmatpush1.bf16.msra.mxu0 0
        %2979 = vmatprep.subr.bf16.mxu0 0
        %2980 = vmatpush1.bf16.msra.mxu0 0
        %2981 = vmatprep.subr.bf16.mxu0 0
        %2982 = vmatpush1.bf16.msra.mxu0 0
        %2983 = vmatprep.subr.bf16.mxu0 0
        %2984 = vmatpush1.bf16.msra.mxu0 0
        %2985 = vmatprep.subr.bf16.mxu0 0
        %2986 = vmatpush1.bf16.msra.mxu0 0
        %2987 = vmatprep.subr.bf16.mxu0 0
        %2988 = vmatpush1.bf16.msra.mxu0 0
        %2989 = vmatprep.subr.bf16.mxu0 0
        %2990 = vmatpush1.bf16.msra.mxu0 0
        %2991 = vmatprep.mubr.bf16.mxu0 0
        %2992 = vmatmul.mubr.bf16.gmra.mrb[0].mxu0 %v2957
        %v2993 = vpop.f32.mrb[0].mxu0
        %v2994 = vadd.f32 0.0, %v2993
        %v2995 = vpop.f32.mrb[0].mxu0
        %v2996 = vpop.f32.mrb[0].mxu0
        %v2997 = vpop.f32.mrb[0].mxu0
        %2998 = vdwg.mxu0
        %v2999 = vcombine.low %v2693, %v2779
        %v3000 = vcombine.high %v2693, %v2779
        %v3002 = vunpack.c.l.s4 1983009808
        %v3003 = vunpack.c.0.s8 %v3002
        %v3004 = vlaneseq
        %v3005 = vshrl.u32 %v3004, 7
        %v3006 = vsub.s32 %v3003, %v3005
        %v3007 = vrot.slane %v2999, %v3006
        %v3009 = vunpack.c.l.s4 1983009808
        %v3010 = vunpack.c.0.s8 %v3009
        %v3011 = vlaneseq
        %v3012 = vshrl.u32 %v3011, 7
        %v3013 = vsub.s32 %v3010, %v3012
        %v3014 = vrot.slane %v3000, %v3013
        %v3015 = vcombine.low %v2736, %v2822
        %v3016 = vcombine.high %v2736, %v2822
        %v3018 = vunpack.c.l.s4 1983009808
        %v3019 = vunpack.c.0.s8 %v3018
        %v3020 = vlaneseq
        %v3021 = vshrl.u32 %v3020, 7
        %v3022 = vsub.s32 %v3019, %v3021
        %v3023 = vrot.slane %v3015, %v3022
        %v3025 = vunpack.c.l.s4 1983009808
        %v3026 = vunpack.c.0.s8 %v3025
        %v3027 = vlaneseq
        %v3028 = vshrl.u32 %v3027, 7
        %v3029 = vsub.s32 %v3026, %v3028
        %v3030 = vrot.slane %v3016, %v3029
        %v3031 = vcombine.low %v2865, %v2951
        %v3032 = vcombine.high %v2865, %v2951
        %v3034 = vunpack.c.l.s4 1983009808
        %v3035 = vunpack.c.0.s8 %v3034
        %v3036 = vlaneseq
        %v3037 = vshrl.u32 %v3036, 7
        %v3038 = vsub.s32 %v3035, %v3037
        %v3039 = vrot.slane %v3031, %v3038
        %v3041 = vunpack.c.l.s4 1983009808
        %v3042 = vunpack.c.0.s8 %v3041
        %v3043 = vlaneseq
        %v3044 = vshrl.u32 %v3043, 7
        %v3045 = vsub.s32 %v3042, %v3044
        %v3046 = vrot.slane %v3032, %v3045
        %v3047 = vcombine.low %v2908, %v2994
        %v3048 = vcombine.high %v2908, %v2994
        %v3050 = vunpack.c.l.s4 1983009808
        %v3051 = vunpack.c.0.s8 %v3050
        %v3052 = vlaneseq
        %v3053 = vshrl.u32 %v3052, 7
        %v3054 = vsub.s32 %v3051, %v3053
        %v3055 = vrot.slane %v3047, %v3054
        %v3057 = vunpack.c.l.s4 1983009808
        %v3058 = vunpack.c.0.s8 %v3057
        %v3059 = vlaneseq
        %v3060 = vshrl.u32 %v3059, 7
        %v3061 = vsub.s32 %v3058, %v3060
        %v3062 = vrot.slane %v3048, %v3061
        %v3063 = vcombine.low %v3007, %v3023
        %v3064 = vcombine.high %v3007, %v3023
        %v3066 = vunpack.c.l.s4 1934713408
        %v3067 = vunpack.c.0.s8 %v3066
        %v3068 = vlaneseq
        %v3069 = vshrl.u32 %v3068, 7
        %v3070 = vsub.s32 %v3067, %v3069
        %v3071 = vrot.slane %v3063, %v3070
        %v3073 = vunpack.c.l.s4 1934713408
        %v3074 = vunpack.c.0.s8 %v3073
        %v3075 = vlaneseq
        %v3076 = vshrl.u32 %v3075, 7
        %v3077 = vsub.s32 %v3074, %v3076
        %v3078 = vrot.slane %v3064, %v3077
        %v3079 = vcombine.low %v3014, %v3030
        %v3080 = vcombine.high %v3014, %v3030
        %v3082 = vunpack.c.l.s4 1934713408
        %v3083 = vunpack.c.0.s8 %v3082
        %v3084 = vlaneseq
        %v3085 = vshrl.u32 %v3084, 7
        %v3086 = vsub.s32 %v3083, %v3085
        %v3087 = vrot.slane %v3079, %v3086
        %v3089 = vunpack.c.l.s4 1934713408
        %v3090 = vunpack.c.0.s8 %v3089
        %v3091 = vlaneseq
        %v3092 = vshrl.u32 %v3091, 7
        %v3093 = vsub.s32 %v3090, %v3092
        %v3094 = vrot.slane %v3080, %v3093
        %v3095 = vcombine.low %v3039, %v3055
        %v3096 = vcombine.high %v3039, %v3055
        %v3098 = vunpack.c.l.s4 1934713408
        %v3099 = vunpack.c.0.s8 %v3098
        %v3100 = vlaneseq
        %v3101 = vshrl.u32 %v3100, 7
        %v3102 = vsub.s32 %v3099, %v3101
        %v3103 = vrot.slane %v3095, %v3102
        %v3105 = vunpack.c.l.s4 1934713408
        %v3106 = vunpack.c.0.s8 %v3105
        %v3107 = vlaneseq
        %v3108 = vshrl.u32 %v3107, 7
        %v3109 = vsub.s32 %v3106, %v3108
        %v3110 = vrot.slane %v3096, %v3109
        %v3111 = vcombine.low %v3046, %v3062
        %v3112 = vcombine.high %v3046, %v3062
        %v3114 = vunpack.c.l.s4 1934713408
        %v3115 = vunpack.c.0.s8 %v3114
        %v3116 = vlaneseq
        %v3117 = vshrl.u32 %v3116, 7
        %v3118 = vsub.s32 %v3115, %v3117
        %v3119 = vrot.slane %v3111, %v3118
        %v3121 = vunpack.c.l.s4 1934713408
        %v3122 = vunpack.c.0.s8 %v3121
        %v3123 = vlaneseq
        %v3124 = vshrl.u32 %v3123, 7
        %v3125 = vsub.s32 %v3122, %v3124
        %v3126 = vrot.slane %v3112, %v3125
        %v3127 = vcombine.low %v3071, %v3103
        %v3128 = vcombine.high %v3071, %v3103
        %v3129 = vcombine.low %v3078, %v3110
        %v3130 = vcombine.high %v3078, %v3110
        %v3131 = vcombine.low %v3087, %v3119
        %v3132 = vcombine.high %v3087, %v3119
        %v3133 = vcombine.low %v3094, %v3126
        %v3134 = vcombine.high %v3094, %v3126
        %v3135 = vcombine.low %v3127, %v3129
        %v3136 = vcombine.high %v3127, %v3129
        %v3138 = vunpack.c.l.s4 1983009808
        %v3139 = vunpack.c.0.s8 %v3138
        %v3140 = vlaneseq
        %v3141 = vshrl.u32 %v3140, 7
        %v3142 = vsub.s32 %v3139, %v3141
        %v3143 = vrot.slane %v3135, %v3142
        %v3145 = vunpack.c.l.s4 1983009808
        %v3146 = vunpack.c.0.s8 %v3145
        %v3147 = vlaneseq
        %v3148 = vshrl.u32 %v3147, 7
        %v3149 = vsub.s32 %v3146, %v3148
        %v3150 = vrot.slane %v3136, %v3149
        %v3151 = vcombine.low %v3128, %v3130
        %v3152 = vcombine.high %v3128, %v3130
        %v3154 = vunpack.c.l.s4 1983009808
        %v3155 = vunpack.c.0.s8 %v3154
        %v3156 = vlaneseq
        %v3157 = vshrl.u32 %v3156, 7
        %v3158 = vsub.s32 %v3155, %v3157
        %v3159 = vrot.slane %v3151, %v3158
        %v3161 = vunpack.c.l.s4 1983009808
        %v3162 = vunpack.c.0.s8 %v3161
        %v3163 = vlaneseq
        %v3164 = vshrl.u32 %v3163, 7
        %v3165 = vsub.s32 %v3162, %v3164
        %v3166 = vrot.slane %v3152, %v3165
        %v3167 = vcombine.low %v3131, %v3133
        %v3168 = vcombine.high %v3131, %v3133
        %v3170 = vunpack.c.l.s4 1983009808
        %v3171 = vunpack.c.0.s8 %v3170
        %v3172 = vlaneseq
        %v3173 = vshrl.u32 %v3172, 7
        %v3174 = vsub.s32 %v3171, %v3173
        %v3175 = vrot.slane %v3167, %v3174
        %v3177 = vunpack.c.l.s4 1983009808
        %v3178 = vunpack.c.0.s8 %v3177
        %v3179 = vlaneseq
        %v3180 = vshrl.u32 %v3179, 7
        %v3181 = vsub.s32 %v3178, %v3180
        %v3182 = vrot.slane %v3168, %v3181
        %v3183 = vcombine.low %v3132, %v3134
        %v3184 = vcombine.high %v3132, %v3134
        %v3186 = vunpack.c.l.s4 1983009808
        %v3187 = vunpack.c.0.s8 %v3186
        %v3188 = vlaneseq
        %v3189 = vshrl.u32 %v3188, 7
        %v3190 = vsub.s32 %v3187, %v3189
        %v3191 = vrot.slane %v3183, %v3190
        %v3193 = vunpack.c.l.s4 1983009808
        %v3194 = vunpack.c.0.s8 %v3193
        %v3195 = vlaneseq
        %v3196 = vshrl.u32 %v3195, 7
        %v3197 = vsub.s32 %v3194, %v3196
        %v3198 = vrot.slane %v3184, %v3197
        %v3199 = vcombine.low %v3143, %v3159
        %v3200 = vcombine.high %v3143, %v3159
        %v3202 = vunpack.c.l.s4 1934713408
        %v3203 = vunpack.c.0.s8 %v3202
        %v3204 = vlaneseq
        %v3205 = vshrl.u32 %v3204, 7
        %v3206 = vsub.s32 %v3203, %v3205
        %v3207 = vrot.slane %v3199, %v3206
        %v3209 = vunpack.c.l.s4 1934713408
        %v3210 = vunpack.c.0.s8 %v3209
        %v3211 = vlaneseq
        %v3212 = vshrl.u32 %v3211, 7
        %v3213 = vsub.s32 %v3210, %v3212
        %v3214 = vrot.slane %v3200, %v3213
        %v3215 = vcombine.low %v3150, %v3166
        %v3216 = vcombine.high %v3150, %v3166
        %v3218 = vunpack.c.l.s4 1934713408
        %v3219 = vunpack.c.0.s8 %v3218
        %v3220 = vlaneseq
        %v3221 = vshrl.u32 %v3220, 7
        %v3222 = vsub.s32 %v3219, %v3221
        %v3223 = vrot.slane %v3215, %v3222
        %v3225 = vunpack.c.l.s4 1934713408
        %v3226 = vunpack.c.0.s8 %v3225
        %v3227 = vlaneseq
        %v3228 = vshrl.u32 %v3227, 7
        %v3229 = vsub.s32 %v3226, %v3228
        %v3230 = vrot.slane %v3216, %v3229
        %v3231 = vcombine.low %v3175, %v3191
        %v3232 = vcombine.high %v3175, %v3191
        %v3234 = vunpack.c.l.s4 1934713408
        %v3235 = vunpack.c.0.s8 %v3234
        %v3236 = vlaneseq
        %v3237 = vshrl.u32 %v3236, 7
        %v3238 = vsub.s32 %v3235, %v3237
        %v3239 = vrot.slane %v3231, %v3238
        %v3241 = vunpack.c.l.s4 1934713408
        %v3242 = vunpack.c.0.s8 %v3241
        %v3243 = vlaneseq
        %v3244 = vshrl.u32 %v3243, 7
        %v3245 = vsub.s32 %v3242, %v3244
        %v3246 = vrot.slane %v3232, %v3245
        %v3247 = vcombine.low %v3182, %v3198
        %v3248 = vcombine.high %v3182, %v3198
        %v3250 = vunpack.c.l.s4 1934713408
        %v3251 = vunpack.c.0.s8 %v3250
        %v3252 = vlaneseq
        %v3253 = vshrl.u32 %v3252, 7
        %v3254 = vsub.s32 %v3251, %v3253
        %v3255 = vrot.slane %v3247, %v3254
        %v3257 = vunpack.c.l.s4 1934713408
        %v3258 = vunpack.c.0.s8 %v3257
        %v3259 = vlaneseq
        %v3260 = vshrl.u32 %v3259, 7
        %v3261 = vsub.s32 %v3258, %v3260
        %v3262 = vrot.slane %v3248, %v3261
        %v3263 = vcombine.low %v3207, %v3239
        %v3264 = vcombine.high %v3207, %v3239
        %v3265 = vcombine.low %v3214, %v3246
        %v3266 = vcombine.high %v3214, %v3246
        %v3267 = vcombine.low %v3223, %v3255
        %v3268 = vcombine.high %v3223, %v3255
        %v3269 = vcombine.low %v3230, %v3262
        %v3270 = vcombine.high %v3230, %v3262
        %3272 = vrot.lane.b32.xlu0 %v3264, 16
        %v3273 = vpop.permute.xlu0 %3272
        %3276 = vrot.lane.b32.xlu0 %v3265, 32
        %v3277 = vpop.permute.xlu0 %3276
        %3280 = vrot.lane.b32.xlu0 %v3266, 48
        %v3281 = vpop.permute.xlu0 %3280
        %3284 = vrot.lane.b32.xlu0 %v3267, 64
        %v3285 = vpop.permute.xlu0 %3284
        %3288 = vrot.lane.b32.xlu0 %v3268, 80
        %v3289 = vpop.permute.xlu0 %3288
        %3292 = vrot.lane.b32.xlu0 %v3269, 96
        %v3293 = vpop.permute.xlu0 %3292
        %3296 = vrot.lane.b32.xlu0 %v3270, 112
        %v3297 = vpop.permute.xlu0 %3296
        %v3299 = vsel %vm2190, %v3263, %v3273
        %vm3300 = vcmask 261120
        %v3301 = vsel %vm3300, %v3299, %v3277
        %vm3302 = vcmask 392192
        %v3303 = vsel %vm3302, %v3301, %v3281
        %vm3304 = vcmask 523264
        %v3305 = vsel %vm3304, %v3303, %v3285
        %vm3306 = vcmask 654336
        %v3307 = vsel %vm3306, %v3305, %v3289
        %vm3308 = vcmask 785408
        %v3309 = vsel %vm3308, %v3307, %v3293
        %vm3310 = vcmask 916480
        %v3311 = vsel %vm3310, %v3309, %v3297
        %v3312 = vpack.c.bf16 %v3311, %v3311
        %v3313 = vld [vmem:[%s6] sm:$0xf]
        %v3314 = vld [vmem:[%s6 + $0x4] sm:$0xf]
        %v3315 = vld [vmem:[%s6 + $0x8] sm:$0xf]
        %v3316 = vld [vmem:[%s6 + $0xc] sm:$0xf]
        %v3317 = vld [vmem:[%s6 + $0x10] sm:$0xf]
        %v3318 = vld [vmem:[%s6 + $0x14] sm:$0xf]
        %v3319 = vld [vmem:[%s6 + $0x18] sm:$0xf]
        %v3320 = vld [vmem:[%s6 + $0x1c] sm:$0xf]
        %v3321 = vld [vmem:[%s6 + $0x20] sm:$0xf]
        %v3322 = vld [vmem:[%s6 + $0x24] sm:$0xf]
        %v3323 = vld [vmem:[%s6 + $0x28] sm:$0xf]
        %v3324 = vld [vmem:[%s6 + $0x2c] sm:$0xf]
        %v3325 = vld [vmem:[%s6 + $0x30] sm:$0xf]
        %v3326 = vld [vmem:[%s6 + $0x34] sm:$0xf]
        %v3327 = vld [vmem:[%s6 + $0x38] sm:$0xf]
        %v3328 = vld [vmem:[%s6 + $0x3c] sm:$0xf]
        %v3329 = vld [vmem:[%s7] sm:$0x1]
        %v3331 = vlaneseq
        %v3332 = vshrl.u32 %v3331, 7
        %v3333 = vsub.s32 0, %v3332
        %v3334 = vrot.slane %v3329, %v3333
        %v3352 = vunpack.c.l.b16 %v3313
        %v3353 = vunpack.c.l.b16 %v3314
        %v3354 = vunpack.c.l.b16 %v3315
        %v3355 = vunpack.c.l.b16 %v3316
        %v3356 = vunpack.c.l.b16 %v3317
        %v3357 = vunpack.c.l.b16 %v3318
        %v3358 = vunpack.c.l.b16 %v3319
        %v3359 = vunpack.c.l.b16 %v3320
        %v3360 = vunpack.c.l.b16 %v3321
        %v3361 = vunpack.c.l.b16 %v3322
        %v3362 = vunpack.c.l.b16 %v3323
        %v3363 = vunpack.c.l.b16 %v3324
        %v3364 = vunpack.c.l.b16 %v3325
        %v3365 = vunpack.c.l.b16 %v3326
        %v3366 = vunpack.c.l.b16 %v3327
        %v3367 = vunpack.c.l.b16 %v3328
        %v3368 = vpack.c.b16 %v3353, %v3352
        %v3369 = vpack.c.b16 %v3355, %v3354
        %v3370 = vpack.c.b16 %v3357, %v3356
        %v3371 = vpack.c.b16 %v3359, %v3358
        %v3372 = vpack.c.b16 %v3361, %v3360
        %v3373 = vpack.c.b16 %v3363, %v3362
        %v3374 = vpack.c.b16 %v3365, %v3364
        %v3375 = vpack.c.b16 %v3367, %v3366
        %3384 = vmatprep.subr.bf16.mxu0 0
        %3385 = vmatpush1.bf16.msra.mxu0 %v3368
        %3386 = vmatprep.subr.bf16.mxu0 0
        %3387 = vmatpush1.bf16.msra.mxu0 %v3369
        %3388 = vmatprep.subr.bf16.mxu0 0
        %3389 = vmatpush1.bf16.msra.mxu0 %v3370
        %3390 = vmatprep.subr.bf16.mxu0 0
        %3391 = vmatpush1.bf16.msra.mxu0 %v3371
        %3392 = vmatprep.subr.bf16.mxu0 0
        %3393 = vmatpush1.bf16.msra.mxu0 %v3372
        %3394 = vmatprep.subr.bf16.mxu0 0
        %3395 = vmatpush1.bf16.msra.mxu0 %v3373
        %3396 = vmatprep.subr.bf16.mxu0 0
        %3397 = vmatpush1.bf16.msra.mxu0 %v3374
        %3398 = vmatprep.subr.bf16.mxu0 0
        %3399 = vmatpush1.bf16.msra.mxu0 %v3375
        %3400 = vmatprep.subr.bf16.mxu0 0
        %3401 = vmatpush1.bf16.msra.mxu0 0
        %3402 = vmatprep.subr.bf16.mxu0 0
        %3403 = vmatpush1.bf16.msra.mxu0 0
        %3404 = vmatprep.subr.bf16.mxu0 0
        %3405 = vmatpush1.bf16.msra.mxu0 0
        %3406 = vmatprep.subr.bf16.mxu0 0
        %3407 = vmatpush1.bf16.msra.mxu0 0
        %3408 = vmatprep.subr.bf16.mxu0 0
        %3409 = vmatpush1.bf16.msra.mxu0 0
        %3410 = vmatprep.subr.bf16.mxu0 0
        %3411 = vmatpush1.bf16.msra.mxu0 0
        %3412 = vmatprep.subr.bf16.mxu0 0
        %3413 = vmatpush1.bf16.msra.mxu0 0
        %3414 = vmatprep.subr.bf16.mxu0 0
        %3415 = vmatpush1.bf16.msra.mxu0 0
        %3416 = vmatprep.mubr.bf16.mxu0 0
        %3417 = vmatmul.mubr.bf16.gmra.mrb[0].mxu0 %v3312
        %v3418 = vpop.f32.mrb[0].mxu0
        %v3419 = vadd.f32 %v3334, %v3418
        %v3420 = vpop.f32.mrb[0].mxu0
        %v3421 = vpop.f32.mrb[0].mxu0
        %v3422 = vpop.f32.mrb[0].mxu0
        %3423 = vdwg.mxu0
        %3424 = vst.msk [vmem:[%s396] sm:$0xff] %vm3300, %v3419
        %3427 = vrot.lane.b32.xlu0 %v647, 112
        %v3428 = vpop.permute.xlu0 %3427
        %3429 = vrot.lane.b32.xlu0 %v651, 112
        %v3430 = vpop.permute.xlu0 %3429
        %3433 = vrot.lane.b32.xlu0 %v647, 96
        %v3434 = vpop.permute.xlu0 %3433
        %3435 = vrot.lane.b32.xlu0 %v651, 96
        %v3436 = vpop.permute.xlu0 %3435
        %3439 = vrot.lane.b32.xlu0 %v647, 80
        %v3440 = vpop.permute.xlu0 %3439
        %3441 = vrot.lane.b32.xlu0 %v651, 80
        %v3442 = vpop.permute.xlu0 %3441
        %3445 = vrot.lane.b32.xlu0 %v647, 64
        %v3446 = vpop.permute.xlu0 %3445
        %3447 = vrot.lane.b32.xlu0 %v651, 64
        %v3448 = vpop.permute.xlu0 %3447
        %3451 = vrot.lane.b32.xlu0 %v647, 48
        %v3452 = vpop.permute.xlu0 %3451
        %3453 = vrot.lane.b32.xlu0 %v651, 48
        %v3454 = vpop.permute.xlu0 %3453
        %3457 = vrot.lane.b32.xlu0 %v647, 32
        %v3458 = vpop.permute.xlu0 %3457
        %3459 = vrot.lane.b32.xlu0 %v651, 32
        %v3460 = vpop.permute.xlu0 %3459
        %3463 = vrot.lane.b32.xlu0 %v647, 16
        %v3464 = vpop.permute.xlu0 %3463
        %3465 = vrot.lane.b32.xlu0 %v651, 16
        %v3466 = vpop.permute.xlu0 %3465
        %v3469 = vcombine.low %v647, %v3434
        %v3470 = vcombine.high %v647, %v3434
        %v3472 = vunpack.c.l.s4 1983009808
        %v3473 = vunpack.c.0.s8 %v3472
        %v3474 = vlaneseq
        %v3475 = vshrl.u32 %v3474, 7
        %v3476 = vsub.s32 %v3473, %v3475
        %v3477 = vrot.slane %v3469, %v3476
        %v3479 = vunpack.c.l.s4 1983009808
        %v3480 = vunpack.c.0.s8 %v3479
        %v3481 = vlaneseq
        %v3482 = vshrl.u32 %v3481, 7
        %v3483 = vsub.s32 %v3480, %v3482
        %v3484 = vrot.slane %v3470, %v3483
        %v3485 = vcombine.low %v3428, %v3440
        %v3486 = vcombine.high %v3428, %v3440
        %v3488 = vunpack.c.l.s4 1983009808
        %v3489 = vunpack.c.0.s8 %v3488
        %v3490 = vlaneseq
        %v3491 = vshrl.u32 %v3490, 7
        %v3492 = vsub.s32 %v3489, %v3491
        %v3493 = vrot.slane %v3485, %v3492
        %v3495 = vunpack.c.l.s4 1983009808
        %v3496 = vunpack.c.0.s8 %v3495
        %v3497 = vlaneseq
        %v3498 = vshrl.u32 %v3497, 7
        %v3499 = vsub.s32 %v3496, %v3498
        %v3500 = vrot.slane %v3486, %v3499
        %v3501 = vcombine.low %v3446, %v3458
        %v3502 = vcombine.high %v3446, %v3458
        %v3504 = vunpack.c.l.s4 1983009808
        %v3505 = vunpack.c.0.s8 %v3504
        %v3506 = vlaneseq
        %v3507 = vshrl.u32 %v3506, 7
        %v3508 = vsub.s32 %v3505, %v3507
        %v3509 = vrot.slane %v3501, %v3508
        %v3511 = vunpack.c.l.s4 1983009808
        %v3512 = vunpack.c.0.s8 %v3511
        %v3513 = vlaneseq
        %v3514 = vshrl.u32 %v3513, 7
        %v3515 = vsub.s32 %v3512, %v3514
        %v3516 = vrot.slane %v3502, %v3515
        %v3517 = vcombine.low %v3452, %v3464
        %v3518 = vcombine.high %v3452, %v3464
        %v3520 = vunpack.c.l.s4 1983009808
        %v3521 = vunpack.c.0.s8 %v3520
        %v3522 = vlaneseq
        %v3523 = vshrl.u32 %v3522, 7
        %v3524 = vsub.s32 %v3521, %v3523
        %v3525 = vrot.slane %v3517, %v3524
        %v3527 = vunpack.c.l.s4 1983009808
        %v3528 = vunpack.c.0.s8 %v3527
        %v3529 = vlaneseq
        %v3530 = vshrl.u32 %v3529, 7
        %v3531 = vsub.s32 %v3528, %v3530
        %v3532 = vrot.slane %v3518, %v3531
        %v3533 = vcombine.low %v3477, %v3493
        %v3534 = vcombine.high %v3477, %v3493
        %v3536 = vunpack.c.l.s4 1934713408
        %v3537 = vunpack.c.0.s8 %v3536
        %v3538 = vlaneseq
        %v3539 = vshrl.u32 %v3538, 7
        %v3540 = vsub.s32 %v3537, %v3539
        %v3541 = vrot.slane %v3533, %v3540
        %v3543 = vunpack.c.l.s4 1934713408
        %v3544 = vunpack.c.0.s8 %v3543
        %v3545 = vlaneseq
        %v3546 = vshrl.u32 %v3545, 7
        %v3547 = vsub.s32 %v3544, %v3546
        %v3548 = vrot.slane %v3534, %v3547
        %v3549 = vcombine.low %v3484, %v3500
        %v3550 = vcombine.high %v3484, %v3500
        %v3552 = vunpack.c.l.s4 1934713408
        %v3553 = vunpack.c.0.s8 %v3552
        %v3554 = vlaneseq
        %v3555 = vshrl.u32 %v3554, 7
        %v3556 = vsub.s32 %v3553, %v3555
        %v3557 = vrot.slane %v3549, %v3556
        %v3559 = vunpack.c.l.s4 1934713408
        %v3560 = vunpack.c.0.s8 %v3559
        %v3561 = vlaneseq
        %v3562 = vshrl.u32 %v3561, 7
        %v3563 = vsub.s32 %v3560, %v3562
        %v3564 = vrot.slane %v3550, %v3563
        %v3565 = vcombine.low %v3509, %v3525
        %v3566 = vcombine.high %v3509, %v3525
        %v3568 = vunpack.c.l.s4 1934713408
        %v3569 = vunpack.c.0.s8 %v3568
        %v3570 = vlaneseq
        %v3571 = vshrl.u32 %v3570, 7
        %v3572 = vsub.s32 %v3569, %v3571
        %v3573 = vrot.slane %v3565, %v3572
        %v3575 = vunpack.c.l.s4 1934713408
        %v3576 = vunpack.c.0.s8 %v3575
        %v3577 = vlaneseq
        %v3578 = vshrl.u32 %v3577, 7
        %v3579 = vsub.s32 %v3576, %v3578
        %v3580 = vrot.slane %v3566, %v3579
        %v3581 = vcombine.low %v3516, %v3532
        %v3582 = vcombine.high %v3516, %v3532
        %v3584 = vunpack.c.l.s4 1934713408
        %v3585 = vunpack.c.0.s8 %v3584
        %v3586 = vlaneseq
        %v3587 = vshrl.u32 %v3586, 7
        %v3588 = vsub.s32 %v3585, %v3587
        %v3589 = vrot.slane %v3581, %v3588
        %v3591 = vunpack.c.l.s4 1934713408
        %v3592 = vunpack.c.0.s8 %v3591
        %v3593 = vlaneseq
        %v3594 = vshrl.u32 %v3593, 7
        %v3595 = vsub.s32 %v3592, %v3594
        %v3596 = vrot.slane %v3582, %v3595
        %v3597 = vcombine.low %v3541, %v3573
        %v3598 = vcombine.high %v3541, %v3573
        %v3599 = vcombine.low %v3548, %v3580
        %v3600 = vcombine.high %v3548, %v3580
        %v3601 = vcombine.low %v3557, %v3589
        %v3602 = vcombine.high %v3557, %v3589
        %v3603 = vcombine.low %v3564, %v3596
        %v3604 = vcombine.high %v3564, %v3596
        %v3605 = vcombine.low %v651, %v3436
        %v3606 = vcombine.high %v651, %v3436
        %v3608 = vunpack.c.l.s4 1983009808
        %v3609 = vunpack.c.0.s8 %v3608
        %v3610 = vlaneseq
        %v3611 = vshrl.u32 %v3610, 7
        %v3612 = vsub.s32 %v3609, %v3611
        %v3613 = vrot.slane %v3605, %v3612
        %v3615 = vunpack.c.l.s4 1983009808
        %v3616 = vunpack.c.0.s8 %v3615
        %v3617 = vlaneseq
        %v3618 = vshrl.u32 %v3617, 7
        %v3619 = vsub.s32 %v3616, %v3618
        %v3620 = vrot.slane %v3606, %v3619
        %v3621 = vcombine.low %v3430, %v3442
        %v3622 = vcombine.high %v3430, %v3442
        %v3624 = vunpack.c.l.s4 1983009808
        %v3625 = vunpack.c.0.s8 %v3624
        %v3626 = vlaneseq
        %v3627 = vshrl.u32 %v3626, 7
        %v3628 = vsub.s32 %v3625, %v3627
        %v3629 = vrot.slane %v3621, %v3628
        %v3631 = vunpack.c.l.s4 1983009808
        %v3632 = vunpack.c.0.s8 %v3631
        %v3633 = vlaneseq
        %v3634 = vshrl.u32 %v3633, 7
        %v3635 = vsub.s32 %v3632, %v3634
        %v3636 = vrot.slane %v3622, %v3635
        %v3637 = vcombine.low %v3448, %v3460
        %v3638 = vcombine.high %v3448, %v3460
        %v3640 = vunpack.c.l.s4 1983009808
        %v3641 = vunpack.c.0.s8 %v3640
        %v3642 = vlaneseq
        %v3643 = vshrl.u32 %v3642, 7
        %v3644 = vsub.s32 %v3641, %v3643
        %v3645 = vrot.slane %v3637, %v3644
        %v3647 = vunpack.c.l.s4 1983009808
        %v3648 = vunpack.c.0.s8 %v3647
        %v3649 = vlaneseq
        %v3650 = vshrl.u32 %v3649, 7
        %v3651 = vsub.s32 %v3648, %v3650
        %v3652 = vrot.slane %v3638, %v3651
        %v3653 = vcombine.low %v3454, %v3466
        %v3654 = vcombine.high %v3454, %v3466
        %v3656 = vunpack.c.l.s4 1983009808
        %v3657 = vunpack.c.0.s8 %v3656
        %v3658 = vlaneseq
        %v3659 = vshrl.u32 %v3658, 7
        %v3660 = vsub.s32 %v3657, %v3659
        %v3661 = vrot.slane %v3653, %v3660
        %v3663 = vunpack.c.l.s4 1983009808
        %v3664 = vunpack.c.0.s8 %v3663
        %v3665 = vlaneseq
        %v3666 = vshrl.u32 %v3665, 7
        %v3667 = vsub.s32 %v3664, %v3666
        %v3668 = vrot.slane %v3654, %v3667
        %v3669 = vcombine.low %v3613, %v3629
        %v3670 = vcombine.high %v3613, %v3629
        %v3672 = vunpack.c.l.s4 1934713408
        %v3673 = vunpack.c.0.s8 %v3672
        %v3674 = vlaneseq
        %v3675 = vshrl.u32 %v3674, 7
        %v3676 = vsub.s32 %v3673, %v3675
        %v3677 = vrot.slane %v3669, %v3676
        %v3679 = vunpack.c.l.s4 1934713408
        %v3680 = vunpack.c.0.s8 %v3679
        %v3681 = vlaneseq
        %v3682 = vshrl.u32 %v3681, 7
        %v3683 = vsub.s32 %v3680, %v3682
        %v3684 = vrot.slane %v3670, %v3683
        %v3685 = vcombine.low %v3620, %v3636
        %v3686 = vcombine.high %v3620, %v3636
        %v3688 = vunpack.c.l.s4 1934713408
        %v3689 = vunpack.c.0.s8 %v3688
        %v3690 = vlaneseq
        %v3691 = vshrl.u32 %v3690, 7
        %v3692 = vsub.s32 %v3689, %v3691
        %v3693 = vrot.slane %v3685, %v3692
        %v3695 = vunpack.c.l.s4 1934713408
        %v3696 = vunpack.c.0.s8 %v3695
        %v3697 = vlaneseq
        %v3698 = vshrl.u32 %v3697, 7
        %v3699 = vsub.s32 %v3696, %v3698
        %v3700 = vrot.slane %v3686, %v3699
        %v3701 = vcombine.low %v3645, %v3661
        %v3702 = vcombine.high %v3645, %v3661
        %v3704 = vunpack.c.l.s4 1934713408
        %v3705 = vunpack.c.0.s8 %v3704
        %v3706 = vlaneseq
        %v3707 = vshrl.u32 %v3706, 7
        %v3708 = vsub.s32 %v3705, %v3707
        %v3709 = vrot.slane %v3701, %v3708
        %v3711 = vunpack.c.l.s4 1934713408
        %v3712 = vunpack.c.0.s8 %v3711
        %v3713 = vlaneseq
        %v3714 = vshrl.u32 %v3713, 7
        %v3715 = vsub.s32 %v3712, %v3714
        %v3716 = vrot.slane %v3702, %v3715
        %v3717 = vcombine.low %v3652, %v3668
        %v3718 = vcombine.high %v3652, %v3668
        %v3720 = vunpack.c.l.s4 1934713408
        %v3721 = vunpack.c.0.s8 %v3720
        %v3722 = vlaneseq
        %v3723 = vshrl.u32 %v3722, 7
        %v3724 = vsub.s32 %v3721, %v3723
        %v3725 = vrot.slane %v3717, %v3724
        %v3727 = vunpack.c.l.s4 1934713408
        %v3728 = vunpack.c.0.s8 %v3727
        %v3729 = vlaneseq
        %v3730 = vshrl.u32 %v3729, 7
        %v3731 = vsub.s32 %v3728, %v3730
        %v3732 = vrot.slane %v3718, %v3731
        %v3733 = vcombine.low %v3677, %v3709
        %v3734 = vcombine.high %v3677, %v3709
        %v3735 = vcombine.low %v3684, %v3716
        %v3736 = vcombine.high %v3684, %v3716
        %v3737 = vcombine.low %v3693, %v3725
        %v3738 = vcombine.high %v3693, %v3725
        %v3739 = vcombine.low %v3700, %v3732
        %v3740 = vcombine.high %v3700, %v3732
        %v3741 = vcombine.low %v3597, %v3599
        %v3742 = vcombine.high %v3597, %v3599
        %v3744 = vunpack.c.l.s4 1983009808
        %v3745 = vunpack.c.0.s8 %v3744
        %v3746 = vlaneseq
        %v3747 = vshrl.u32 %v3746, 7
        %v3748 = vsub.s32 %v3745, %v3747
        %v3749 = vrot.slane %v3741, %v3748
        %v3751 = vunpack.c.l.s4 1983009808
        %v3752 = vunpack.c.0.s8 %v3751
        %v3753 = vlaneseq
        %v3754 = vshrl.u32 %v3753, 7
        %v3755 = vsub.s32 %v3752, %v3754
        %v3756 = vrot.slane %v3742, %v3755
        %v3757 = vcombine.low %v3598, %v3600
        %v3758 = vcombine.high %v3598, %v3600
        %v3760 = vunpack.c.l.s4 1983009808
        %v3761 = vunpack.c.0.s8 %v3760
        %v3762 = vlaneseq
        %v3763 = vshrl.u32 %v3762, 7
        %v3764 = vsub.s32 %v3761, %v3763
        %v3765 = vrot.slane %v3757, %v3764
        %v3767 = vunpack.c.l.s4 1983009808
        %v3768 = vunpack.c.0.s8 %v3767
        %v3769 = vlaneseq
        %v3770 = vshrl.u32 %v3769, 7
        %v3771 = vsub.s32 %v3768, %v3770
        %v3772 = vrot.slane %v3758, %v3771
        %v3773 = vcombine.low %v3601, %v3603
        %v3774 = vcombine.high %v3601, %v3603
        %v3776 = vunpack.c.l.s4 1983009808
        %v3777 = vunpack.c.0.s8 %v3776
        %v3778 = vlaneseq
        %v3779 = vshrl.u32 %v3778, 7
        %v3780 = vsub.s32 %v3777, %v3779
        %v3781 = vrot.slane %v3773, %v3780
        %v3783 = vunpack.c.l.s4 1983009808
        %v3784 = vunpack.c.0.s8 %v3783
        %v3785 = vlaneseq
        %v3786 = vshrl.u32 %v3785, 7
        %v3787 = vsub.s32 %v3784, %v3786
        %v3788 = vrot.slane %v3774, %v3787
        %v3789 = vcombine.low %v3602, %v3604
        %v3790 = vcombine.high %v3602, %v3604
        %v3792 = vunpack.c.l.s4 1983009808
        %v3793 = vunpack.c.0.s8 %v3792
        %v3794 = vlaneseq
        %v3795 = vshrl.u32 %v3794, 7
        %v3796 = vsub.s32 %v3793, %v3795
        %v3797 = vrot.slane %v3789, %v3796
        %v3799 = vunpack.c.l.s4 1983009808
        %v3800 = vunpack.c.0.s8 %v3799
        %v3801 = vlaneseq
        %v3802 = vshrl.u32 %v3801, 7
        %v3803 = vsub.s32 %v3800, %v3802
        %v3804 = vrot.slane %v3790, %v3803
        %v3805 = vcombine.low %v3749, %v3765
        %v3806 = vcombine.high %v3749, %v3765
        %v3808 = vunpack.c.l.s4 1934713408
        %v3809 = vunpack.c.0.s8 %v3808
        %v3810 = vlaneseq
        %v3811 = vshrl.u32 %v3810, 7
        %v3812 = vsub.s32 %v3809, %v3811
        %v3813 = vrot.slane %v3805, %v3812
        %v3815 = vunpack.c.l.s4 1934713408
        %v3816 = vunpack.c.0.s8 %v3815
        %v3817 = vlaneseq
        %v3818 = vshrl.u32 %v3817, 7
        %v3819 = vsub.s32 %v3816, %v3818
        %v3820 = vrot.slane %v3806, %v3819
        %v3821 = vcombine.low %v3756, %v3772
        %v3822 = vcombine.high %v3756, %v3772
        %v3824 = vunpack.c.l.s4 1934713408
        %v3825 = vunpack.c.0.s8 %v3824
        %v3826 = vlaneseq
        %v3827 = vshrl.u32 %v3826, 7
        %v3828 = vsub.s32 %v3825, %v3827
        %v3829 = vrot.slane %v3821, %v3828
        %v3831 = vunpack.c.l.s4 1934713408
        %v3832 = vunpack.c.0.s8 %v3831
        %v3833 = vlaneseq
        %v3834 = vshrl.u32 %v3833, 7
        %v3835 = vsub.s32 %v3832, %v3834
        %v3836 = vrot.slane %v3822, %v3835
        %v3837 = vcombine.low %v3781, %v3797
        %v3838 = vcombine.high %v3781, %v3797
        %v3840 = vunpack.c.l.s4 1934713408
        %v3841 = vunpack.c.0.s8 %v3840
        %v3842 = vlaneseq
        %v3843 = vshrl.u32 %v3842, 7
        %v3844 = vsub.s32 %v3841, %v3843
        %v3845 = vrot.slane %v3837, %v3844
        %v3847 = vunpack.c.l.s4 1934713408
        %v3848 = vunpack.c.0.s8 %v3847
        %v3849 = vlaneseq
        %v3850 = vshrl.u32 %v3849, 7
        %v3851 = vsub.s32 %v3848, %v3850
        %v3852 = vrot.slane %v3838, %v3851
        %v3853 = vcombine.low %v3788, %v3804
        %v3854 = vcombine.high %v3788, %v3804
        %v3856 = vunpack.c.l.s4 1934713408
        %v3857 = vunpack.c.0.s8 %v3856
        %v3858 = vlaneseq
        %v3859 = vshrl.u32 %v3858, 7
        %v3860 = vsub.s32 %v3857, %v3859
        %v3861 = vrot.slane %v3853, %v3860
        %v3863 = vunpack.c.l.s4 1934713408
        %v3864 = vunpack.c.0.s8 %v3863
        %v3865 = vlaneseq
        %v3866 = vshrl.u32 %v3865, 7
        %v3867 = vsub.s32 %v3864, %v3866
        %v3868 = vrot.slane %v3854, %v3867
        %v3869 = vcombine.low %v3813, %v3845
        %v3870 = vcombine.high %v3813, %v3845
        %v3871 = vcombine.low %v3820, %v3852
        %v3872 = vcombine.high %v3820, %v3852
        %v3873 = vcombine.low %v3829, %v3861
        %v3874 = vcombine.high %v3829, %v3861
        %v3875 = vcombine.low %v3836, %v3868
        %v3876 = vcombine.high %v3836, %v3868
        %v3877 = vcombine.low %v3733, %v3735
        %v3878 = vcombine.high %v3733, %v3735
        %v3880 = vunpack.c.l.s4 1983009808
        %v3881 = vunpack.c.0.s8 %v3880
        %v3882 = vlaneseq
        %v3883 = vshrl.u32 %v3882, 7
        %v3884 = vsub.s32 %v3881, %v3883
        %v3885 = vrot.slane %v3877, %v3884
        %v3887 = vunpack.c.l.s4 1983009808
        %v3888 = vunpack.c.0.s8 %v3887
        %v3889 = vlaneseq
        %v3890 = vshrl.u32 %v3889, 7
        %v3891 = vsub.s32 %v3888, %v3890
        %v3892 = vrot.slane %v3878, %v3891
        %v3893 = vcombine.low %v3734, %v3736
        %v3894 = vcombine.high %v3734, %v3736
        %v3896 = vunpack.c.l.s4 1983009808
        %v3897 = vunpack.c.0.s8 %v3896
        %v3898 = vlaneseq
        %v3899 = vshrl.u32 %v3898, 7
        %v3900 = vsub.s32 %v3897, %v3899
        %v3901 = vrot.slane %v3893, %v3900
        %v3903 = vunpack.c.l.s4 1983009808
        %v3904 = vunpack.c.0.s8 %v3903
        %v3905 = vlaneseq
        %v3906 = vshrl.u32 %v3905, 7
        %v3907 = vsub.s32 %v3904, %v3906
        %v3908 = vrot.slane %v3894, %v3907
        %v3909 = vcombine.low %v3737, %v3739
        %v3910 = vcombine.high %v3737, %v3739
        %v3912 = vunpack.c.l.s4 1983009808
        %v3913 = vunpack.c.0.s8 %v3912
        %v3914 = vlaneseq
        %v3915 = vshrl.u32 %v3914, 7
        %v3916 = vsub.s32 %v3913, %v3915
        %v3917 = vrot.slane %v3909, %v3916
        %v3919 = vunpack.c.l.s4 1983009808
        %v3920 = vunpack.c.0.s8 %v3919
        %v3921 = vlaneseq
        %v3922 = vshrl.u32 %v3921, 7
        %v3923 = vsub.s32 %v3920, %v3922
        %v3924 = vrot.slane %v3910, %v3923
        %v3925 = vcombine.low %v3738, %v3740
        %v3926 = vcombine.high %v3738, %v3740
        %v3928 = vunpack.c.l.s4 1983009808
        %v3929 = vunpack.c.0.s8 %v3928
        %v3930 = vlaneseq
        %v3931 = vshrl.u32 %v3930, 7
        %v3932 = vsub.s32 %v3929, %v3931
        %v3933 = vrot.slane %v3925, %v3932
        %v3935 = vunpack.c.l.s4 1983009808
        %v3936 = vunpack.c.0.s8 %v3935
        %v3937 = vlaneseq
        %v3938 = vshrl.u32 %v3937, 7
        %v3939 = vsub.s32 %v3936, %v3938
        %v3940 = vrot.slane %v3926, %v3939
        %v3941 = vcombine.low %v3885, %v3901
        %v3942 = vcombine.high %v3885, %v3901
        %v3944 = vunpack.c.l.s4 1934713408
        %v3945 = vunpack.c.0.s8 %v3944
        %v3946 = vlaneseq
        %v3947 = vshrl.u32 %v3946, 7
        %v3948 = vsub.s32 %v3945, %v3947
        %v3949 = vrot.slane %v3941, %v3948
        %v3951 = vunpack.c.l.s4 1934713408
        %v3952 = vunpack.c.0.s8 %v3951
        %v3953 = vlaneseq
        %v3954 = vshrl.u32 %v3953, 7
        %v3955 = vsub.s32 %v3952, %v3954
        %v3956 = vrot.slane %v3942, %v3955
        %v3957 = vcombine.low %v3892, %v3908
        %v3958 = vcombine.high %v3892, %v3908
        %v3960 = vunpack.c.l.s4 1934713408
        %v3961 = vunpack.c.0.s8 %v3960
        %v3962 = vlaneseq
        %v3963 = vshrl.u32 %v3962, 7
        %v3964 = vsub.s32 %v3961, %v3963
        %v3965 = vrot.slane %v3957, %v3964
        %v3967 = vunpack.c.l.s4 1934713408
        %v3968 = vunpack.c.0.s8 %v3967
        %v3969 = vlaneseq
        %v3970 = vshrl.u32 %v3969, 7
        %v3971 = vsub.s32 %v3968, %v3970
        %v3972 = vrot.slane %v3958, %v3971
        %v3973 = vcombine.low %v3917, %v3933
        %v3974 = vcombine.high %v3917, %v3933
        %v3976 = vunpack.c.l.s4 1934713408
        %v3977 = vunpack.c.0.s8 %v3976
        %v3978 = vlaneseq
        %v3979 = vshrl.u32 %v3978, 7
        %v3980 = vsub.s32 %v3977, %v3979
        %v3981 = vrot.slane %v3973, %v3980
        %v3983 = vunpack.c.l.s4 1934713408
        %v3984 = vunpack.c.0.s8 %v3983
        %v3985 = vlaneseq
        %v3986 = vshrl.u32 %v3985, 7
        %v3987 = vsub.s32 %v3984, %v3986
        %v3988 = vrot.slane %v3974, %v3987
        %v3989 = vcombine.low %v3924, %v3940
        %v3990 = vcombine.high %v3924, %v3940
        %v3992 = vunpack.c.l.s4 1934713408
        %v3993 = vunpack.c.0.s8 %v3992
        %v3994 = vlaneseq
        %v3995 = vshrl.u32 %v3994, 7
        %v3996 = vsub.s32 %v3993, %v3995
        %v3997 = vrot.slane %v3989, %v3996
        %v3999 = vunpack.c.l.s4 1934713408
        %v4000 = vunpack.c.0.s8 %v3999
        %v4001 = vlaneseq
        %v4002 = vshrl.u32 %v4001, 7
        %v4003 = vsub.s32 %v4000, %v4002
        %v4004 = vrot.slane %v3990, %v4003
        %v4005 = vcombine.low %v3949, %v3981
        %v4006 = vcombine.high %v3949, %v3981
        %v4007 = vcombine.low %v3956, %v3988
        %v4008 = vcombine.high %v3956, %v3988
        %v4009 = vcombine.low %v3965, %v3997
        %v4010 = vcombine.high %v3965, %v3997
        %v4011 = vcombine.low %v3972, %v4004
        %v4012 = vcombine.high %v3972, %v4004
        %v4013 = vpack.c.bf16 %v4005, %v3869
        %v4014 = vpack.c.bf16 %v4006, %v3870
        %v4015 = vpack.c.bf16 %v4007, %v3871
        %v4016 = vpack.c.bf16 %v4008, %v3872
        %v4017 = vpack.c.bf16 %v4009, %v3873
        %v4018 = vpack.c.bf16 %v4010, %v3874
        %v4019 = vpack.c.bf16 %v4011, %v3875
        %v4020 = vpack.c.bf16 %v4012, %v3876
        %4022 = vrot.lane.b32.xlu0 %v502, 112
        %v4023 = vpop.permute.xlu0 %4022
        %4025 = vrot.lane.b32.xlu0 %v502, 96
        %v4026 = vpop.permute.xlu0 %4025
        %4028 = vrot.lane.b32.xlu0 %v502, 80
        %v4029 = vpop.permute.xlu0 %4028
        %4031 = vrot.lane.b32.xlu0 %v502, 64
        %v4032 = vpop.permute.xlu0 %4031
        %4034 = vrot.lane.b32.xlu0 %v502, 48
        %v4035 = vpop.permute.xlu0 %4034
        %4037 = vrot.lane.b32.xlu0 %v502, 32
        %v4038 = vpop.permute.xlu0 %4037
        %4040 = vrot.lane.b32.xlu0 %v502, 16
        %v4041 = vpop.permute.xlu0 %4040
        %v4043 = vcombine.low %v502, %v4026
        %v4044 = vcombine.high %v502, %v4026
        %v4046 = vunpack.c.l.s4 1983009808
        %v4047 = vunpack.c.0.s8 %v4046
        %v4048 = vlaneseq
        %v4049 = vshrl.u32 %v4048, 7
        %v4050 = vsub.s32 %v4047, %v4049
        %v4051 = vrot.slane %v4043, %v4050
        %v4053 = vunpack.c.l.s4 1983009808
        %v4054 = vunpack.c.0.s8 %v4053
        %v4055 = vlaneseq
        %v4056 = vshrl.u32 %v4055, 7
        %v4057 = vsub.s32 %v4054, %v4056
        %v4058 = vrot.slane %v4044, %v4057
        %v4059 = vcombine.low %v4023, %v4029
        %v4060 = vcombine.high %v4023, %v4029
        %v4062 = vunpack.c.l.s4 1983009808
        %v4063 = vunpack.c.0.s8 %v4062
        %v4064 = vlaneseq
        %v4065 = vshrl.u32 %v4064, 7
        %v4066 = vsub.s32 %v4063, %v4065
        %v4067 = vrot.slane %v4059, %v4066
        %v4069 = vunpack.c.l.s4 1983009808
        %v4070 = vunpack.c.0.s8 %v4069
        %v4071 = vlaneseq
        %v4072 = vshrl.u32 %v4071, 7
        %v4073 = vsub.s32 %v4070, %v4072
        %v4074 = vrot.slane %v4060, %v4073
        %v4075 = vcombine.low %v4032, %v4038
        %v4076 = vcombine.high %v4032, %v4038
        %v4078 = vunpack.c.l.s4 1983009808
        %v4079 = vunpack.c.0.s8 %v4078
        %v4080 = vlaneseq
        %v4081 = vshrl.u32 %v4080, 7
        %v4082 = vsub.s32 %v4079, %v4081
        %v4083 = vrot.slane %v4075, %v4082
        %v4085 = vunpack.c.l.s4 1983009808
        %v4086 = vunpack.c.0.s8 %v4085
        %v4087 = vlaneseq
        %v4088 = vshrl.u32 %v4087, 7
        %v4089 = vsub.s32 %v4086, %v4088
        %v4090 = vrot.slane %v4076, %v4089
        %v4091 = vcombine.low %v4035, %v4041
        %v4092 = vcombine.high %v4035, %v4041
        %v4094 = vunpack.c.l.s4 1983009808
        %v4095 = vunpack.c.0.s8 %v4094
        %v4096 = vlaneseq
        %v4097 = vshrl.u32 %v4096, 7
        %v4098 = vsub.s32 %v4095, %v4097
        %v4099 = vrot.slane %v4091, %v4098
        %v4101 = vunpack.c.l.s4 1983009808
        %v4102 = vunpack.c.0.s8 %v4101
        %v4103 = vlaneseq
        %v4104 = vshrl.u32 %v4103, 7
        %v4105 = vsub.s32 %v4102, %v4104
        %v4106 = vrot.slane %v4092, %v4105
        %v4107 = vcombine.low %v4051, %v4067
        %v4108 = vcombine.high %v4051, %v4067
        %v4110 = vunpack.c.l.s4 1934713408
        %v4111 = vunpack.c.0.s8 %v4110
        %v4112 = vlaneseq
        %v4113 = vshrl.u32 %v4112, 7
        %v4114 = vsub.s32 %v4111, %v4113
        %v4115 = vrot.slane %v4107, %v4114
        %v4117 = vunpack.c.l.s4 1934713408
        %v4118 = vunpack.c.0.s8 %v4117
        %v4119 = vlaneseq
        %v4120 = vshrl.u32 %v4119, 7
        %v4121 = vsub.s32 %v4118, %v4120
        %v4122 = vrot.slane %v4108, %v4121
        %v4123 = vcombine.low %v4058, %v4074
        %v4124 = vcombine.high %v4058, %v4074
        %v4126 = vunpack.c.l.s4 1934713408
        %v4127 = vunpack.c.0.s8 %v4126
        %v4128 = vlaneseq
        %v4129 = vshrl.u32 %v4128, 7
        %v4130 = vsub.s32 %v4127, %v4129
        %v4131 = vrot.slane %v4123, %v4130
        %v4133 = vunpack.c.l.s4 1934713408
        %v4134 = vunpack.c.0.s8 %v4133
        %v4135 = vlaneseq
        %v4136 = vshrl.u32 %v4135, 7
        %v4137 = vsub.s32 %v4134, %v4136
        %v4138 = vrot.slane %v4124, %v4137
        %v4139 = vcombine.low %v4083, %v4099
        %v4140 = vcombine.high %v4083, %v4099
        %v4142 = vunpack.c.l.s4 1934713408
        %v4143 = vunpack.c.0.s8 %v4142
        %v4144 = vlaneseq
        %v4145 = vshrl.u32 %v4144, 7
        %v4146 = vsub.s32 %v4143, %v4145
        %v4147 = vrot.slane %v4139, %v4146
        %v4149 = vunpack.c.l.s4 1934713408
        %v4150 = vunpack.c.0.s8 %v4149
        %v4151 = vlaneseq
        %v4152 = vshrl.u32 %v4151, 7
        %v4153 = vsub.s32 %v4150, %v4152
        %v4154 = vrot.slane %v4140, %v4153
        %v4155 = vcombine.low %v4090, %v4106
        %v4156 = vcombine.high %v4090, %v4106
        %v4158 = vunpack.c.l.s4 1934713408
        %v4159 = vunpack.c.0.s8 %v4158
        %v4160 = vlaneseq
        %v4161 = vshrl.u32 %v4160, 7
        %v4162 = vsub.s32 %v4159, %v4161
        %v4163 = vrot.slane %v4155, %v4162
        %v4165 = vunpack.c.l.s4 1934713408
        %v4166 = vunpack.c.0.s8 %v4165
        %v4167 = vlaneseq
        %v4168 = vshrl.u32 %v4167, 7
        %v4169 = vsub.s32 %v4166, %v4168
        %v4170 = vrot.slane %v4156, %v4169
        %v4171 = vcombine.low %v4115, %v4147
        %v4172 = vcombine.high %v4115, %v4147
        %v4173 = vcombine.low %v4122, %v4154
        %v4174 = vcombine.high %v4122, %v4154
        %v4175 = vcombine.low %v4131, %v4163
        %v4176 = vcombine.high %v4131, %v4163
        %v4177 = vcombine.low %v4138, %v4170
        %v4178 = vcombine.high %v4138, %v4170
        %v4179 = vcombine.low %v4171, %v4173
        %v4180 = vcombine.high %v4171, %v4173
        %v4182 = vunpack.c.l.s4 1983009808
        %v4183 = vunpack.c.0.s8 %v4182
        %v4184 = vlaneseq
        %v4185 = vshrl.u32 %v4184, 7
        %v4186 = vsub.s32 %v4183, %v4185
        %v4187 = vrot.slane %v4179, %v4186
        %v4189 = vunpack.c.l.s4 1983009808
        %v4190 = vunpack.c.0.s8 %v4189
        %v4191 = vlaneseq
        %v4192 = vshrl.u32 %v4191, 7
        %v4193 = vsub.s32 %v4190, %v4192
        %v4194 = vrot.slane %v4180, %v4193
        %v4195 = vcombine.low %v4172, %v4174
        %v4196 = vcombine.high %v4172, %v4174
        %v4198 = vunpack.c.l.s4 1983009808
        %v4199 = vunpack.c.0.s8 %v4198
        %v4200 = vlaneseq
        %v4201 = vshrl.u32 %v4200, 7
        %v4202 = vsub.s32 %v4199, %v4201
        %v4203 = vrot.slane %v4195, %v4202
        %v4205 = vunpack.c.l.s4 1983009808
        %v4206 = vunpack.c.0.s8 %v4205
        %v4207 = vlaneseq
        %v4208 = vshrl.u32 %v4207, 7
        %v4209 = vsub.s32 %v4206, %v4208
        %v4210 = vrot.slane %v4196, %v4209
        %v4211 = vcombine.low %v4175, %v4177
        %v4212 = vcombine.high %v4175, %v4177
        %v4214 = vunpack.c.l.s4 1983009808
        %v4215 = vunpack.c.0.s8 %v4214
        %v4216 = vlaneseq
        %v4217 = vshrl.u32 %v4216, 7
        %v4218 = vsub.s32 %v4215, %v4217
        %v4219 = vrot.slane %v4211, %v4218
        %v4221 = vunpack.c.l.s4 1983009808
        %v4222 = vunpack.c.0.s8 %v4221
        %v4223 = vlaneseq
        %v4224 = vshrl.u32 %v4223, 7
        %v4225 = vsub.s32 %v4222, %v4224
        %v4226 = vrot.slane %v4212, %v4225
        %v4227 = vcombine.low %v4176, %v4178
        %v4228 = vcombine.high %v4176, %v4178
        %v4230 = vunpack.c.l.s4 1983009808
        %v4231 = vunpack.c.0.s8 %v4230
        %v4232 = vlaneseq
        %v4233 = vshrl.u32 %v4232, 7
        %v4234 = vsub.s32 %v4231, %v4233
        %v4235 = vrot.slane %v4227, %v4234
        %v4237 = vunpack.c.l.s4 1983009808
        %v4238 = vunpack.c.0.s8 %v4237
        %v4239 = vlaneseq
        %v4240 = vshrl.u32 %v4239, 7
        %v4241 = vsub.s32 %v4238, %v4240
        %v4242 = vrot.slane %v4228, %v4241
        %v4243 = vcombine.low %v4187, %v4203
        %v4244 = vcombine.high %v4187, %v4203
        %v4246 = vunpack.c.l.s4 1934713408
        %v4247 = vunpack.c.0.s8 %v4246
        %v4248 = vlaneseq
        %v4249 = vshrl.u32 %v4248, 7
        %v4250 = vsub.s32 %v4247, %v4249
        %v4251 = vrot.slane %v4243, %v4250
        %v4253 = vunpack.c.l.s4 1934713408
        %v4254 = vunpack.c.0.s8 %v4253
        %v4255 = vlaneseq
        %v4256 = vshrl.u32 %v4255, 7
        %v4257 = vsub.s32 %v4254, %v4256
        %v4258 = vrot.slane %v4244, %v4257
        %v4259 = vcombine.low %v4194, %v4210
        %v4260 = vcombine.high %v4194, %v4210
        %v4262 = vunpack.c.l.s4 1934713408
        %v4263 = vunpack.c.0.s8 %v4262
        %v4264 = vlaneseq
        %v4265 = vshrl.u32 %v4264, 7
        %v4266 = vsub.s32 %v4263, %v4265
        %v4267 = vrot.slane %v4259, %v4266
        %v4269 = vunpack.c.l.s4 1934713408
        %v4270 = vunpack.c.0.s8 %v4269
        %v4271 = vlaneseq
        %v4272 = vshrl.u32 %v4271, 7
        %v4273 = vsub.s32 %v4270, %v4272
        %v4274 = vrot.slane %v4260, %v4273
        %v4275 = vcombine.low %v4219, %v4235
        %v4276 = vcombine.high %v4219, %v4235
        %v4278 = vunpack.c.l.s4 1934713408
        %v4279 = vunpack.c.0.s8 %v4278
        %v4280 = vlaneseq
        %v4281 = vshrl.u32 %v4280, 7
        %v4282 = vsub.s32 %v4279, %v4281
        %v4283 = vrot.slane %v4275, %v4282
        %v4285 = vunpack.c.l.s4 1934713408
        %v4286 = vunpack.c.0.s8 %v4285
        %v4287 = vlaneseq
        %v4288 = vshrl.u32 %v4287, 7
        %v4289 = vsub.s32 %v4286, %v4288
        %v4290 = vrot.slane %v4276, %v4289
        %v4291 = vcombine.low %v4226, %v4242
        %v4292 = vcombine.high %v4226, %v4242
        %v4294 = vunpack.c.l.s4 1934713408
        %v4295 = vunpack.c.0.s8 %v4294
        %v4296 = vlaneseq
        %v4297 = vshrl.u32 %v4296, 7
        %v4298 = vsub.s32 %v4295, %v4297
        %v4299 = vrot.slane %v4291, %v4298
        %v4301 = vunpack.c.l.s4 1934713408
        %v4302 = vunpack.c.0.s8 %v4301
        %v4303 = vlaneseq
        %v4304 = vshrl.u32 %v4303, 7
        %v4305 = vsub.s32 %v4302, %v4304
        %v4306 = vrot.slane %v4292, %v4305
        %v4307 = vcombine.low %v4251, %v4283
        %v4308 = vcombine.high %v4251, %v4283
        %v4309 = vcombine.low %v4258, %v4290
        %v4310 = vcombine.high %v4258, %v4290
        %v4311 = vcombine.low %v4267, %v4299
        %v4312 = vcombine.high %v4267, %v4299
        %v4313 = vcombine.low %v4274, %v4306
        %v4314 = vcombine.high %v4274, %v4306
        %v4315 = vpack.c.bf16 %v4307, %v4307
        %v4316 = vpack.c.bf16 %v4308, %v4308
        %v4317 = vpack.c.bf16 %v4309, %v4309
        %v4318 = vpack.c.bf16 %v4310, %v4310
        %v4319 = vpack.c.bf16 %v4311, %v4311
        %v4320 = vpack.c.bf16 %v4312, %v4312
        %v4321 = vpack.c.bf16 %v4313, %v4313
        %v4322 = vpack.c.bf16 %v4314, %v4314
        %4324 = vrot.lane.b32.xlu0 %v541, 112
        %v4325 = vpop.permute.xlu0 %4324
        %4327 = vrot.lane.b32.xlu0 %v541, 96
        %v4328 = vpop.permute.xlu0 %4327
        %4330 = vrot.lane.b32.xlu0 %v541, 80
        %v4331 = vpop.permute.xlu0 %4330
        %4333 = vrot.lane.b32.xlu0 %v541, 64
        %v4334 = vpop.permute.xlu0 %4333
        %4336 = vrot.lane.b32.xlu0 %v541, 48
        %v4337 = vpop.permute.xlu0 %4336
        %4339 = vrot.lane.b32.xlu0 %v541, 32
        %v4340 = vpop.permute.xlu0 %4339
        %4342 = vrot.lane.b32.xlu0 %v541, 16
        %v4343 = vpop.permute.xlu0 %4342
        %v4345 = vcombine.low %v541, %v4328
        %v4346 = vcombine.high %v541, %v4328
        %v4348 = vunpack.c.l.s4 1983009808
        %v4349 = vunpack.c.0.s8 %v4348
        %v4350 = vlaneseq
        %v4351 = vshrl.u32 %v4350, 7
        %v4352 = vsub.s32 %v4349, %v4351
        %v4353 = vrot.slane %v4345, %v4352
        %v4355 = vunpack.c.l.s4 1983009808
        %v4356 = vunpack.c.0.s8 %v4355
        %v4357 = vlaneseq
        %v4358 = vshrl.u32 %v4357, 7
        %v4359 = vsub.s32 %v4356, %v4358
        %v4360 = vrot.slane %v4346, %v4359
        %v4361 = vcombine.low %v4325, %v4331
        %v4362 = vcombine.high %v4325, %v4331
        %v4364 = vunpack.c.l.s4 1983009808
        %v4365 = vunpack.c.0.s8 %v4364
        %v4366 = vlaneseq
        %v4367 = vshrl.u32 %v4366, 7
        %v4368 = vsub.s32 %v4365, %v4367
        %v4369 = vrot.slane %v4361, %v4368
        %v4371 = vunpack.c.l.s4 1983009808
        %v4372 = vunpack.c.0.s8 %v4371
        %v4373 = vlaneseq
        %v4374 = vshrl.u32 %v4373, 7
        %v4375 = vsub.s32 %v4372, %v4374
        %v4376 = vrot.slane %v4362, %v4375
        %v4377 = vcombine.low %v4334, %v4340
        %v4378 = vcombine.high %v4334, %v4340
        %v4380 = vunpack.c.l.s4 1983009808
        %v4381 = vunpack.c.0.s8 %v4380
        %v4382 = vlaneseq
        %v4383 = vshrl.u32 %v4382, 7
        %v4384 = vsub.s32 %v4381, %v4383
        %v4385 = vrot.slane %v4377, %v4384
        %v4387 = vunpack.c.l.s4 1983009808
        %v4388 = vunpack.c.0.s8 %v4387
        %v4389 = vlaneseq
        %v4390 = vshrl.u32 %v4389, 7
        %v4391 = vsub.s32 %v4388, %v4390
        %v4392 = vrot.slane %v4378, %v4391
        %v4393 = vcombine.low %v4337, %v4343
        %v4394 = vcombine.high %v4337, %v4343
        %v4396 = vunpack.c.l.s4 1983009808
        %v4397 = vunpack.c.0.s8 %v4396
        %v4398 = vlaneseq
        %v4399 = vshrl.u32 %v4398, 7
        %v4400 = vsub.s32 %v4397, %v4399
        %v4401 = vrot.slane %v4393, %v4400
        %v4403 = vunpack.c.l.s4 1983009808
        %v4404 = vunpack.c.0.s8 %v4403
        %v4405 = vlaneseq
        %v4406 = vshrl.u32 %v4405, 7
        %v4407 = vsub.s32 %v4404, %v4406
        %v4408 = vrot.slane %v4394, %v4407
        %v4409 = vcombine.low %v4353, %v4369
        %v4410 = vcombine.high %v4353, %v4369
        %v4412 = vunpack.c.l.s4 1934713408
        %v4413 = vunpack.c.0.s8 %v4412
        %v4414 = vlaneseq
        %v4415 = vshrl.u32 %v4414, 7
        %v4416 = vsub.s32 %v4413, %v4415
        %v4417 = vrot.slane %v4409, %v4416
        %v4419 = vunpack.c.l.s4 1934713408
        %v4420 = vunpack.c.0.s8 %v4419
        %v4421 = vlaneseq
        %v4422 = vshrl.u32 %v4421, 7
        %v4423 = vsub.s32 %v4420, %v4422
        %v4424 = vrot.slane %v4410, %v4423
        %v4425 = vcombine.low %v4360, %v4376
        %v4426 = vcombine.high %v4360, %v4376
        %v4428 = vunpack.c.l.s4 1934713408
        %v4429 = vunpack.c.0.s8 %v4428
        %v4430 = vlaneseq
        %v4431 = vshrl.u32 %v4430, 7
        %v4432 = vsub.s32 %v4429, %v4431
        %v4433 = vrot.slane %v4425, %v4432
        %v4435 = vunpack.c.l.s4 1934713408
        %v4436 = vunpack.c.0.s8 %v4435
        %v4437 = vlaneseq
        %v4438 = vshrl.u32 %v4437, 7
        %v4439 = vsub.s32 %v4436, %v4438
        %v4440 = vrot.slane %v4426, %v4439
        %v4441 = vcombine.low %v4385, %v4401
        %v4442 = vcombine.high %v4385, %v4401
        %v4444 = vunpack.c.l.s4 1934713408
        %v4445 = vunpack.c.0.s8 %v4444
        %v4446 = vlaneseq
        %v4447 = vshrl.u32 %v4446, 7
        %v4448 = vsub.s32 %v4445, %v4447
        %v4449 = vrot.slane %v4441, %v4448
        %v4451 = vunpack.c.l.s4 1934713408
        %v4452 = vunpack.c.0.s8 %v4451
        %v4453 = vlaneseq
        %v4454 = vshrl.u32 %v4453, 7
        %v4455 = vsub.s32 %v4452, %v4454
        %v4456 = vrot.slane %v4442, %v4455
        %v4457 = vcombine.low %v4392, %v4408
        %v4458 = vcombine.high %v4392, %v4408
        %v4460 = vunpack.c.l.s4 1934713408
        %v4461 = vunpack.c.0.s8 %v4460
        %v4462 = vlaneseq
        %v4463 = vshrl.u32 %v4462, 7
        %v4464 = vsub.s32 %v4461, %v4463
        %v4465 = vrot.slane %v4457, %v4464
        %v4467 = vunpack.c.l.s4 1934713408
        %v4468 = vunpack.c.0.s8 %v4467
        %v4469 = vlaneseq
        %v4470 = vshrl.u32 %v4469, 7
        %v4471 = vsub.s32 %v4468, %v4470
        %v4472 = vrot.slane %v4458, %v4471
        %v4473 = vcombine.low %v4417, %v4449
        %v4474 = vcombine.high %v4417, %v4449
        %v4475 = vcombine.low %v4424, %v4456
        %v4476 = vcombine.high %v4424, %v4456
        %v4477 = vcombine.low %v4433, %v4465
        %v4478 = vcombine.high %v4433, %v4465
        %v4479 = vcombine.low %v4440, %v4472
        %v4480 = vcombine.high %v4440, %v4472
        %v4481 = vcombine.low %v4473, %v4475
        %v4482 = vcombine.high %v4473, %v4475
        %v4484 = vunpack.c.l.s4 1983009808
        %v4485 = vunpack.c.0.s8 %v4484
        %v4486 = vlaneseq
        %v4487 = vshrl.u32 %v4486, 7
        %v4488 = vsub.s32 %v4485, %v4487
        %v4489 = vrot.slane %v4481, %v4488
        %v4491 = vunpack.c.l.s4 1983009808
        %v4492 = vunpack.c.0.s8 %v4491
        %v4493 = vlaneseq
        %v4494 = vshrl.u32 %v4493, 7
        %v4495 = vsub.s32 %v4492, %v4494
        %v4496 = vrot.slane %v4482, %v4495
        %v4497 = vcombine.low %v4474, %v4476
        %v4498 = vcombine.high %v4474, %v4476
        %v4500 = vunpack.c.l.s4 1983009808
        %v4501 = vunpack.c.0.s8 %v4500
        %v4502 = vlaneseq
        %v4503 = vshrl.u32 %v4502, 7
        %v4504 = vsub.s32 %v4501, %v4503
        %v4505 = vrot.slane %v4497, %v4504
        %v4507 = vunpack.c.l.s4 1983009808
        %v4508 = vunpack.c.0.s8 %v4507
        %v4509 = vlaneseq
        %v4510 = vshrl.u32 %v4509, 7
        %v4511 = vsub.s32 %v4508, %v4510
        %v4512 = vrot.slane %v4498, %v4511
        %v4513 = vcombine.low %v4477, %v4479
        %v4514 = vcombine.high %v4477, %v4479
        %v4516 = vunpack.c.l.s4 1983009808
        %v4517 = vunpack.c.0.s8 %v4516
        %v4518 = vlaneseq
        %v4519 = vshrl.u32 %v4518, 7
        %v4520 = vsub.s32 %v4517, %v4519
        %v4521 = vrot.slane %v4513, %v4520
        %v4523 = vunpack.c.l.s4 1983009808
        %v4524 = vunpack.c.0.s8 %v4523
        %v4525 = vlaneseq
        %v4526 = vshrl.u32 %v4525, 7
        %v4527 = vsub.s32 %v4524, %v4526
        %v4528 = vrot.slane %v4514, %v4527
        %v4529 = vcombine.low %v4478, %v4480
        %v4530 = vcombine.high %v4478, %v4480
        %v4532 = vunpack.c.l.s4 1983009808
        %v4533 = vunpack.c.0.s8 %v4532
        %v4534 = vlaneseq
        %v4535 = vshrl.u32 %v4534, 7
        %v4536 = vsub.s32 %v4533, %v4535
        %v4537 = vrot.slane %v4529, %v4536
        %v4539 = vunpack.c.l.s4 1983009808
        %v4540 = vunpack.c.0.s8 %v4539
        %v4541 = vlaneseq
        %v4542 = vshrl.u32 %v4541, 7
        %v4543 = vsub.s32 %v4540, %v4542
        %v4544 = vrot.slane %v4530, %v4543
        %v4545 = vcombine.low %v4489, %v4505
        %v4546 = vcombine.high %v4489, %v4505
        %v4548 = vunpack.c.l.s4 1934713408
        %v4549 = vunpack.c.0.s8 %v4548
        %v4550 = vlaneseq
        %v4551 = vshrl.u32 %v4550, 7
        %v4552 = vsub.s32 %v4549, %v4551
        %v4553 = vrot.slane %v4545, %v4552
        %v4555 = vunpack.c.l.s4 1934713408
        %v4556 = vunpack.c.0.s8 %v4555
        %v4557 = vlaneseq
        %v4558 = vshrl.u32 %v4557, 7
        %v4559 = vsub.s32 %v4556, %v4558
        %v4560 = vrot.slane %v4546, %v4559
        %v4561 = vcombine.low %v4496, %v4512
        %v4562 = vcombine.high %v4496, %v4512
        %v4564 = vunpack.c.l.s4 1934713408
        %v4565 = vunpack.c.0.s8 %v4564
        %v4566 = vlaneseq
        %v4567 = vshrl.u32 %v4566, 7
        %v4568 = vsub.s32 %v4565, %v4567
        %v4569 = vrot.slane %v4561, %v4568
        %v4571 = vunpack.c.l.s4 1934713408
        %v4572 = vunpack.c.0.s8 %v4571
        %v4573 = vlaneseq
        %v4574 = vshrl.u32 %v4573, 7
        %v4575 = vsub.s32 %v4572, %v4574
        %v4576 = vrot.slane %v4562, %v4575
        %v4577 = vcombine.low %v4521, %v4537
        %v4578 = vcombine.high %v4521, %v4537
        %v4580 = vunpack.c.l.s4 1934713408
        %v4581 = vunpack.c.0.s8 %v4580
        %v4582 = vlaneseq
        %v4583 = vshrl.u32 %v4582, 7
        %v4584 = vsub.s32 %v4581, %v4583
        %v4585 = vrot.slane %v4577, %v4584
        %v4587 = vunpack.c.l.s4 1934713408
        %v4588 = vunpack.c.0.s8 %v4587
        %v4589 = vlaneseq
        %v4590 = vshrl.u32 %v4589, 7
        %v4591 = vsub.s32 %v4588, %v4590
        %v4592 = vrot.slane %v4578, %v4591
        %v4593 = vcombine.low %v4528, %v4544
        %v4594 = vcombine.high %v4528, %v4544
        %v4596 = vunpack.c.l.s4 1934713408
        %v4597 = vunpack.c.0.s8 %v4596
        %v4598 = vlaneseq
        %v4599 = vshrl.u32 %v4598, 7
        %v4600 = vsub.s32 %v4597, %v4599
        %v4601 = vrot.slane %v4593, %v4600
        %v4603 = vunpack.c.l.s4 1934713408
        %v4604 = vunpack.c.0.s8 %v4603
        %v4605 = vlaneseq
        %v4606 = vshrl.u32 %v4605, 7
        %v4607 = vsub.s32 %v4604, %v4606
        %v4608 = vrot.slane %v4594, %v4607
        %v4609 = vcombine.low %v4553, %v4585
        %v4610 = vcombine.high %v4553, %v4585
        %v4611 = vcombine.low %v4560, %v4592
        %v4612 = vcombine.high %v4560, %v4592
        %v4613 = vcombine.low %v4569, %v4601
        %v4614 = vcombine.high %v4569, %v4601
        %v4615 = vcombine.low %v4576, %v4608
        %v4616 = vcombine.high %v4576, %v4608
        %v4617 = vpack.c.bf16 %v4609, %v4609
        %v4618 = vpack.c.bf16 %v4610, %v4610
        %v4619 = vpack.c.bf16 %v4611, %v4611
        %v4620 = vpack.c.bf16 %v4612, %v4612
        %v4621 = vpack.c.bf16 %v4613, %v4613
        %v4622 = vpack.c.bf16 %v4614, %v4614
        %v4623 = vpack.c.bf16 %v4615, %v4615
        %v4624 = vpack.c.bf16 %v4616, %v4616
        %v4626 = vsel %vm2190, %v4013, 0
        %v4629 = vsel %vm2190, %v4315, 0
        %4631 = vmatprep.subr.bf16.mxu0 0
        %4632 = vmatpush1.bf16.xpose.msra.mxu0 %v4629
        %4633 = vmatprep.subr.bf16.mxu0 0
        %4634 = vmatpush1.bf16.xpose.msra.mxu0 0
        %4635 = vmatprep.subr.bf16.mxu0 0
        %4636 = vmatpush1.bf16.xpose.msra.mxu0 0
        %4637 = vmatprep.subr.bf16.mxu0 0
        %4638 = vmatpush1.bf16.xpose.msra.mxu0 0
        %4639 = vmatprep.subr.bf16.mxu0 0
        %4640 = vmatpush1.bf16.xpose.msra.mxu0 0
        %4641 = vmatprep.subr.bf16.mxu0 0
        %4642 = vmatpush1.bf16.xpose.msra.mxu0 0
        %4643 = vmatprep.subr.bf16.mxu0 0
        %4644 = vmatpush1.bf16.xpose.msra.mxu0 0
        %4645 = vmatprep.subr.bf16.mxu0 0
        %4646 = vmatpush1.bf16.xpose.msra.mxu0 0
        %4647 = vmatprep.subr.bf16.mxu0 0
        %4648 = vmatpush1.bf16.xpose.msra.mxu0 0
        %4649 = vmatprep.subr.bf16.mxu0 0
        %4650 = vmatpush1.bf16.xpose.msra.mxu0 0
        %4651 = vmatprep.subr.bf16.mxu0 0
        %4652 = vmatpush1.bf16.xpose.msra.mxu0 0
        %4653 = vmatprep.subr.bf16.mxu0 0
        %4654 = vmatpush1.bf16.xpose.msra.mxu0 0
        %4655 = vmatprep.subr.bf16.mxu0 0
        %4656 = vmatpush1.bf16.xpose.msra.mxu0 0
        %4657 = vmatprep.subr.bf16.mxu0 0
        %4658 = vmatpush1.bf16.xpose.msra.mxu0 0
        %4659 = vmatprep.subr.bf16.mxu0 0
        %4660 = vmatpush1.bf16.xpose.msra.mxu0 0
        %4661 = vmatprep.subr.bf16.mxu0 0
        %4662 = vmatpush1.bf16.xpose.msra.mxu0 0
        %4663 = vmatprep.mubr.bf16.mxu0 0
        %4664 = vmatmul.mubr.bf16.gmra.mrb[0].mxu0 %v4626
        %v4665 = vpop.f32.mrb[0].mxu0
        %v4666 = vadd.f32 0.0, %v4665
        %v4667 = vpop.f32.mrb[0].mxu0
        %v4668 = vpop.f32.mrb[0].mxu0
        %v4669 = vadd.f32 0.0, %v4668
        %v4670 = vpop.f32.mrb[0].mxu0
        %4671 = vdwg.mxu0
        %v4673 = vsel %vm2190, %v4014, 0
        %v4676 = vsel %vm2190, %v4316, 0
        %4678 = vmatprep.subr.bf16.mxu0 0
        %4679 = vmatpush1.bf16.xpose.msra.mxu0 %v4676
        %4680 = vmatprep.subr.bf16.mxu0 0
        %4681 = vmatpush1.bf16.xpose.msra.mxu0 0
        %4682 = vmatprep.subr.bf16.mxu0 0
        %4683 = vmatpush1.bf16.xpose.msra.mxu0 0
        %4684 = vmatprep.subr.bf16.mxu0 0
        %4685 = vmatpush1.bf16.xpose.msra.mxu0 0
        %4686 = vmatprep.subr.bf16.mxu0 0
        %4687 = vmatpush1.bf16.xpose.msra.mxu0 0
        %4688 = vmatprep.subr.bf16.mxu0 0
        %4689 = vmatpush1.bf16.xpose.msra.mxu0 0
        %4690 = vmatprep.subr.bf16.mxu0 0
        %4691 = vmatpush1.bf16.xpose.msra.mxu0 0
        %4692 = vmatprep.subr.bf16.mxu0 0
        %4693 = vmatpush1.bf16.xpose.msra.mxu0 0
        %4694 = vmatprep.subr.bf16.mxu0 0
        %4695 = vmatpush1.bf16.xpose.msra.mxu0 0
        %4696 = vmatprep.subr.bf16.mxu0 0
        %4697 = vmatpush1.bf16.xpose.msra.mxu0 0
        %4698 = vmatprep.subr.bf16.mxu0 0
        %4699 = vmatpush1.bf16.xpose.msra.mxu0 0
        %4700 = vmatprep.subr.bf16.mxu0 0
        %4701 = vmatpush1.bf16.xpose.msra.mxu0 0
        %4702 = vmatprep.subr.bf16.mxu0 0
        %4703 = vmatpush1.bf16.xpose.msra.mxu0 0
        %4704 = vmatprep.subr.bf16.mxu0 0
        %4705 = vmatpush1.bf16.xpose.msra.mxu0 0
        %4706 = vmatprep.subr.bf16.mxu0 0
        %4707 = vmatpush1.bf16.xpose.msra.mxu0 0
        %4708 = vmatprep.subr.bf16.mxu0 0
        %4709 = vmatpush1.bf16.xpose.msra.mxu0 0
        %4710 = vmatprep.mubr.bf16.mxu0 0
        %4711 = vmatmul.mubr.bf16.gmra.mrb[0].mxu0 %v4673
        %v4712 = vpop.f32.mrb[0].mxu0
        %v4713 = vadd.f32 0.0, %v4712
        %v4714 = vpop.f32.mrb[0].mxu0
        %v4715 = vpop.f32.mrb[0].mxu0
        %v4716 = vadd.f32 0.0, %v4715
        %v4717 = vpop.f32.mrb[0].mxu0
        %4718 = vdwg.mxu0
        %v4720 = vsel %vm2190, %v4015, 0
        %v4723 = vsel %vm2190, %v4317, 0
        %4725 = vmatprep.subr.bf16.mxu0 0
        %4726 = vmatpush1.bf16.xpose.msra.mxu0 %v4723
        %4727 = vmatprep.subr.bf16.mxu0 0
        %4728 = vmatpush1.bf16.xpose.msra.mxu0 0
        %4729 = vmatprep.subr.bf16.mxu0 0
        %4730 = vmatpush1.bf16.xpose.msra.mxu0 0
        %4731 = vmatprep.subr.bf16.mxu0 0
        %4732 = vmatpush1.bf16.xpose.msra.mxu0 0
        %4733 = vmatprep.subr.bf16.mxu0 0
        %4734 = vmatpush1.bf16.xpose.msra.mxu0 0
        %4735 = vmatprep.subr.bf16.mxu0 0
        %4736 = vmatpush1.bf16.xpose.msra.mxu0 0
        %4737 = vmatprep.subr.bf16.mxu0 0
        %4738 = vmatpush1.bf16.xpose.msra.mxu0 0
        %4739 = vmatprep.subr.bf16.mxu0 0
        %4740 = vmatpush1.bf16.xpose.msra.mxu0 0
        %4741 = vmatprep.subr.bf16.mxu0 0
        %4742 = vmatpush1.bf16.xpose.msra.mxu0 0
        %4743 = vmatprep.subr.bf16.mxu0 0
        %4744 = vmatpush1.bf16.xpose.msra.mxu0 0
        %4745 = vmatprep.subr.bf16.mxu0 0
        %4746 = vmatpush1.bf16.xpose.msra.mxu0 0
        %4747 = vmatprep.subr.bf16.mxu0 0
        %4748 = vmatpush1.bf16.xpose.msra.mxu0 0
        %4749 = vmatprep.subr.bf16.mxu0 0
        %4750 = vmatpush1.bf16.xpose.msra.mxu0 0
        %4751 = vmatprep.subr.bf16.mxu0 0
        %4752 = vmatpush1.bf16.xpose.msra.mxu0 0
        %4753 = vmatprep.subr.bf16.mxu0 0
        %4754 = vmatpush1.bf16.xpose.msra.mxu0 0
        %4755 = vmatprep.subr.bf16.mxu0 0
        %4756 = vmatpush1.bf16.xpose.msra.mxu0 0
        %4757 = vmatprep.mubr.bf16.mxu0 0
        %4758 = vmatmul.mubr.bf16.gmra.mrb[0].mxu0 %v4720
        %v4759 = vpop.f32.mrb[0].mxu0
        %v4760 = vadd.f32 0.0, %v4759
        %v4761 = vpop.f32.mrb[0].mxu0
        %v4762 = vpop.f32.mrb[0].mxu0
        %v4763 = vadd.f32 0.0, %v4762
        %v4764 = vpop.f32.mrb[0].mxu0
        %4765 = vdwg.mxu0
        %v4767 = vsel %vm2190, %v4016, 0
        %v4770 = vsel %vm2190, %v4318, 0
        %4772 = vmatprep.subr.bf16.mxu0 0
        %4773 = vmatpush1.bf16.xpose.msra.mxu0 %v4770
        %4774 = vmatprep.subr.bf16.mxu0 0
        %4775 = vmatpush1.bf16.xpose.msra.mxu0 0
        %4776 = vmatprep.subr.bf16.mxu0 0
        %4777 = vmatpush1.bf16.xpose.msra.mxu0 0
        %4778 = vmatprep.subr.bf16.mxu0 0
        %4779 = vmatpush1.bf16.xpose.msra.mxu0 0
        %4780 = vmatprep.subr.bf16.mxu0 0
        %4781 = vmatpush1.bf16.xpose.msra.mxu0 0
        %4782 = vmatprep.subr.bf16.mxu0 0
        %4783 = vmatpush1.bf16.xpose.msra.mxu0 0
        %4784 = vmatprep.subr.bf16.mxu0 0
        %4785 = vmatpush1.bf16.xpose.msra.mxu0 0
        %4786 = vmatprep.subr.bf16.mxu0 0
        %4787 = vmatpush1.bf16.xpose.msra.mxu0 0
        %4788 = vmatprep.subr.bf16.mxu0 0
        %4789 = vmatpush1.bf16.xpose.msra.mxu0 0
        %4790 = vmatprep.subr.bf16.mxu0 0
        %4791 = vmatpush1.bf16.xpose.msra.mxu0 0
        %4792 = vmatprep.subr.bf16.mxu0 0
        %4793 = vmatpush1.bf16.xpose.msra.mxu0 0
        %4794 = vmatprep.subr.bf16.mxu0 0
        %4795 = vmatpush1.bf16.xpose.msra.mxu0 0
        %4796 = vmatprep.subr.bf16.mxu0 0
        %4797 = vmatpush1.bf16.xpose.msra.mxu0 0
        %4798 = vmatprep.subr.bf16.mxu0 0
        %4799 = vmatpush1.bf16.xpose.msra.mxu0 0
        %4800 = vmatprep.subr.bf16.mxu0 0
        %4801 = vmatpush1.bf16.xpose.msra.mxu0 0
        %4802 = vmatprep.subr.bf16.mxu0 0
        %4803 = vmatpush1.bf16.xpose.msra.mxu0 0
        %4804 = vmatprep.mubr.bf16.mxu0 0
        %4805 = vmatmul.mubr.bf16.gmra.mrb[0].mxu0 %v4767
        %v4806 = vpop.f32.mrb[0].mxu0
        %v4807 = vadd.f32 0.0, %v4806
        %v4808 = vpop.f32.mrb[0].mxu0
        %v4809 = vpop.f32.mrb[0].mxu0
        %v4810 = vadd.f32 0.0, %v4809
        %v4811 = vpop.f32.mrb[0].mxu0
        %4812 = vdwg.mxu0
        %v4814 = vsel %vm2190, %v4017, 0
        %v4817 = vsel %vm2190, %v4319, 0
        %4819 = vmatprep.subr.bf16.mxu0 0
        %4820 = vmatpush1.bf16.xpose.msra.mxu0 %v4817
        %4821 = vmatprep.subr.bf16.mxu0 0
        %4822 = vmatpush1.bf16.xpose.msra.mxu0 0
        %4823 = vmatprep.subr.bf16.mxu0 0
        %4824 = vmatpush1.bf16.xpose.msra.mxu0 0
        %4825 = vmatprep.subr.bf16.mxu0 0
        %4826 = vmatpush1.bf16.xpose.msra.mxu0 0
        %4827 = vmatprep.subr.bf16.mxu0 0
        %4828 = vmatpush1.bf16.xpose.msra.mxu0 0
        %4829 = vmatprep.subr.bf16.mxu0 0
        %4830 = vmatpush1.bf16.xpose.msra.mxu0 0
        %4831 = vmatprep.subr.bf16.mxu0 0
        %4832 = vmatpush1.bf16.xpose.msra.mxu0 0
        %4833 = vmatprep.subr.bf16.mxu0 0
        %4834 = vmatpush1.bf16.xpose.msra.mxu0 0
        %4835 = vmatprep.subr.bf16.mxu0 0
        %4836 = vmatpush1.bf16.xpose.msra.mxu0 0
        %4837 = vmatprep.subr.bf16.mxu0 0
        %4838 = vmatpush1.bf16.xpose.msra.mxu0 0
        %4839 = vmatprep.subr.bf16.mxu0 0
        %4840 = vmatpush1.bf16.xpose.msra.mxu0 0
        %4841 = vmatprep.subr.bf16.mxu0 0
        %4842 = vmatpush1.bf16.xpose.msra.mxu0 0
        %4843 = vmatprep.subr.bf16.mxu0 0
        %4844 = vmatpush1.bf16.xpose.msra.mxu0 0
        %4845 = vmatprep.subr.bf16.mxu0 0
        %4846 = vmatpush1.bf16.xpose.msra.mxu0 0
        %4847 = vmatprep.subr.bf16.mxu0 0
        %4848 = vmatpush1.bf16.xpose.msra.mxu0 0
        %4849 = vmatprep.subr.bf16.mxu0 0
        %4850 = vmatpush1.bf16.xpose.msra.mxu0 0
        %4851 = vmatprep.mubr.bf16.mxu0 0
        %4852 = vmatmul.mubr.bf16.gmra.mrb[0].mxu0 %v4814
        %v4853 = vpop.f32.mrb[0].mxu0
        %v4854 = vadd.f32 0.0, %v4853
        %v4855 = vpop.f32.mrb[0].mxu0
        %v4856 = vpop.f32.mrb[0].mxu0
        %v4857 = vadd.f32 0.0, %v4856
        %v4858 = vpop.f32.mrb[0].mxu0
        %4859 = vdwg.mxu0
        %v4861 = vsel %vm2190, %v4018, 0
        %v4864 = vsel %vm2190, %v4320, 0
        %4866 = vmatprep.subr.bf16.mxu0 0
        %4867 = vmatpush1.bf16.xpose.msra.mxu0 %v4864
        %4868 = vmatprep.subr.bf16.mxu0 0
        %4869 = vmatpush1.bf16.xpose.msra.mxu0 0
        %4870 = vmatprep.subr.bf16.mxu0 0
        %4871 = vmatpush1.bf16.xpose.msra.mxu0 0
        %4872 = vmatprep.subr.bf16.mxu0 0
        %4873 = vmatpush1.bf16.xpose.msra.mxu0 0
        %4874 = vmatprep.subr.bf16.mxu0 0
        %4875 = vmatpush1.bf16.xpose.msra.mxu0 0
        %4876 = vmatprep.subr.bf16.mxu0 0
        %4877 = vmatpush1.bf16.xpose.msra.mxu0 0
        %4878 = vmatprep.subr.bf16.mxu0 0
        %4879 = vmatpush1.bf16.xpose.msra.mxu0 0
        %4880 = vmatprep.subr.bf16.mxu0 0
        %4881 = vmatpush1.bf16.xpose.msra.mxu0 0
        %4882 = vmatprep.subr.bf16.mxu0 0
        %4883 = vmatpush1.bf16.xpose.msra.mxu0 0
        %4884 = vmatprep.subr.bf16.mxu0 0
        %4885 = vmatpush1.bf16.xpose.msra.mxu0 0
        %4886 = vmatprep.subr.bf16.mxu0 0
        %4887 = vmatpush1.bf16.xpose.msra.mxu0 0
        %4888 = vmatprep.subr.bf16.mxu0 0
        %4889 = vmatpush1.bf16.xpose.msra.mxu0 0
        %4890 = vmatprep.subr.bf16.mxu0 0
        %4891 = vmatpush1.bf16.xpose.msra.mxu0 0
        %4892 = vmatprep.subr.bf16.mxu0 0
        %4893 = vmatpush1.bf16.xpose.msra.mxu0 0
        %4894 = vmatprep.subr.bf16.mxu0 0
        %4895 = vmatpush1.bf16.xpose.msra.mxu0 0
        %4896 = vmatprep.subr.bf16.mxu0 0
        %4897 = vmatpush1.bf16.xpose.msra.mxu0 0
        %4898 = vmatprep.mubr.bf16.mxu0 0
        %4899 = vmatmul.mubr.bf16.gmra.mrb[0].mxu0 %v4861
        %v4900 = vpop.f32.mrb[0].mxu0
        %v4901 = vadd.f32 0.0, %v4900
        %v4902 = vpop.f32.mrb[0].mxu0
        %v4903 = vpop.f32.mrb[0].mxu0
        %v4904 = vadd.f32 0.0, %v4903
        %v4905 = vpop.f32.mrb[0].mxu0
        %4906 = vdwg.mxu0
        %v4908 = vsel %vm2190, %v4019, 0
        %v4911 = vsel %vm2190, %v4321, 0
        %4913 = vmatprep.subr.bf16.mxu0 0
        %4914 = vmatpush1.bf16.xpose.msra.mxu0 %v4911
        %4915 = vmatprep.subr.bf16.mxu0 0
        %4916 = vmatpush1.bf16.xpose.msra.mxu0 0
        %4917 = vmatprep.subr.bf16.mxu0 0
        %4918 = vmatpush1.bf16.xpose.msra.mxu0 0
        %4919 = vmatprep.subr.bf16.mxu0 0
        %4920 = vmatpush1.bf16.xpose.msra.mxu0 0
        %4921 = vmatprep.subr.bf16.mxu0 0
        %4922 = vmatpush1.bf16.xpose.msra.mxu0 0
        %4923 = vmatprep.subr.bf16.mxu0 0
        %4924 = vmatpush1.bf16.xpose.msra.mxu0 0
        %4925 = vmatprep.subr.bf16.mxu0 0
        %4926 = vmatpush1.bf16.xpose.msra.mxu0 0
        %4927 = vmatprep.subr.bf16.mxu0 0
        %4928 = vmatpush1.bf16.xpose.msra.mxu0 0
        %4929 = vmatprep.subr.bf16.mxu0 0
        %4930 = vmatpush1.bf16.xpose.msra.mxu0 0
        %4931 = vmatprep.subr.bf16.mxu0 0
        %4932 = vmatpush1.bf16.xpose.msra.mxu0 0
        %4933 = vmatprep.subr.bf16.mxu0 0
        %4934 = vmatpush1.bf16.xpose.msra.mxu0 0
        %4935 = vmatprep.subr.bf16.mxu0 0
        %4936 = vmatpush1.bf16.xpose.msra.mxu0 0
        %4937 = vmatprep.subr.bf16.mxu0 0
        %4938 = vmatpush1.bf16.xpose.msra.mxu0 0
        %4939 = vmatprep.subr.bf16.mxu0 0
        %4940 = vmatpush1.bf16.xpose.msra.mxu0 0
        %4941 = vmatprep.subr.bf16.mxu0 0
        %4942 = vmatpush1.bf16.xpose.msra.mxu0 0
        %4943 = vmatprep.subr.bf16.mxu0 0
        %4944 = vmatpush1.bf16.xpose.msra.mxu0 0
        %4945 = vmatprep.mubr.bf16.mxu0 0
        %4946 = vmatmul.mubr.bf16.gmra.mrb[0].mxu0 %v4908
        %v4947 = vpop.f32.mrb[0].mxu0
        %v4948 = vadd.f32 0.0, %v4947
        %v4949 = vpop.f32.mrb[0].mxu0
        %v4950 = vpop.f32.mrb[0].mxu0
        %v4951 = vadd.f32 0.0, %v4950
        %v4952 = vpop.f32.mrb[0].mxu0
        %4953 = vdwg.mxu0
        %v4955 = vsel %vm2190, %v4020, 0
        %v4958 = vsel %vm2190, %v4322, 0
        %4960 = vmatprep.subr.bf16.mxu0 0
        %4961 = vmatpush1.bf16.xpose.msra.mxu0 %v4958
        %4962 = vmatprep.subr.bf16.mxu0 0
        %4963 = vmatpush1.bf16.xpose.msra.mxu0 0
        %4964 = vmatprep.subr.bf16.mxu0 0
        %4965 = vmatpush1.bf16.xpose.msra.mxu0 0
        %4966 = vmatprep.subr.bf16.mxu0 0
        %4967 = vmatpush1.bf16.xpose.msra.mxu0 0
        %4968 = vmatprep.subr.bf16.mxu0 0
        %4969 = vmatpush1.bf16.xpose.msra.mxu0 0
        %4970 = vmatprep.subr.bf16.mxu0 0
        %4971 = vmatpush1.bf16.xpose.msra.mxu0 0
        %4972 = vmatprep.subr.bf16.mxu0 0
        %4973 = vmatpush1.bf16.xpose.msra.mxu0 0
        %4974 = vmatprep.subr.bf16.mxu0 0
        %4975 = vmatpush1.bf16.xpose.msra.mxu0 0
        %4976 = vmatprep.subr.bf16.mxu0 0
        %4977 = vmatpush1.bf16.xpose.msra.mxu0 0
        %4978 = vmatprep.subr.bf16.mxu0 0
        %4979 = vmatpush1.bf16.xpose.msra.mxu0 0
        %4980 = vmatprep.subr.bf16.mxu0 0
        %4981 = vmatpush1.bf16.xpose.msra.mxu0 0
        %4982 = vmatprep.subr.bf16.mxu0 0
        %4983 = vmatpush1.bf16.xpose.msra.mxu0 0
        %4984 = vmatprep.subr.bf16.mxu0 0
        %4985 = vmatpush1.bf16.xpose.msra.mxu0 0
        %4986 = vmatprep.subr.bf16.mxu0 0
        %4987 = vmatpush1.bf16.xpose.msra.mxu0 0
        %4988 = vmatprep.subr.bf16.mxu0 0
        %4989 = vmatpush1.bf16.xpose.msra.mxu0 0
        %4990 = vmatprep.subr.bf16.mxu0 0
        %4991 = vmatpush1.bf16.xpose.msra.mxu0 0
        %4992 = vmatprep.mubr.bf16.mxu0 0
        %4993 = vmatmul.mubr.bf16.gmra.mrb[0].mxu0 %v4955
        %v4994 = vpop.f32.mrb[0].mxu0
        %v4995 = vadd.f32 0.0, %v4994
        %v4996 = vpop.f32.mrb[0].mxu0
        %v4997 = vpop.f32.mrb[0].mxu0
        %v4998 = vadd.f32 0.0, %v4997
        %v4999 = vpop.f32.mrb[0].mxu0
        %5000 = vdwg.mxu0
        %vm5001 = vcmask 64512
        %v5002 = vsel %vm5001, %v4666, -inf
        %5003 = vmax.xlane.f32.xlu0 %v5002
        %v5004 = vpop.xlane.xlu0 %5003
        %v5005 = vsel %vm5001, %v4669, -inf
        %5006 = vmax.xlane.f32.xlu0 %v5005
        %v5007 = vpop.xlane.xlu0 %5006
        %v5008 = vsel %vm5001, %v4713, -inf
        %5009 = vmax.xlane.f32.xlu0 %v5008
        %v5010 = vpop.xlane.xlu0 %5009
        %v5011 = vsel %vm5001, %v4716, -inf
        %5012 = vmax.xlane.f32.xlu0 %v5011
        %v5013 = vpop.xlane.xlu0 %5012
        %v5014 = vsel %vm5001, %v4760, -inf
        %5015 = vmax.xlane.f32.xlu0 %v5014
        %v5016 = vpop.xlane.xlu0 %5015
        %v5017 = vsel %vm5001, %v4763, -inf
        %5018 = vmax.xlane.f32.xlu0 %v5017
        %v5019 = vpop.xlane.xlu0 %5018
        %v5020 = vsel %vm5001, %v4807, -inf
        %5021 = vmax.xlane.f32.xlu0 %v5020
        %v5022 = vpop.xlane.xlu0 %5021
        %v5023 = vsel %vm5001, %v4810, -inf
        %5024 = vmax.xlane.f32.xlu0 %v5023
        %v5025 = vpop.xlane.xlu0 %5024
        %v5026 = vsel %vm5001, %v4854, -inf
        %5027 = vmax.xlane.f32.xlu0 %v5026
        %v5028 = vpop.xlane.xlu0 %5027
        %v5029 = vsel %vm5001, %v4857, -inf
        %5030 = vmax.xlane.f32.xlu0 %v5029
        %v5031 = vpop.xlane.xlu0 %5030
        %v5032 = vsel %vm5001, %v4901, -inf
        %5033 = vmax.xlane.f32.xlu0 %v5032
        %v5034 = vpop.xlane.xlu0 %5033
        %v5035 = vsel %vm5001, %v4904, -inf
        %5036 = vmax.xlane.f32.xlu0 %v5035
        %v5037 = vpop.xlane.xlu0 %5036
        %v5038 = vsel %vm5001, %v4948, -inf
        %5039 = vmax.xlane.f32.xlu0 %v5038
        %v5040 = vpop.xlane.xlu0 %5039
        %v5041 = vsel %vm5001, %v4951, -inf
        %5042 = vmax.xlane.f32.xlu0 %v5041
        %v5043 = vpop.xlane.xlu0 %5042
        %v5044 = vsel %vm5001, %v4995, -inf
        %5045 = vmax.xlane.f32.xlu0 %v5044
        %v5046 = vpop.xlane.xlu0 %5045
        %v5047 = vsel %vm5001, %v4998, -inf
        %5048 = vmax.xlane.f32.xlu0 %v5047
        %v5049 = vpop.xlane.xlu0 %5048
        %v5050 = vsub.f32 %v4666, %v5004
        %v5051 = vsub.f32 %v4669, %v5007
        %v5052 = vsub.f32 %v4713, %v5010
        %v5053 = vsub.f32 %v4716, %v5013
        %v5054 = vsub.f32 %v4760, %v5016
        %v5055 = vsub.f32 %v4763, %v5019
        %v5056 = vsub.f32 %v4807, %v5022
        %v5057 = vsub.f32 %v4810, %v5025
        %v5058 = vsub.f32 %v4854, %v5028
        %v5059 = vsub.f32 %v4857, %v5031
        %v5060 = vsub.f32 %v4901, %v5034
        %v5061 = vsub.f32 %v4904, %v5037
        %v5062 = vsub.f32 %v4948, %v5040
        %v5063 = vsub.f32 %v4951, %v5043
        %v5064 = vsub.f32 %v4995, %v5046
        %v5065 = vsub.f32 %v4998, %v5049
        %v5066 = vmul.f32 %v5050, 1.442695
        %v5067 = vpow.pop %v5066
        %v5068 = vmul.f32 %v5051, 1.442695
        %v5069 = vpow.pop %v5068
        %v5070 = vmul.f32 %v5052, 1.442695
        %v5071 = vpow.pop %v5070
        %v5072 = vmul.f32 %v5053, 1.442695
        %v5073 = vpow.pop %v5072
        %v5074 = vmul.f32 %v5054, 1.442695
        %v5075 = vpow.pop %v5074
        %v5076 = vmul.f32 %v5055, 1.442695
        %v5077 = vpow.pop %v5076
        %v5078 = vmul.f32 %v5056, 1.442695
        %v5079 = vpow.pop %v5078
        %v5080 = vmul.f32 %v5057, 1.442695
        %v5081 = vpow.pop %v5080
        %v5082 = vmul.f32 %v5058, 1.442695
        %v5083 = vpow.pop %v5082
        %v5084 = vmul.f32 %v5059, 1.442695
        %v5085 = vpow.pop %v5084
        %v5086 = vmul.f32 %v5060, 1.442695
        %v5087 = vpow.pop %v5086
        %v5088 = vmul.f32 %v5061, 1.442695
        %v5089 = vpow.pop %v5088
        %v5090 = vmul.f32 %v5062, 1.442695
        %v5091 = vpow.pop %v5090
        %v5092 = vmul.f32 %v5063, 1.442695
        %v5093 = vpow.pop %v5092
        %v5094 = vmul.f32 %v5064, 1.442695
        %v5095 = vpow.pop %v5094
        %v5096 = vmul.f32 %v5065, 1.442695
        %v5097 = vpow.pop %v5096
        %v5098 = vsel %vm5001, %v5067, 0.0
        %5099 = vadd.xlane.f32.xlu0 %v5098
        %v5100 = vpop.xlane.xlu0 %5099
        %v5101 = vsel %vm5001, %v5069, 0.0
        %5102 = vadd.xlane.f32.xlu0 %v5101
        %v5103 = vpop.xlane.xlu0 %5102
        %v5104 = vsel %vm5001, %v5071, 0.0
        %5105 = vadd.xlane.f32.xlu0 %v5104
        %v5106 = vpop.xlane.xlu0 %5105
        %v5107 = vsel %vm5001, %v5073, 0.0
        %5108 = vadd.xlane.f32.xlu0 %v5107
        %v5109 = vpop.xlane.xlu0 %5108
        %v5110 = vsel %vm5001, %v5075, 0.0
        %5111 = vadd.xlane.f32.xlu0 %v5110
        %v5112 = vpop.xlane.xlu0 %5111
        %v5113 = vsel %vm5001, %v5077, 0.0
        %5114 = vadd.xlane.f32.xlu0 %v5113
        %v5115 = vpop.xlane.xlu0 %5114
        %v5116 = vsel %vm5001, %v5079, 0.0
        %5117 = vadd.xlane.f32.xlu0 %v5116
        %v5118 = vpop.xlane.xlu0 %5117
        %v5119 = vsel %vm5001, %v5081, 0.0
        %5120 = vadd.xlane.f32.xlu0 %v5119
        %v5121 = vpop.xlane.xlu0 %5120
        %v5122 = vsel %vm5001, %v5083, 0.0
        %5123 = vadd.xlane.f32.xlu0 %v5122
        %v5124 = vpop.xlane.xlu0 %5123
        %v5125 = vsel %vm5001, %v5085, 0.0
        %5126 = vadd.xlane.f32.xlu0 %v5125
        %v5127 = vpop.xlane.xlu0 %5126
        %v5128 = vsel %vm5001, %v5087, 0.0
        %5129 = vadd.xlane.f32.xlu0 %v5128
        %v5130 = vpop.xlane.xlu0 %5129
        %v5131 = vsel %vm5001, %v5089, 0.0
        %5132 = vadd.xlane.f32.xlu0 %v5131
        %v5133 = vpop.xlane.xlu0 %5132
        %v5134 = vsel %vm5001, %v5091, 0.0
        %5135 = vadd.xlane.f32.xlu0 %v5134
        %v5136 = vpop.xlane.xlu0 %5135
        %v5137 = vsel %vm5001, %v5093, 0.0
        %5138 = vadd.xlane.f32.xlu0 %v5137
        %v5139 = vpop.xlane.xlu0 %5138
        %v5140 = vsel %vm5001, %v5095, 0.0
        %5141 = vadd.xlane.f32.xlu0 %v5140
        %v5142 = vpop.xlane.xlu0 %5141
        %v5143 = vsel %vm5001, %v5097, 0.0
        %5144 = vadd.xlane.f32.xlu0 %v5143
        %v5145 = vpop.xlane.xlu0 %5144
        %v5146 = vrcp.pop %v5100
        %v5147 = vrcp.pop %v5103
        %v5148 = vrcp.pop %v5106
        %v5149 = vrcp.pop %v5109
        %v5150 = vrcp.pop %v5112
        %v5151 = vrcp.pop %v5115
        %v5152 = vrcp.pop %v5118
        %v5153 = vrcp.pop %v5121
        %v5154 = vrcp.pop %v5124
        %v5155 = vrcp.pop %v5127
        %v5156 = vrcp.pop %v5130
        %v5157 = vrcp.pop %v5133
        %v5158 = vrcp.pop %v5136
        %v5159 = vrcp.pop %v5139
        %v5160 = vrcp.pop %v5142
        %v5161 = vrcp.pop %v5145
        %v5162 = vmul.f32 %v5067, %v5146
        %v5163 = vmul.f32 %v5069, %v5147
        %v5164 = vmul.f32 %v5071, %v5148
        %v5165 = vmul.f32 %v5073, %v5149
        %v5166 = vmul.f32 %v5075, %v5150
        %v5167 = vmul.f32 %v5077, %v5151
        %v5168 = vmul.f32 %v5079, %v5152
        %v5169 = vmul.f32 %v5081, %v5153
        %v5170 = vmul.f32 %v5083, %v5154
        %v5171 = vmul.f32 %v5085, %v5155
        %v5172 = vmul.f32 %v5087, %v5156
        %v5173 = vmul.f32 %v5089, %v5157
        %v5174 = vmul.f32 %v5091, %v5158
        %v5175 = vmul.f32 %v5093, %v5159
        %v5176 = vmul.f32 %v5095, %v5160
        %v5177 = vmul.f32 %v5097, %v5161
        %v5178 = vpack.c.bf16 %v5163, %v5162
        %v5179 = vpack.c.bf16 %v5165, %v5164
        %v5180 = vpack.c.bf16 %v5167, %v5166
        %v5181 = vpack.c.bf16 %v5169, %v5168
        %v5182 = vpack.c.bf16 %v5171, %v5170
        %v5183 = vpack.c.bf16 %v5173, %v5172
        %v5184 = vpack.c.bf16 %v5175, %v5174
        %v5185 = vpack.c.bf16 %v5177, %v5176
        %v5187 = vsel %vm5001, %v5178, 0
        %vm5189 = vcmask 1043456
        %v5191 = vsel %vm5189, %v4617, 0
        %5193 = vmatprep.subr.bf16.mxu0 0
        %5194 = vmatpush1.bf16.msra.mxu0 %v5191
        %5195 = vmatprep.subr.bf16.mxu0 0
        %5196 = vmatpush1.bf16.msra.mxu0 0
        %5197 = vmatprep.subr.bf16.mxu0 0
        %5198 = vmatpush1.bf16.msra.mxu0 0
        %5199 = vmatprep.subr.bf16.mxu0 0
        %5200 = vmatpush1.bf16.msra.mxu0 0
        %5201 = vmatprep.subr.bf16.mxu0 0
        %5202 = vmatpush1.bf16.msra.mxu0 0
        %5203 = vmatprep.subr.bf16.mxu0 0
        %5204 = vmatpush1.bf16.msra.mxu0 0
        %5205 = vmatprep.subr.bf16.mxu0 0
        %5206 = vmatpush1.bf16.msra.mxu0 0
        %5207 = vmatprep.subr.bf16.mxu0 0
        %5208 = vmatpush1.bf16.msra.mxu0 0
        %5209 = vmatprep.subr.bf16.mxu0 0
        %5210 = vmatpush1.bf16.msra.mxu0 0
        %5211 = vmatprep.subr.bf16.mxu0 0
        %5212 = vmatpush1.bf16.msra.mxu0 0
        %5213 = vmatprep.subr.bf16.mxu0 0
        %5214 = vmatpush1.bf16.msra.mxu0 0
        %5215 = vmatprep.subr.bf16.mxu0 0
        %5216 = vmatpush1.bf16.msra.mxu0 0
        %5217 = vmatprep.subr.bf16.mxu0 0
        %5218 = vmatpush1.bf16.msra.mxu0 0
        %5219 = vmatprep.subr.bf16.mxu0 0
        %5220 = vmatpush1.bf16.msra.mxu0 0
        %5221 = vmatprep.subr.bf16.mxu0 0
        %5222 = vmatpush1.bf16.msra.mxu0 0
        %5223 = vmatprep.subr.bf16.mxu0 0
        %5224 = vmatpush1.bf16.msra.mxu0 0
        %5225 = vmatprep.mubr.bf16.mxu0 0
        %5226 = vmatmul.mubr.bf16.gmra.mrb[0].mxu0 %v5187
        %v5227 = vpop.f32.mrb[0].mxu0
        %v5228 = vadd.f32 0.0, %v5227
        %v5229 = vpop.f32.mrb[0].mxu0
        %v5230 = vpop.f32.mrb[0].mxu0
        %v5231 = vadd.f32 0.0, %v5230
        %v5232 = vpop.f32.mrb[0].mxu0
        %5233 = vdwg.mxu0
        %v5235 = vsel %vm5001, %v5179, 0
        %v5238 = vsel %vm5189, %v4618, 0
        %5240 = vmatprep.subr.bf16.mxu0 0
        %5241 = vmatpush1.bf16.msra.mxu0 %v5238
        %5242 = vmatprep.subr.bf16.mxu0 0
        %5243 = vmatpush1.bf16.msra.mxu0 0
        %5244 = vmatprep.subr.bf16.mxu0 0
        %5245 = vmatpush1.bf16.msra.mxu0 0
        %5246 = vmatprep.subr.bf16.mxu0 0
        %5247 = vmatpush1.bf16.msra.mxu0 0
        %5248 = vmatprep.subr.bf16.mxu0 0
        %5249 = vmatpush1.bf16.msra.mxu0 0
        %5250 = vmatprep.subr.bf16.mxu0 0
        %5251 = vmatpush1.bf16.msra.mxu0 0
        %5252 = vmatprep.subr.bf16.mxu0 0
        %5253 = vmatpush1.bf16.msra.mxu0 0
        %5254 = vmatprep.subr.bf16.mxu0 0
        %5255 = vmatpush1.bf16.msra.mxu0 0
        %5256 = vmatprep.subr.bf16.mxu0 0
        %5257 = vmatpush1.bf16.msra.mxu0 0
        %5258 = vmatprep.subr.bf16.mxu0 0
        %5259 = vmatpush1.bf16.msra.mxu0 0
        %5260 = vmatprep.subr.bf16.mxu0 0
        %5261 = vmatpush1.bf16.msra.mxu0 0
        %5262 = vmatprep.subr.bf16.mxu0 0
        %5263 = vmatpush1.bf16.msra.mxu0 0
        %5264 = vmatprep.subr.bf16.mxu0 0
        %5265 = vmatpush1.bf16.msra.mxu0 0
        %5266 = vmatprep.subr.bf16.mxu0 0
        %5267 = vmatpush1.bf16.msra.mxu0 0
        %5268 = vmatprep.subr.bf16.mxu0 0
        %5269 = vmatpush1.bf16.msra.mxu0 0
        %5270 = vmatprep.subr.bf16.mxu0 0
        %5271 = vmatpush1.bf16.msra.mxu0 0
        %5272 = vmatprep.mubr.bf16.mxu0 0
        %5273 = vmatmul.mubr.bf16.gmra.mrb[0].mxu0 %v5235
        %v5274 = vpop.f32.mrb[0].mxu0
        %v5275 = vadd.f32 0.0, %v5274
        %v5276 = vpop.f32.mrb[0].mxu0
        %v5277 = vpop.f32.mrb[0].mxu0
        %v5278 = vadd.f32 0.0, %v5277
        %v5279 = vpop.f32.mrb[0].mxu0
        %5280 = vdwg.mxu0
        %v5282 = vsel %vm5001, %v5180, 0
        %v5285 = vsel %vm5189, %v4619, 0
        %5287 = vmatprep.subr.bf16.mxu0 0
        %5288 = vmatpush1.bf16.msra.mxu0 %v5285
        %5289 = vmatprep.subr.bf16.mxu0 0
        %5290 = vmatpush1.bf16.msra.mxu0 0
        %5291 = vmatprep.subr.bf16.mxu0 0
        %5292 = vmatpush1.bf16.msra.mxu0 0
        %5293 = vmatprep.subr.bf16.mxu0 0
        %5294 = vmatpush1.bf16.msra.mxu0 0
        %5295 = vmatprep.subr.bf16.mxu0 0
        %5296 = vmatpush1.bf16.msra.mxu0 0
        %5297 = vmatprep.subr.bf16.mxu0 0
        %5298 = vmatpush1.bf16.msra.mxu0 0
        %5299 = vmatprep.subr.bf16.mxu0 0
        %5300 = vmatpush1.bf16.msra.mxu0 0
        %5301 = vmatprep.subr.bf16.mxu0 0
        %5302 = vmatpush1.bf16.msra.mxu0 0
        %5303 = vmatprep.subr.bf16.mxu0 0
        %5304 = vmatpush1.bf16.msra.mxu0 0
        %5305 = vmatprep.subr.bf16.mxu0 0
        %5306 = vmatpush1.bf16.msra.mxu0 0
        %5307 = vmatprep.subr.bf16.mxu0 0
        %5308 = vmatpush1.bf16.msra.mxu0 0
        %5309 = vmatprep.subr.bf16.mxu0 0
        %5310 = vmatpush1.bf16.msra.mxu0 0
        %5311 = vmatprep.subr.bf16.mxu0 0
        %5312 = vmatpush1.bf16.msra.mxu0 0
        %5313 = vmatprep.subr.bf16.mxu0 0
        %5314 = vmatpush1.bf16.msra.mxu0 0
        %5315 = vmatprep.subr.bf16.mxu0 0
        %5316 = vmatpush1.bf16.msra.mxu0 0
        %5317 = vmatprep.subr.bf16.mxu0 0
        %5318 = vmatpush1.bf16.msra.mxu0 0
        %5319 = vmatprep.mubr.bf16.mxu0 0
        %5320 = vmatmul.mubr.bf16.gmra.mrb[0].mxu0 %v5282
        %v5321 = vpop.f32.mrb[0].mxu0
        %v5322 = vadd.f32 0.0, %v5321
        %v5323 = vpop.f32.mrb[0].mxu0
        %v5324 = vpop.f32.mrb[0].mxu0
        %v5325 = vadd.f32 0.0, %v5324
        %v5326 = vpop.f32.mrb[0].mxu0
        %5327 = vdwg.mxu0
        %v5329 = vsel %vm5001, %v5181, 0
        %v5332 = vsel %vm5189, %v4620, 0
        %5334 = vmatprep.subr.bf16.mxu0 0
        %5335 = vmatpush1.bf16.msra.mxu0 %v5332
        %5336 = vmatprep.subr.bf16.mxu0 0
        %5337 = vmatpush1.bf16.msra.mxu0 0
        %5338 = vmatprep.subr.bf16.mxu0 0
        %5339 = vmatpush1.bf16.msra.mxu0 0
        %5340 = vmatprep.subr.bf16.mxu0 0
        %5341 = vmatpush1.bf16.msra.mxu0 0
        %5342 = vmatprep.subr.bf16.mxu0 0
        %5343 = vmatpush1.bf16.msra.mxu0 0
        %5344 = vmatprep.subr.bf16.mxu0 0
        %5345 = vmatpush1.bf16.msra.mxu0 0
        %5346 = vmatprep.subr.bf16.mxu0 0
        %5347 = vmatpush1.bf16.msra.mxu0 0
        %5348 = vmatprep.subr.bf16.mxu0 0
        %5349 = vmatpush1.bf16.msra.mxu0 0
        %5350 = vmatprep.subr.bf16.mxu0 0
        %5351 = vmatpush1.bf16.msra.mxu0 0
        %5352 = vmatprep.subr.bf16.mxu0 0
        %5353 = vmatpush1.bf16.msra.mxu0 0
        %5354 = vmatprep.subr.bf16.mxu0 0
        %5355 = vmatpush1.bf16.msra.mxu0 0
        %5356 = vmatprep.subr.bf16.mxu0 0
        %5357 = vmatpush1.bf16.msra.mxu0 0
        %5358 = vmatprep.subr.bf16.mxu0 0
        %5359 = vmatpush1.bf16.msra.mxu0 0
        %5360 = vmatprep.subr.bf16.mxu0 0
        %5361 = vmatpush1.bf16.msra.mxu0 0
        %5362 = vmatprep.subr.bf16.mxu0 0
        %5363 = vmatpush1.bf16.msra.mxu0 0
        %5364 = vmatprep.subr.bf16.mxu0 0
        %5365 = vmatpush1.bf16.msra.mxu0 0
        %5366 = vmatprep.mubr.bf16.mxu0 0
        %5367 = vmatmul.mubr.bf16.gmra.mrb[0].mxu0 %v5329
        %v5368 = vpop.f32.mrb[0].mxu0
        %v5369 = vadd.f32 0.0, %v5368
        %v5370 = vpop.f32.mrb[0].mxu0
        %v5371 = vpop.f32.mrb[0].mxu0
        %v5372 = vadd.f32 0.0, %v5371
        %v5373 = vpop.f32.mrb[0].mxu0
        %5374 = vdwg.mxu0
        %v5376 = vsel %vm5001, %v5182, 0
        %v5379 = vsel %vm5189, %v4621, 0
        %5381 = vmatprep.subr.bf16.mxu0 0
        %5382 = vmatpush1.bf16.msra.mxu0 %v5379
        %5383 = vmatprep.subr.bf16.mxu0 0
        %5384 = vmatpush1.bf16.msra.mxu0 0
        %5385 = vmatprep.subr.bf16.mxu0 0
        %5386 = vmatpush1.bf16.msra.mxu0 0
        %5387 = vmatprep.subr.bf16.mxu0 0
        %5388 = vmatpush1.bf16.msra.mxu0 0
        %5389 = vmatprep.subr.bf16.mxu0 0
        %5390 = vmatpush1.bf16.msra.mxu0 0
        %5391 = vmatprep.subr.bf16.mxu0 0
        %5392 = vmatpush1.bf16.msra.mxu0 0
        %5393 = vmatprep.subr.bf16.mxu0 0
        %5394 = vmatpush1.bf16.msra.mxu0 0
        %5395 = vmatprep.subr.bf16.mxu0 0
        %5396 = vmatpush1.bf16.msra.mxu0 0
        %5397 = vmatprep.subr.bf16.mxu0 0
        %5398 = vmatpush1.bf16.msra.mxu0 0
        %5399 = vmatprep.subr.bf16.mxu0 0
        %5400 = vmatpush1.bf16.msra.mxu0 0
        %5401 = vmatprep.subr.bf16.mxu0 0
        %5402 = vmatpush1.bf16.msra.mxu0 0
        %5403 = vmatprep.subr.bf16.mxu0 0
        %5404 = vmatpush1.bf16.msra.mxu0 0
        %5405 = vmatprep.subr.bf16.mxu0 0
        %5406 = vmatpush1.bf16.msra.mxu0 0
        %5407 = vmatprep.subr.bf16.mxu0 0
        %5408 = vmatpush1.bf16.msra.mxu0 0
        %5409 = vmatprep.subr.bf16.mxu0 0
        %5410 = vmatpush1.bf16.msra.mxu0 0
        %5411 = vmatprep.subr.bf16.mxu0 0
        %5412 = vmatpush1.bf16.msra.mxu0 0
        %5413 = vmatprep.mubr.bf16.mxu0 0
        %5414 = vmatmul.mubr.bf16.gmra.mrb[0].mxu0 %v5376
        %v5415 = vpop.f32.mrb[0].mxu0
        %v5416 = vadd.f32 0.0, %v5415
        %v5417 = vpop.f32.mrb[0].mxu0
        %v5418 = vpop.f32.mrb[0].mxu0
        %v5419 = vadd.f32 0.0, %v5418
        %v5420 = vpop.f32.mrb[0].mxu0
        %5421 = vdwg.mxu0
        %v5423 = vsel %vm5001, %v5183, 0
        %v5426 = vsel %vm5189, %v4622, 0
        %5428 = vmatprep.subr.bf16.mxu0 0
        %5429 = vmatpush1.bf16.msra.mxu0 %v5426
        %5430 = vmatprep.subr.bf16.mxu0 0
        %5431 = vmatpush1.bf16.msra.mxu0 0
        %5432 = vmatprep.subr.bf16.mxu0 0
        %5433 = vmatpush1.bf16.msra.mxu0 0
        %5434 = vmatprep.subr.bf16.mxu0 0
        %5435 = vmatpush1.bf16.msra.mxu0 0
        %5436 = vmatprep.subr.bf16.mxu0 0
        %5437 = vmatpush1.bf16.msra.mxu0 0
        %5438 = vmatprep.subr.bf16.mxu0 0
        %5439 = vmatpush1.bf16.msra.mxu0 0
        %5440 = vmatprep.subr.bf16.mxu0 0
        %5441 = vmatpush1.bf16.msra.mxu0 0
        %5442 = vmatprep.subr.bf16.mxu0 0
        %5443 = vmatpush1.bf16.msra.mxu0 0
        %5444 = vmatprep.subr.bf16.mxu0 0
        %5445 = vmatpush1.bf16.msra.mxu0 0
        %5446 = vmatprep.subr.bf16.mxu0 0
        %5447 = vmatpush1.bf16.msra.mxu0 0
        %5448 = vmatprep.subr.bf16.mxu0 0
        %5449 = vmatpush1.bf16.msra.mxu0 0
        %5450 = vmatprep.subr.bf16.mxu0 0
        %5451 = vmatpush1.bf16.msra.mxu0 0
        %5452 = vmatprep.subr.bf16.mxu0 0
        %5453 = vmatpush1.bf16.msra.mxu0 0
        %5454 = vmatprep.subr.bf16.mxu0 0
        %5455 = vmatpush1.bf16.msra.mxu0 0
        %5456 = vmatprep.subr.bf16.mxu0 0
        %5457 = vmatpush1.bf16.msra.mxu0 0
        %5458 = vmatprep.subr.bf16.mxu0 0
        %5459 = vmatpush1.bf16.msra.mxu0 0
        %5460 = vmatprep.mubr.bf16.mxu0 0
        %5461 = vmatmul.mubr.bf16.gmra.mrb[0].mxu0 %v5423
        %v5462 = vpop.f32.mrb[0].mxu0
        %v5463 = vadd.f32 0.0, %v5462
        %v5464 = vpop.f32.mrb[0].mxu0
        %v5465 = vpop.f32.mrb[0].mxu0
        %v5466 = vadd.f32 0.0, %v5465
        %v5467 = vpop.f32.mrb[0].mxu0
        %5468 = vdwg.mxu0
        %v5470 = vsel %vm5001, %v5184, 0
        %v5473 = vsel %vm5189, %v4623, 0
        %5475 = vmatprep.subr.bf16.mxu0 0
        %5476 = vmatpush1.bf16.msra.mxu0 %v5473
        %5477 = vmatprep.subr.bf16.mxu0 0
        %5478 = vmatpush1.bf16.msra.mxu0 0
        %5479 = vmatprep.subr.bf16.mxu0 0
        %5480 = vmatpush1.bf16.msra.mxu0 0
        %5481 = vmatprep.subr.bf16.mxu0 0
        %5482 = vmatpush1.bf16.msra.mxu0 0
        %5483 = vmatprep.subr.bf16.mxu0 0
        %5484 = vmatpush1.bf16.msra.mxu0 0
        %5485 = vmatprep.subr.bf16.mxu0 0
        %5486 = vmatpush1.bf16.msra.mxu0 0
        %5487 = vmatprep.subr.bf16.mxu0 0
        %5488 = vmatpush1.bf16.msra.mxu0 0
        %5489 = vmatprep.subr.bf16.mxu0 0
        %5490 = vmatpush1.bf16.msra.mxu0 0
        %5491 = vmatprep.subr.bf16.mxu0 0
        %5492 = vmatpush1.bf16.msra.mxu0 0
        %5493 = vmatprep.subr.bf16.mxu0 0
        %5494 = vmatpush1.bf16.msra.mxu0 0
        %5495 = vmatprep.subr.bf16.mxu0 0
        %5496 = vmatpush1.bf16.msra.mxu0 0
        %5497 = vmatprep.subr.bf16.mxu0 0
        %5498 = vmatpush1.bf16.msra.mxu0 0
        %5499 = vmatprep.subr.bf16.mxu0 0
        %5500 = vmatpush1.bf16.msra.mxu0 0
        %5501 = vmatprep.subr.bf16.mxu0 0
        %5502 = vmatpush1.bf16.msra.mxu0 0
        %5503 = vmatprep.subr.bf16.mxu0 0
        %5504 = vmatpush1.bf16.msra.mxu0 0
        %5505 = vmatprep.subr.bf16.mxu0 0
        %5506 = vmatpush1.bf16.msra.mxu0 0
        %5507 = vmatprep.mubr.bf16.mxu0 0
        %5508 = vmatmul.mubr.bf16.gmra.mrb[0].mxu0 %v5470
        %v5509 = vpop.f32.mrb[0].mxu0
        %v5510 = vadd.f32 0.0, %v5509
        %v5511 = vpop.f32.mrb[0].mxu0
        %v5512 = vpop.f32.mrb[0].mxu0
        %v5513 = vadd.f32 0.0, %v5512
        %v5514 = vpop.f32.mrb[0].mxu0
        %5515 = vdwg.mxu0
        %v5517 = vsel %vm5001, %v5185, 0
        %v5520 = vsel %vm5189, %v4624, 0
        %5522 = vmatprep.subr.bf16.mxu0 0
        %5523 = vmatpush1.bf16.msra.mxu0 %v5520
        %5524 = vmatprep.subr.bf16.mxu0 0
        %5525 = vmatpush1.bf16.msra.mxu0 0
        %5526 = vmatprep.subr.bf16.mxu0 0
        %5527 = vmatpush1.bf16.msra.mxu0 0
        %5528 = vmatprep.subr.bf16.mxu0 0
        %5529 = vmatpush1.bf16.msra.mxu0 0
        %5530 = vmatprep.subr.bf16.mxu0 0
        %5531 = vmatpush1.bf16.msra.mxu0 0
        %5532 = vmatprep.subr.bf16.mxu0 0
        %5533 = vmatpush1.bf16.msra.mxu0 0
        %5534 = vmatprep.subr.bf16.mxu0 0
        %5535 = vmatpush1.bf16.msra.mxu0 0
        %5536 = vmatprep.subr.bf16.mxu0 0
        %5537 = vmatpush1.bf16.msra.mxu0 0
        %5538 = vmatprep.subr.bf16.mxu0 0
        %5539 = vmatpush1.bf16.msra.mxu0 0
        %5540 = vmatprep.subr.bf16.mxu0 0
        %5541 = vmatpush1.bf16.msra.mxu0 0
        %5542 = vmatprep.subr.bf16.mxu0 0
        %5543 = vmatpush1.bf16.msra.mxu0 0
        %5544 = vmatprep.subr.bf16.mxu0 0
        %5545 = vmatpush1.bf16.msra.mxu0 0
        %5546 = vmatprep.subr.bf16.mxu0 0
        %5547 = vmatpush1.bf16.msra.mxu0 0
        %5548 = vmatprep.subr.bf16.mxu0 0
        %5549 = vmatpush1.bf16.msra.mxu0 0
        %5550 = vmatprep.subr.bf16.mxu0 0
        %5551 = vmatpush1.bf16.msra.mxu0 0
        %5552 = vmatprep.subr.bf16.mxu0 0
        %5553 = vmatpush1.bf16.msra.mxu0 0
        %5554 = vmatprep.mubr.bf16.mxu0 0
        %5555 = vmatmul.mubr.bf16.gmra.mrb[0].mxu0 %v5517
        %v5556 = vpop.f32.mrb[0].mxu0
        %v5557 = vadd.f32 0.0, %v5556
        %v5558 = vpop.f32.mrb[0].mxu0
        %v5559 = vpop.f32.mrb[0].mxu0
        %v5560 = vadd.f32 0.0, %v5559
        %v5561 = vpop.f32.mrb[0].mxu0
        %5562 = vdwg.mxu0
        %v5563 = vcombine.low %v5228, %v5322
        %v5564 = vcombine.high %v5228, %v5322
        %v5566 = vunpack.c.l.s4 1983009808
        %v5567 = vunpack.c.0.s8 %v5566
        %v5568 = vlaneseq
        %v5569 = vshrl.u32 %v5568, 7
        %v5570 = vsub.s32 %v5567, %v5569
        %v5571 = vrot.slane %v5563, %v5570
        %v5573 = vunpack.c.l.s4 1983009808
        %v5574 = vunpack.c.0.s8 %v5573
        %v5575 = vlaneseq
        %v5576 = vshrl.u32 %v5575, 7
        %v5577 = vsub.s32 %v5574, %v5576
        %v5578 = vrot.slane %v5564, %v5577
        %v5579 = vcombine.low %v5275, %v5369
        %v5580 = vcombine.high %v5275, %v5369
        %v5582 = vunpack.c.l.s4 1983009808
        %v5583 = vunpack.c.0.s8 %v5582
        %v5584 = vlaneseq
        %v5585 = vshrl.u32 %v5584, 7
        %v5586 = vsub.s32 %v5583, %v5585
        %v5587 = vrot.slane %v5579, %v5586
        %v5589 = vunpack.c.l.s4 1983009808
        %v5590 = vunpack.c.0.s8 %v5589
        %v5591 = vlaneseq
        %v5592 = vshrl.u32 %v5591, 7
        %v5593 = vsub.s32 %v5590, %v5592
        %v5594 = vrot.slane %v5580, %v5593
        %v5595 = vcombine.low %v5416, %v5510
        %v5596 = vcombine.high %v5416, %v5510
        %v5598 = vunpack.c.l.s4 1983009808
        %v5599 = vunpack.c.0.s8 %v5598
        %v5600 = vlaneseq
        %v5601 = vshrl.u32 %v5600, 7
        %v5602 = vsub.s32 %v5599, %v5601
        %v5603 = vrot.slane %v5595, %v5602
        %v5605 = vunpack.c.l.s4 1983009808
        %v5606 = vunpack.c.0.s8 %v5605
        %v5607 = vlaneseq
        %v5608 = vshrl.u32 %v5607, 7
        %v5609 = vsub.s32 %v5606, %v5608
        %v5610 = vrot.slane %v5596, %v5609
        %v5611 = vcombine.low %v5463, %v5557
        %v5612 = vcombine.high %v5463, %v5557
        %v5614 = vunpack.c.l.s4 1983009808
        %v5615 = vunpack.c.0.s8 %v5614
        %v5616 = vlaneseq
        %v5617 = vshrl.u32 %v5616, 7
        %v5618 = vsub.s32 %v5615, %v5617
        %v5619 = vrot.slane %v5611, %v5618
        %v5621 = vunpack.c.l.s4 1983009808
        %v5622 = vunpack.c.0.s8 %v5621
        %v5623 = vlaneseq
        %v5624 = vshrl.u32 %v5623, 7
        %v5625 = vsub.s32 %v5622, %v5624
        %v5626 = vrot.slane %v5612, %v5625
        %v5627 = vcombine.low %v5571, %v5587
        %v5628 = vcombine.high %v5571, %v5587
        %v5630 = vunpack.c.l.s4 1934713408
        %v5631 = vunpack.c.0.s8 %v5630
        %v5632 = vlaneseq
        %v5633 = vshrl.u32 %v5632, 7
        %v5634 = vsub.s32 %v5631, %v5633
        %v5635 = vrot.slane %v5627, %v5634
        %v5637 = vunpack.c.l.s4 1934713408
        %v5638 = vunpack.c.0.s8 %v5637
        %v5639 = vlaneseq
        %v5640 = vshrl.u32 %v5639, 7
        %v5641 = vsub.s32 %v5638, %v5640
        %v5642 = vrot.slane %v5628, %v5641
        %v5643 = vcombine.low %v5578, %v5594
        %v5644 = vcombine.high %v5578, %v5594
        %v5646 = vunpack.c.l.s4 1934713408
        %v5647 = vunpack.c.0.s8 %v5646
        %v5648 = vlaneseq
        %v5649 = vshrl.u32 %v5648, 7
        %v5650 = vsub.s32 %v5647, %v5649
        %v5651 = vrot.slane %v5643, %v5650
        %v5653 = vunpack.c.l.s4 1934713408
        %v5654 = vunpack.c.0.s8 %v5653
        %v5655 = vlaneseq
        %v5656 = vshrl.u32 %v5655, 7
        %v5657 = vsub.s32 %v5654, %v5656
        %v5658 = vrot.slane %v5644, %v5657
        %v5659 = vcombine.low %v5603, %v5619
        %v5660 = vcombine.high %v5603, %v5619
        %v5662 = vunpack.c.l.s4 1934713408
        %v5663 = vunpack.c.0.s8 %v5662
        %v5664 = vlaneseq
        %v5665 = vshrl.u32 %v5664, 7
        %v5666 = vsub.s32 %v5663, %v5665
        %v5667 = vrot.slane %v5659, %v5666
        %v5669 = vunpack.c.l.s4 1934713408
        %v5670 = vunpack.c.0.s8 %v5669
        %v5671 = vlaneseq
        %v5672 = vshrl.u32 %v5671, 7
        %v5673 = vsub.s32 %v5670, %v5672
        %v5674 = vrot.slane %v5660, %v5673
        %v5675 = vcombine.low %v5610, %v5626
        %v5676 = vcombine.high %v5610, %v5626
        %v5678 = vunpack.c.l.s4 1934713408
        %v5679 = vunpack.c.0.s8 %v5678
        %v5680 = vlaneseq
        %v5681 = vshrl.u32 %v5680, 7
        %v5682 = vsub.s32 %v5679, %v5681
        %v5683 = vrot.slane %v5675, %v5682
        %v5685 = vunpack.c.l.s4 1934713408
        %v5686 = vunpack.c.0.s8 %v5685
        %v5687 = vlaneseq
        %v5688 = vshrl.u32 %v5687, 7
        %v5689 = vsub.s32 %v5686, %v5688
        %v5690 = vrot.slane %v5676, %v5689
        %v5691 = vcombine.low %v5635, %v5667
        %v5692 = vcombine.high %v5635, %v5667
        %v5693 = vcombine.low %v5642, %v5674
        %v5694 = vcombine.high %v5642, %v5674
        %v5695 = vcombine.low %v5651, %v5683
        %v5696 = vcombine.high %v5651, %v5683
        %v5697 = vcombine.low %v5658, %v5690
        %v5698 = vcombine.high %v5658, %v5690
        %v5699 = vcombine.low %v5231, %v5325
        %v5700 = vcombine.high %v5231, %v5325
        %v5702 = vunpack.c.l.s4 1983009808
        %v5703 = vunpack.c.0.s8 %v5702
        %v5704 = vlaneseq
        %v5705 = vshrl.u32 %v5704, 7
        %v5706 = vsub.s32 %v5703, %v5705
        %v5707 = vrot.slane %v5699, %v5706
        %v5709 = vunpack.c.l.s4 1983009808
        %v5710 = vunpack.c.0.s8 %v5709
        %v5711 = vlaneseq
        %v5712 = vshrl.u32 %v5711, 7
        %v5713 = vsub.s32 %v5710, %v5712
        %v5714 = vrot.slane %v5700, %v5713
        %v5715 = vcombine.low %v5278, %v5372
        %v5716 = vcombine.high %v5278, %v5372
        %v5718 = vunpack.c.l.s4 1983009808
        %v5719 = vunpack.c.0.s8 %v5718
        %v5720 = vlaneseq
        %v5721 = vshrl.u32 %v5720, 7
        %v5722 = vsub.s32 %v5719, %v5721
        %v5723 = vrot.slane %v5715, %v5722
        %v5725 = vunpack.c.l.s4 1983009808
        %v5726 = vunpack.c.0.s8 %v5725
        %v5727 = vlaneseq
        %v5728 = vshrl.u32 %v5727, 7
        %v5729 = vsub.s32 %v5726, %v5728
        %v5730 = vrot.slane %v5716, %v5729
        %v5731 = vcombine.low %v5419, %v5513
        %v5732 = vcombine.high %v5419, %v5513
        %v5734 = vunpack.c.l.s4 1983009808
        %v5735 = vunpack.c.0.s8 %v5734
        %v5736 = vlaneseq
        %v5737 = vshrl.u32 %v5736, 7
        %v5738 = vsub.s32 %v5735, %v5737
        %v5739 = vrot.slane %v5731, %v5738
        %v5741 = vunpack.c.l.s4 1983009808
        %v5742 = vunpack.c.0.s8 %v5741
        %v5743 = vlaneseq
        %v5744 = vshrl.u32 %v5743, 7
        %v5745 = vsub.s32 %v5742, %v5744
        %v5746 = vrot.slane %v5732, %v5745
        %v5747 = vcombine.low %v5466, %v5560
        %v5748 = vcombine.high %v5466, %v5560
        %v5750 = vunpack.c.l.s4 1983009808
        %v5751 = vunpack.c.0.s8 %v5750
        %v5752 = vlaneseq
        %v5753 = vshrl.u32 %v5752, 7
        %v5754 = vsub.s32 %v5751, %v5753
        %v5755 = vrot.slane %v5747, %v5754
        %v5757 = vunpack.c.l.s4 1983009808
        %v5758 = vunpack.c.0.s8 %v5757
        %v5759 = vlaneseq
        %v5760 = vshrl.u32 %v5759, 7
        %v5761 = vsub.s32 %v5758, %v5760
        %v5762 = vrot.slane %v5748, %v5761
        %v5763 = vcombine.low %v5707, %v5723
        %v5764 = vcombine.high %v5707, %v5723
        %v5766 = vunpack.c.l.s4 1934713408
        %v5767 = vunpack.c.0.s8 %v5766
        %v5768 = vlaneseq
        %v5769 = vshrl.u32 %v5768, 7
        %v5770 = vsub.s32 %v5767, %v5769
        %v5771 = vrot.slane %v5763, %v5770
        %v5773 = vunpack.c.l.s4 1934713408
        %v5774 = vunpack.c.0.s8 %v5773
        %v5775 = vlaneseq
        %v5776 = vshrl.u32 %v5775, 7
        %v5777 = vsub.s32 %v5774, %v5776
        %v5778 = vrot.slane %v5764, %v5777
        %v5779 = vcombine.low %v5714, %v5730
        %v5780 = vcombine.high %v5714, %v5730
        %v5782 = vunpack.c.l.s4 1934713408
        %v5783 = vunpack.c.0.s8 %v5782
        %v5784 = vlaneseq
        %v5785 = vshrl.u32 %v5784, 7
        %v5786 = vsub.s32 %v5783, %v5785
        %v5787 = vrot.slane %v5779, %v5786
        %v5789 = vunpack.c.l.s4 1934713408
        %v5790 = vunpack.c.0.s8 %v5789
        %v5791 = vlaneseq
        %v5792 = vshrl.u32 %v5791, 7
        %v5793 = vsub.s32 %v5790, %v5792
        %v5794 = vrot.slane %v5780, %v5793
        %v5795 = vcombine.low %v5739, %v5755
        %v5796 = vcombine.high %v5739, %v5755
        %v5798 = vunpack.c.l.s4 1934713408
        %v5799 = vunpack.c.0.s8 %v5798
        %v5800 = vlaneseq
        %v5801 = vshrl.u32 %v5800, 7
        %v5802 = vsub.s32 %v5799, %v5801
        %v5803 = vrot.slane %v5795, %v5802
        %v5805 = vunpack.c.l.s4 1934713408
        %v5806 = vunpack.c.0.s8 %v5805
        %v5807 = vlaneseq
        %v5808 = vshrl.u32 %v5807, 7
        %v5809 = vsub.s32 %v5806, %v5808
        %v5810 = vrot.slane %v5796, %v5809
        %v5811 = vcombine.low %v5746, %v5762
        %v5812 = vcombine.high %v5746, %v5762
        %v5814 = vunpack.c.l.s4 1934713408
        %v5815 = vunpack.c.0.s8 %v5814
        %v5816 = vlaneseq
        %v5817 = vshrl.u32 %v5816, 7
        %v5818 = vsub.s32 %v5815, %v5817
        %v5819 = vrot.slane %v5811, %v5818
        %v5821 = vunpack.c.l.s4 1934713408
        %v5822 = vunpack.c.0.s8 %v5821
        %v5823 = vlaneseq
        %v5824 = vshrl.u32 %v5823, 7
        %v5825 = vsub.s32 %v5822, %v5824
        %v5826 = vrot.slane %v5812, %v5825
        %v5827 = vcombine.low %v5771, %v5803
        %v5828 = vcombine.high %v5771, %v5803
        %v5829 = vcombine.low %v5778, %v5810
        %v5830 = vcombine.high %v5778, %v5810
        %v5831 = vcombine.low %v5787, %v5819
        %v5832 = vcombine.high %v5787, %v5819
        %v5833 = vcombine.low %v5794, %v5826
        %v5834 = vcombine.high %v5794, %v5826
        %v5835 = vcombine.low %v5691, %v5693
        %v5836 = vcombine.high %v5691, %v5693
        %v5838 = vunpack.c.l.s4 1983009808
        %v5839 = vunpack.c.0.s8 %v5838
        %v5840 = vlaneseq
        %v5841 = vshrl.u32 %v5840, 7
        %v5842 = vsub.s32 %v5839, %v5841
        %v5843 = vrot.slane %v5835, %v5842
        %v5845 = vunpack.c.l.s4 1983009808
        %v5846 = vunpack.c.0.s8 %v5845
        %v5847 = vlaneseq
        %v5848 = vshrl.u32 %v5847, 7
        %v5849 = vsub.s32 %v5846, %v5848
        %v5850 = vrot.slane %v5836, %v5849
        %v5851 = vcombine.low %v5692, %v5694
        %v5852 = vcombine.high %v5692, %v5694
        %v5854 = vunpack.c.l.s4 1983009808
        %v5855 = vunpack.c.0.s8 %v5854
        %v5856 = vlaneseq
        %v5857 = vshrl.u32 %v5856, 7
        %v5858 = vsub.s32 %v5855, %v5857
        %v5859 = vrot.slane %v5851, %v5858
        %v5861 = vunpack.c.l.s4 1983009808
        %v5862 = vunpack.c.0.s8 %v5861
        %v5863 = vlaneseq
        %v5864 = vshrl.u32 %v5863, 7
        %v5865 = vsub.s32 %v5862, %v5864
        %v5866 = vrot.slane %v5852, %v5865
        %v5867 = vcombine.low %v5695, %v5697
        %v5868 = vcombine.high %v5695, %v5697
        %v5870 = vunpack.c.l.s4 1983009808
        %v5871 = vunpack.c.0.s8 %v5870
        %v5872 = vlaneseq
        %v5873 = vshrl.u32 %v5872, 7
        %v5874 = vsub.s32 %v5871, %v5873
        %v5875 = vrot.slane %v5867, %v5874
        %v5877 = vunpack.c.l.s4 1983009808
        %v5878 = vunpack.c.0.s8 %v5877
        %v5879 = vlaneseq
        %v5880 = vshrl.u32 %v5879, 7
        %v5881 = vsub.s32 %v5878, %v5880
        %v5882 = vrot.slane %v5868, %v5881
        %v5883 = vcombine.low %v5696, %v5698
        %v5884 = vcombine.high %v5696, %v5698
        %v5886 = vunpack.c.l.s4 1983009808
        %v5887 = vunpack.c.0.s8 %v5886
        %v5888 = vlaneseq
        %v5889 = vshrl.u32 %v5888, 7
        %v5890 = vsub.s32 %v5887, %v5889
        %v5891 = vrot.slane %v5883, %v5890
        %v5893 = vunpack.c.l.s4 1983009808
        %v5894 = vunpack.c.0.s8 %v5893
        %v5895 = vlaneseq
        %v5896 = vshrl.u32 %v5895, 7
        %v5897 = vsub.s32 %v5894, %v5896
        %v5898 = vrot.slane %v5884, %v5897
        %v5899 = vcombine.low %v5843, %v5859
        %v5900 = vcombine.high %v5843, %v5859
        %v5902 = vunpack.c.l.s4 1934713408
        %v5903 = vunpack.c.0.s8 %v5902
        %v5904 = vlaneseq
        %v5905 = vshrl.u32 %v5904, 7
        %v5906 = vsub.s32 %v5903, %v5905
        %v5907 = vrot.slane %v5899, %v5906
        %v5909 = vunpack.c.l.s4 1934713408
        %v5910 = vunpack.c.0.s8 %v5909
        %v5911 = vlaneseq
        %v5912 = vshrl.u32 %v5911, 7
        %v5913 = vsub.s32 %v5910, %v5912
        %v5914 = vrot.slane %v5900, %v5913
        %v5915 = vcombine.low %v5850, %v5866
        %v5916 = vcombine.high %v5850, %v5866
        %v5918 = vunpack.c.l.s4 1934713408
        %v5919 = vunpack.c.0.s8 %v5918
        %v5920 = vlaneseq
        %v5921 = vshrl.u32 %v5920, 7
        %v5922 = vsub.s32 %v5919, %v5921
        %v5923 = vrot.slane %v5915, %v5922
        %v5925 = vunpack.c.l.s4 1934713408
        %v5926 = vunpack.c.0.s8 %v5925
        %v5927 = vlaneseq
        %v5928 = vshrl.u32 %v5927, 7
        %v5929 = vsub.s32 %v5926, %v5928
        %v5930 = vrot.slane %v5916, %v5929
        %v5931 = vcombine.low %v5875, %v5891
        %v5932 = vcombine.high %v5875, %v5891
        %v5934 = vunpack.c.l.s4 1934713408
        %v5935 = vunpack.c.0.s8 %v5934
        %v5936 = vlaneseq
        %v5937 = vshrl.u32 %v5936, 7
        %v5938 = vsub.s32 %v5935, %v5937
        %v5939 = vrot.slane %v5931, %v5938
        %v5941 = vunpack.c.l.s4 1934713408
        %v5942 = vunpack.c.0.s8 %v5941
        %v5943 = vlaneseq
        %v5944 = vshrl.u32 %v5943, 7
        %v5945 = vsub.s32 %v5942, %v5944
        %v5946 = vrot.slane %v5932, %v5945
        %v5947 = vcombine.low %v5882, %v5898
        %v5948 = vcombine.high %v5882, %v5898
        %v5950 = vunpack.c.l.s4 1934713408
        %v5951 = vunpack.c.0.s8 %v5950
        %v5952 = vlaneseq
        %v5953 = vshrl.u32 %v5952, 7
        %v5954 = vsub.s32 %v5951, %v5953
        %v5955 = vrot.slane %v5947, %v5954
        %v5957 = vunpack.c.l.s4 1934713408
        %v5958 = vunpack.c.0.s8 %v5957
        %v5959 = vlaneseq
        %v5960 = vshrl.u32 %v5959, 7
        %v5961 = vsub.s32 %v5958, %v5960
        %v5962 = vrot.slane %v5948, %v5961
        %v5963 = vcombine.low %v5907, %v5939
        %v5964 = vcombine.high %v5907, %v5939
        %v5965 = vcombine.low %v5914, %v5946
        %v5966 = vcombine.high %v5914, %v5946
        %v5967 = vcombine.low %v5923, %v5955
        %v5968 = vcombine.high %v5923, %v5955
        %v5969 = vcombine.low %v5930, %v5962
        %v5970 = vcombine.high %v5930, %v5962
        %v5971 = vcombine.low %v5827, %v5829
        %v5972 = vcombine.high %v5827, %v5829
        %v5974 = vunpack.c.l.s4 1983009808
        %v5975 = vunpack.c.0.s8 %v5974
        %v5976 = vlaneseq
        %v5977 = vshrl.u32 %v5976, 7
        %v5978 = vsub.s32 %v5975, %v5977
        %v5979 = vrot.slane %v5971, %v5978
        %v5981 = vunpack.c.l.s4 1983009808
        %v5982 = vunpack.c.0.s8 %v5981
        %v5983 = vlaneseq
        %v5984 = vshrl.u32 %v5983, 7
        %v5985 = vsub.s32 %v5982, %v5984
        %v5986 = vrot.slane %v5972, %v5985
        %v5987 = vcombine.low %v5828, %v5830
        %v5988 = vcombine.high %v5828, %v5830
        %v5990 = vunpack.c.l.s4 1983009808
        %v5991 = vunpack.c.0.s8 %v5990
        %v5992 = vlaneseq
        %v5993 = vshrl.u32 %v5992, 7
        %v5994 = vsub.s32 %v5991, %v5993
        %v5995 = vrot.slane %v5987, %v5994
        %v5997 = vunpack.c.l.s4 1983009808
        %v5998 = vunpack.c.0.s8 %v5997
        %v5999 = vlaneseq
        %v6000 = vshrl.u32 %v5999, 7
        %v6001 = vsub.s32 %v5998, %v6000
        %v6002 = vrot.slane %v5988, %v6001
        %v6003 = vcombine.low %v5831, %v5833
        %v6004 = vcombine.high %v5831, %v5833
        %v6006 = vunpack.c.l.s4 1983009808
        %v6007 = vunpack.c.0.s8 %v6006
        %v6008 = vlaneseq
        %v6009 = vshrl.u32 %v6008, 7
        %v6010 = vsub.s32 %v6007, %v6009
        %v6011 = vrot.slane %v6003, %v6010
        %v6013 = vunpack.c.l.s4 1983009808
        %v6014 = vunpack.c.0.s8 %v6013
        %v6015 = vlaneseq
        %v6016 = vshrl.u32 %v6015, 7
        %v6017 = vsub.s32 %v6014, %v6016
        %v6018 = vrot.slane %v6004, %v6017
        %v6019 = vcombine.low %v5832, %v5834
        %v6020 = vcombine.high %v5832, %v5834
        %v6022 = vunpack.c.l.s4 1983009808
        %v6023 = vunpack.c.0.s8 %v6022
        %v6024 = vlaneseq
        %v6025 = vshrl.u32 %v6024, 7
        %v6026 = vsub.s32 %v6023, %v6025
        %v6027 = vrot.slane %v6019, %v6026
        %v6029 = vunpack.c.l.s4 1983009808
        %v6030 = vunpack.c.0.s8 %v6029
        %v6031 = vlaneseq
        %v6032 = vshrl.u32 %v6031, 7
        %v6033 = vsub.s32 %v6030, %v6032
        %v6034 = vrot.slane %v6020, %v6033
        %v6035 = vcombine.low %v5979, %v5995
        %v6036 = vcombine.high %v5979, %v5995
        %v6038 = vunpack.c.l.s4 1934713408
        %v6039 = vunpack.c.0.s8 %v6038
        %v6040 = vlaneseq
        %v6041 = vshrl.u32 %v6040, 7
        %v6042 = vsub.s32 %v6039, %v6041
        %v6043 = vrot.slane %v6035, %v6042
        %v6045 = vunpack.c.l.s4 1934713408
        %v6046 = vunpack.c.0.s8 %v6045
        %v6047 = vlaneseq
        %v6048 = vshrl.u32 %v6047, 7
        %v6049 = vsub.s32 %v6046, %v6048
        %v6050 = vrot.slane %v6036, %v6049
        %v6051 = vcombine.low %v5986, %v6002
        %v6052 = vcombine.high %v5986, %v6002
        %v6054 = vunpack.c.l.s4 1934713408
        %v6055 = vunpack.c.0.s8 %v6054
        %v6056 = vlaneseq
        %v6057 = vshrl.u32 %v6056, 7
        %v6058 = vsub.s32 %v6055, %v6057
        %v6059 = vrot.slane %v6051, %v6058
        %v6061 = vunpack.c.l.s4 1934713408
        %v6062 = vunpack.c.0.s8 %v6061
        %v6063 = vlaneseq
        %v6064 = vshrl.u32 %v6063, 7
        %v6065 = vsub.s32 %v6062, %v6064
        %v6066 = vrot.slane %v6052, %v6065
        %v6067 = vcombine.low %v6011, %v6027
        %v6068 = vcombine.high %v6011, %v6027
        %v6070 = vunpack.c.l.s4 1934713408
        %v6071 = vunpack.c.0.s8 %v6070
        %v6072 = vlaneseq
        %v6073 = vshrl.u32 %v6072, 7
        %v6074 = vsub.s32 %v6071, %v6073
        %v6075 = vrot.slane %v6067, %v6074
        %v6077 = vunpack.c.l.s4 1934713408
        %v6078 = vunpack.c.0.s8 %v6077
        %v6079 = vlaneseq
        %v6080 = vshrl.u32 %v6079, 7
        %v6081 = vsub.s32 %v6078, %v6080
        %v6082 = vrot.slane %v6068, %v6081
        %v6083 = vcombine.low %v6018, %v6034
        %v6084 = vcombine.high %v6018, %v6034
        %v6086 = vunpack.c.l.s4 1934713408
        %v6087 = vunpack.c.0.s8 %v6086
        %v6088 = vlaneseq
        %v6089 = vshrl.u32 %v6088, 7
        %v6090 = vsub.s32 %v6087, %v6089
        %v6091 = vrot.slane %v6083, %v6090
        %v6093 = vunpack.c.l.s4 1934713408
        %v6094 = vunpack.c.0.s8 %v6093
        %v6095 = vlaneseq
        %v6096 = vshrl.u32 %v6095, 7
        %v6097 = vsub.s32 %v6094, %v6096
        %v6098 = vrot.slane %v6084, %v6097
        %v6099 = vcombine.low %v6043, %v6075
        %v6100 = vcombine.high %v6043, %v6075
        %v6101 = vcombine.low %v6050, %v6082
        %v6102 = vcombine.high %v6050, %v6082
        %v6103 = vcombine.low %v6059, %v6091
        %v6104 = vcombine.high %v6059, %v6091
        %v6105 = vcombine.low %v6066, %v6098
        %v6106 = vcombine.high %v6066, %v6098
        %6109 = vrot.lane.b32.xlu0 %v5964, 16
        %v6110 = vpop.permute.xlu0 %6109
        %6111 = vrot.lane.b32.xlu0 %v6100, 16
        %v6112 = vpop.permute.xlu0 %6111
        %6117 = vrot.lane.b32.xlu0 %v5965, 32
        %v6118 = vpop.permute.xlu0 %6117
        %6119 = vrot.lane.b32.xlu0 %v6101, 32
        %v6120 = vpop.permute.xlu0 %6119
        %6125 = vrot.lane.b32.xlu0 %v5966, 48
        %v6126 = vpop.permute.xlu0 %6125
        %6127 = vrot.lane.b32.xlu0 %v6102, 48
        %v6128 = vpop.permute.xlu0 %6127
        %6133 = vrot.lane.b32.xlu0 %v5967, 64
        %v6134 = vpop.permute.xlu0 %6133
        %6135 = vrot.lane.b32.xlu0 %v6103, 64
        %v6136 = vpop.permute.xlu0 %6135
        %6141 = vrot.lane.b32.xlu0 %v5968, 80
        %v6142 = vpop.permute.xlu0 %6141
        %6143 = vrot.lane.b32.xlu0 %v6104, 80
        %v6144 = vpop.permute.xlu0 %6143
        %6149 = vrot.lane.b32.xlu0 %v5969, 96
        %v6150 = vpop.permute.xlu0 %6149
        %6151 = vrot.lane.b32.xlu0 %v6105, 96
        %v6152 = vpop.permute.xlu0 %6151
        %6157 = vrot.lane.b32.xlu0 %v5970, 112
        %v6158 = vpop.permute.xlu0 %6157
        %6159 = vrot.lane.b32.xlu0 %v6106, 112
        %v6160 = vpop.permute.xlu0 %6159
        %v6163 = vsel %vm2190, %v5963, %v6110
        %v6164 = vsel %vm2190, %v6099, %v6112
        %v6165 = vsel %vm3300, %v6163, %v6118
        %v6166 = vsel %vm3300, %v6164, %v6120
        %v6167 = vsel %vm3302, %v6165, %v6126
        %v6168 = vsel %vm3302, %v6166, %v6128
        %v6169 = vsel %vm3304, %v6167, %v6134
        %v6170 = vsel %vm3304, %v6168, %v6136
        %v6171 = vsel %vm3306, %v6169, %v6142
        %v6172 = vsel %vm3306, %v6170, %v6144
        %v6173 = vsel %vm3308, %v6171, %v6150
        %v6174 = vsel %vm3308, %v6172, %v6152
        %v6175 = vsel %vm3310, %v6173, %v6158
        %v6176 = vsel %vm3310, %v6174, %v6160
        %v6177 = vpack.c.bf16 %v6176, %v6175
        %v6178 = vld [vmem:[%s8] sm:$0xf]
        %v6179 = vld [vmem:[%s8 + $0x4] sm:$0xf]
        %v6180 = vld [vmem:[%s8 + $0x8] sm:$0xf]
        %v6181 = vld [vmem:[%s8 + $0xc] sm:$0xf]
        %v6182 = vld [vmem:[%s8 + $0x10] sm:$0xf]
        %v6183 = vld [vmem:[%s8 + $0x14] sm:$0xf]
        %v6184 = vld [vmem:[%s8 + $0x18] sm:$0xf]
        %v6185 = vld [vmem:[%s8 + $0x1c] sm:$0xf]
        %v6186 = vld [vmem:[%s8 + $0x20] sm:$0xf]
        %v6187 = vld [vmem:[%s8 + $0x24] sm:$0xf]
        %v6188 = vld [vmem:[%s8 + $0x28] sm:$0xf]
        %v6189 = vld [vmem:[%s8 + $0x2c] sm:$0xf]
        %v6190 = vld [vmem:[%s8 + $0x30] sm:$0xf]
        %v6191 = vld [vmem:[%s8 + $0x34] sm:$0xf]
        %v6192 = vld [vmem:[%s8 + $0x38] sm:$0xf]
        %v6193 = vld [vmem:[%s8 + $0x3c] sm:$0xf]
        %v6194 = vld [vmem:[%s9] sm:$0x1]
        %v6196 = vlaneseq
        %v6197 = vshrl.u32 %v6196, 7
        %v6198 = vsub.s32 0, %v6197
        %v6199 = vrot.slane %v6194, %v6198
        %v6217 = vunpack.c.l.b16 %v6178
        %v6218 = vunpack.c.l.b16 %v6179
        %v6219 = vunpack.c.l.b16 %v6180
        %v6220 = vunpack.c.l.b16 %v6181
        %v6221 = vunpack.c.l.b16 %v6182
        %v6222 = vunpack.c.l.b16 %v6183
        %v6223 = vunpack.c.l.b16 %v6184
        %v6224 = vunpack.c.l.b16 %v6185
        %v6225 = vunpack.c.l.b16 %v6186
        %v6226 = vunpack.c.l.b16 %v6187
        %v6227 = vunpack.c.l.b16 %v6188
        %v6228 = vunpack.c.l.b16 %v6189
        %v6229 = vunpack.c.l.b16 %v6190
        %v6230 = vunpack.c.l.b16 %v6191
        %v6231 = vunpack.c.l.b16 %v6192
        %v6232 = vunpack.c.l.b16 %v6193
        %v6233 = vpack.c.b16 %v6218, %v6217
        %v6234 = vpack.c.b16 %v6220, %v6219
        %v6235 = vpack.c.b16 %v6222, %v6221
        %v6236 = vpack.c.b16 %v6224, %v6223
        %v6237 = vpack.c.b16 %v6226, %v6225
        %v6238 = vpack.c.b16 %v6228, %v6227
        %v6239 = vpack.c.b16 %v6230, %v6229
        %v6240 = vpack.c.b16 %v6232, %v6231
        %6249 = vmatprep.subr.bf16.mxu0 0
        %6250 = vmatpush1.bf16.msra.mxu0 %v6233
        %6251 = vmatprep.subr.bf16.mxu0 0
        %6252 = vmatpush1.bf16.msra.mxu0 %v6234
        %6253 = vmatprep.subr.bf16.mxu0 0
        %6254 = vmatpush1.bf16.msra.mxu0 %v6235
        %6255 = vmatprep.subr.bf16.mxu0 0
        %6256 = vmatpush1.bf16.msra.mxu0 %v6236
        %6257 = vmatprep.subr.bf16.mxu0 0
        %6258 = vmatpush1.bf16.msra.mxu0 %v6237
        %6259 = vmatprep.subr.bf16.mxu0 0
        %6260 = vmatpush1.bf16.msra.mxu0 %v6238
        %6261 = vmatprep.subr.bf16.mxu0 0
        %6262 = vmatpush1.bf16.msra.mxu0 %v6239
        %6263 = vmatprep.subr.bf16.mxu0 0
        %6264 = vmatpush1.bf16.msra.mxu0 %v6240
        %6265 = vmatprep.subr.bf16.mxu0 0
        %6266 = vmatpush1.bf16.msra.mxu0 0
        %6267 = vmatprep.subr.bf16.mxu0 0
        %6268 = vmatpush1.bf16.msra.mxu0 0
        %6269 = vmatprep.subr.bf16.mxu0 0
        %6270 = vmatpush1.bf16.msra.mxu0 0
        %6271 = vmatprep.subr.bf16.mxu0 0
        %6272 = vmatpush1.bf16.msra.mxu0 0
        %6273 = vmatprep.subr.bf16.mxu0 0
        %6274 = vmatpush1.bf16.msra.mxu0 0
        %6275 = vmatprep.subr.bf16.mxu0 0
        %6276 = vmatpush1.bf16.msra.mxu0 0
        %6277 = vmatprep.subr.bf16.mxu0 0
        %6278 = vmatpush1.bf16.msra.mxu0 0
        %6279 = vmatprep.subr.bf16.mxu0 0
        %6280 = vmatpush1.bf16.msra.mxu0 0
        %6281 = vmatprep.mubr.bf16.mxu0 0
        %6282 = vmatmul.mubr.bf16.gmra.mrb[0].mxu0 %v6177
        %v6283 = vpop.f32.mrb[0].mxu0
        %v6284 = vadd.f32 %v6199, %v6283
        %v6285 = vpop.f32.mrb[0].mxu0
        %v6286 = vpop.f32.mrb[0].mxu0
        %v6287 = vadd.f32 %v6199, %v6286
        %v6288 = vpop.f32.mrb[0].mxu0
        %6289 = vdwg.mxu0
        %6290 = vst.msk [vmem:[%s403] sm:$0xff] %vm3300, %v6284
        %6291 = vst.msk [vmem:[%s403 + $0x8] sm:$0xff] %vm3300, %v6287
        %s6292 = sand.u32 %s257, 1
        %s6293 = scalar_lea.sflag [#allocation3], %s6292
        %s6294 = sand.u32 %s257, 1
        %s6295 = smul.addr %s6294, 8
        %s6296 = scalar_lea.vmem [#allocation2], %s6295
        %s6297 = sand.u32 %s283, 1
        %s6298 = scalar_lea.sflag [#allocation5], %s6297
        %s6299 = sand.u32 %s283, 1
        %s6300 = smul.addr %s6299, 16
        %s6301 = scalar_lea.vmem [#allocation4], %s6300
        // Predicated region
        $region61: #{co_attention_forward.1} parent=59 // pred_check
          %p6302 = pneg %p267
        $region62: #{co_attention_forward.1} parent=59 // pred_check_branch
          %6304 = sbr.rel (%p6302) target = $region64
        $region63: #{co_attention_forward.1} parent=59 // pred_region
          %s6306 = ssub.s32 128, 128
          %6307 = vsyncadd %s6293, %s6306
          %s6308 = smul.addr %s29, 128
          %s6309 = scalar_lea.hbm %s10, %s6308
          %s6311 = sshll.u32 %s6296, 4
          %s6312 = int_to_ptr.vmem [resolvable:$true] %s6311
          %6314 = dma.vmem_to_hbm [thread:$0]  %s6312, 128, %s6309, %s6293
        $region64: #{co_attention_forward.1} parent=59 // pred_fallthru
          _
        // Predicated region
        $region65: #{co_attention_forward.1} parent=59 // pred_check
          %p6315 = pneg %p293
        $region66: #{co_attention_forward.1} parent=59 // pred_check_branch
          %6317 = sbr.rel (%p6315) target = $region68
        $region67: #{co_attention_forward.1} parent=59 // pred_region
          %s6319 = ssub.s32 256, 256
          %6320 = vsyncadd %s6298, %s6319
          %s6321 = smul.addr %s29, 2
          %s6322 = smul.addr %s6321, 128
          %s6323 = scalar_lea.hbm %s11, %s6322
          %s6324 = sshll.u32 %s6301, 4
          %s6325 = int_to_ptr.vmem [resolvable:$true] %s6324
          %6330 = dma.vmem_to_hbm [thread:$0]  %s6325, 256, %s6323, %s6298, 128, 128, 8
        $region68: #{co_attention_forward.1} parent=59 // pred_fallthru
          _
      $region60: #{co_attention_forward.1} parent=5 // pred_fallthru
        _
      %p6331 = scmp.le.s32.totalorder 2, %s24
      // Predicated region
      $region69: #{co_attention_forward.1} parent=5 // pred_check
        %p6332 = pneg %p6331
      $region70: #{co_attention_forward.1} parent=5 // pred_check_branch
        %6334 = sbr.rel (%p6332) target = $region72
      $region71: #{co_attention_forward.1} parent=5 // pred_region
        %s6335 = ssub.s32 %s24, 2
        // Predicated region
        $region73: #{co_attention_forward.1} parent=71 // pred_check
          %p6336 = pneg %p273
        $region74: #{co_attention_forward.1} parent=71 // pred_check_branch
          %6338 = sbr.rel (%p6336) target = $region76
        $region75: #{co_attention_forward.1} parent=71 // pred_region
          %s6339 = sand.u32 %s258, 1
          %s6340 = scalar_lea.sflag [#allocation3], %s6339
          %s6341 = sand.u32 %s258, 1
          %s6342 = smul.addr %s6341, 8
          %s6343 = scalar_lea.vmem [#allocation2], %s6342
          %6344 = dma.done %s6340, 128
        $region76: #{co_attention_forward.1} parent=71 // pred_fallthru
          _
        // Predicated region
        $region77: #{co_attention_forward.1} parent=71 // pred_check
          %p6345 = pneg %p299
        $region78: #{co_attention_forward.1} parent=71 // pred_check_branch
          %6347 = sbr.rel (%p6345) target = $region80
        $region79: #{co_attention_forward.1} parent=71 // pred_region
          %s6348 = sand.u32 %s284, 1
          %s6349 = scalar_lea.sflag [#allocation5], %s6348
          %s6350 = sand.u32 %s284, 1
          %s6351 = smul.addr %s6350, 16
          %s6352 = scalar_lea.vmem [#allocation4], %s6351
          %6353 = dma.done %s6349, 256
        $region80: #{co_attention_forward.1} parent=71 // pred_fallthru
          _
      $region72: #{co_attention_forward.1} parent=5 // pred_fallthru
        _
    $region6: #{co_attention_forward.1} parent=1 // loop_footer
      %s28 = sadd.s32 1, %s24
    $region7: #{co_attention_forward.1} parent=1 // loop_footer_branch
      %23 = sbr.rel target = $region3
    $region8: #{co_attention_forward.1} parent=1 // loop_exit
      _
    %6354 = vsyncpa [#allocation3], 1
    %s6355 = scalar_lea.sflag [#allocation3], 1
    %6356 = vsyncpa %s6355, 1
    %6357 = vsyncpa [#allocation5], 1
    %s6358 = scalar_lea.sflag [#allocation5], 1
    %6359 = vsyncpa %s6358, 1

</llo_original>
